<compile_context>
chip_gen: v7x
topology: tpu7x:2x2x1
jax: 0.10.0
libtpu: 0.0.40
codegen_flags: <defaults>
</compile_context>

<pallas_src>
import functools

import jax
import jax.numpy as jnp
from jax.experimental import pallas as pl
from jax.experimental.pallas import tpu as pltpu

LANE = 128
SUBLANE = 8


def _round_up(x, m):
    return ((x + m - 1) // m) * m


# ----------------------------- Pallas kernel ------------------------------- #
def siamese_bilstm_kernel(
    x_ref,      # (T, 2, Bt, Ep) f32   time-major, sentence axis second
    wxf_ref,    # (Ep, 4*Hp)     bf16  forward-dir input->gates (pre-transposed)
    whf_ref,    # (Hp, 4*Hp)     bf16  forward-dir hidden->gates
    bf_ref,     # (1, 4*Hp)      f32   forward-dir bias (b_ih + b_hh)
    wxb_ref,    # (Ep, 4*Hp)     bf16  backward-dir input->gates
    bb_ref,     # (1, 4*Hp)      f32   backward-dir bias (b_ih + b_hh)
    lrw_ref,    # (4, Hp, Cp)    bf16  classifier blocks for [hf1, hb1, hf2, hb2]
    lrb_ref,    # (1, Cp)        f32
    out_ref,    # (Bt, Cp)       f32   padded logits (single lane-dense store)
    gx_ref,     # (T, 2*Bt, 4*Hp) f32  VMEM scratch: precomputed input gates
):
    t_steps = x_ref.shape[0]
    bt = x_ref.shape[2]
    ep = x_ref.shape[3]
    n_rows = 2 * bt
    hp = whf_ref.shape[0]
    gp = whf_ref.shape[1]

    # ---- hoisted input->gates matmul for ALL timesteps (bias folded in) -----
    # M = T*2*Bt rows instead of 2*Bt per step -> far better MXU occupancy, and
    # the serial recurrence below carries only the h @ Wh dot.
    x_all = x_ref[...].reshape(t_steps * n_rows, ep).astype(jnp.bfloat16)
    gates_x = (jnp.dot(x_all, wxf_ref[...], preferred_element_type=jnp.float32)
               + bf_ref[...])                               # (T*2Bt, Gp)
    gx_ref[...] = gates_x.reshape(t_steps, n_rows, gp)

    def gates_to_state(gates, c_prev):
        # PyTorch gate order i, f, g, o; i/f share ONE sigmoid (contiguous span).
        if_g = jax.nn.sigmoid(gates[:, 0:2 * hp])
        i_g = if_g[:, 0:hp]
        f_g = if_g[:, hp:2 * hp]
        g_g = jnp.tanh(gates[:, 2 * hp:3 * hp])
        o_g = jax.nn.sigmoid(gates[:, 3 * hp:4 * hp])
        c = f_g * c_prev + i_g * g_g
        h = o_g * jnp.tanh(c)
        return h, c

    # ---- backward direction: out[:, -1, :] only needs the FIRST reverse step
    # (zero initial state, input x_{T-1}); issued before the recurrence so it
    # sits in MXU/EUP slack instead of extending the serial tail.
    x_last = x_all[(t_steps - 1) * n_rows:, :]              # (2Bt, Ep) bf16
    gates_b = (jnp.dot(x_last, wxb_ref[...],
                       preferred_element_type=jnp.float32) + bb_ref[...])
    h_bwd, _ = gates_to_state(gates_b, jnp.zeros((n_rows, hp), jnp.float32))

    # ---- forward direction: T-step recurrence (both sentences batched) ------
    whf = whf_ref[...]                                      # hoisted bf16 load

    def step(t, carry):
        h, c = carry
        gates = gx_ref[t] + jnp.dot(h.astype(jnp.bfloat16), whf,
                                    preferred_element_type=jnp.float32)
        return gates_to_state(gates, c)

    h0 = jnp.zeros((n_rows, hp), jnp.float32)
    c0 = jnp.zeros((n_rows, hp), jnp.float32)
    # T is small here; switch to a bounded unroll (e.g. 4/8) if T grows.
    h_fwd, _ = jax.lax.fori_loop(0, t_steps, step, (h0, c0), unroll=True)

    # ---- classifier on cat([rep1, rep2]) as four accumulated dots -----------
    # Slice f32 state on the 8-aligned sentence boundary, then cast to bf16.
    logits = (jnp.dot(h_fwd[:bt].astype(jnp.bfloat16), lrw_ref[0],
                      preferred_element_type=jnp.float32)
              + jnp.dot(h_bwd[:bt].astype(jnp.bfloat16), lrw_ref[1],
                        preferred_element_type=jnp.float32)
              + jnp.dot(h_fwd[bt:].astype(jnp.bfloat16), lrw_ref[2],
                        preferred_element_type=jnp.float32)
              + jnp.dot(h_bwd[bt:].astype(jnp.bfloat16), lrw_ref[3],
                        preferred_element_type=jnp.float32)
              + lrb_ref[...])
    out_ref[...] = logits


# ------------------------ one-time weight packing --------------------------- #
def pack_params(params, hidden_size, embedding_size, num_classes):
    """Transpose / zero-pad / bf16-cast PyTorch-layout weights. Run once."""
    H, E, C = hidden_size, embedding_size, num_classes
    Hp = _round_up(H, LANE)
    Ep = _round_up(E, LANE)
    Cp = _round_up(C, LANE)
    Gp = 4 * Hp

    def pack_wx(w_ih):                       # (4H, E) -> (Ep, Gp) bf16
        w = jnp.zeros((Ep, Gp), jnp.float32)
        for g in range(4):
            w = w.at[:E, g * Hp:g * Hp + H].set(w_ih[g * H:(g + 1) * H, :].T)
        return w.astype(jnp.bfloat16)

    def pack_wh(w_hh):                       # (4H, H) -> (Hp, Gp) bf16
        w = jnp.zeros((Hp, Gp), jnp.float32)
        for g in range(4):
            w = w.at[:H, g * Hp:g * Hp + H].set(w_hh[g * H:(g + 1) * H, :].T)
        return w.astype(jnp.bfloat16)

    def pack_bias(b_ih, b_hh):               # (4H,) -> (1, Gp) f32
        b = b_ih + b_hh
        v = jnp.zeros((1, Gp), jnp.float32)
        for g in range(4):
            v = v.at[0, g * Hp:g * Hp + H].set(b[g * H:(g + 1) * H])
        return v

    # similarity column layout is [h_f1 | h_b1 | h_f2 | h_b2], each width H.
    lrw = jnp.zeros((4, Hp, Cp), jnp.float32)
    for g in range(4):
        lrw = lrw.at[g, :H, :C].set(params["lr_w"][:, g * H:(g + 1) * H].T)
    lrb = jnp.zeros((1, Cp), jnp.float32).at[0, :C].set(params["lr_b"])

    emb_p = jnp.zeros((params["embedding"].shape[0], Ep), jnp.float32)
    emb_p = emb_p.at[:, :E].set(params["embedding"])

    return {
        "embedding_p": emb_p,
        "wx_f": pack_wx(params["w_ih_f"]),
        "wh_f": pack_wh(params["w_hh_f"]),
        "b_f": pack_bias(params["b_ih_f"], params["b_hh_f"]),
        "wx_b": pack_wx(params["w_ih_b"]),
        "b_b": pack_bias(params["b_ih_b"], params["b_hh_b"]),
        # w_hh_b is mathematically unused for out[:, -1, :] (zero init state).
        "lrw": lrw.astype(jnp.bfloat16),
        "lr_b": lrb,
    }


# ------------------------------ wrapper ------------------------------------- #
def siamese_bilstm_forward(kparams, sentence_1, sentence_2, *, num_classes):
    """Mirrors Siamese_BiLSTM.forward (train path, dropout_rate = 0.0)."""
    B, T = sentence_1.shape
    emb_p = kparams["embedding_p"]                        # (V, Ep) f32
    Ep = emb_p.shape[1]
    Hp = kparams["wh_f"].shape[0]
    Gp = kparams["wh_f"].shape[1]
    Cp = kparams["lr_b"].shape[1]

    Bt = SUBLANE                                          # batch tile (8 rows)
    Bp = _round_up(B, Bt)
    n_rows = 2 * Bt

    # Build x time-major directly: transpose the tiny int32 id tensor, gather
    # once.  No transpose of the embedded (T, 2, Bp, Ep) activation tensor.
    ids = jnp.stack([sentence_1, sentence_2], axis=0)     # (2, B, T)
    ids = jnp.pad(ids, ((0, 0), (0, Bp - B), (0, 0)))     # (2, Bp, T)
    ids = jnp.transpose(ids, (2, 0, 1))                   # (T, 2, Bp)
    x = jnp.take(emb_p, ids, axis=0)                      # (T, 2, Bp, Ep) f32
    # TODO(synk): for large vocab/T, move this gather in-kernel via
    # PrefetchScalarGridSpec scalar-prefetched ids + pl.Element row gather.

    def full_spec(shape):
        return pl.BlockSpec(shape, lambda i: (0,) * len(shape))

    out_p = pl.pallas_call(
        siamese_bilstm_kernel,
        out_shape=jax.ShapeDtypeStruct((Bp, Cp), jnp.float32),
        grid_spec=pltpu.PrefetchScalarGridSpec(
            num_scalar_prefetch=0,
            grid=(Bp // Bt,),
            in_specs=[
                pl.BlockSpec((T, 2, Bt, Ep), lambda i: (0, 0, i, 0)),
                full_spec(kparams["wx_f"].shape),
                full_spec(kparams["wh_f"].shape),
                full_spec(kparams["b_f"].shape),
                full_spec(kparams["wx_b"].shape),
                full_spec(kparams["b_b"].shape),
                full_spec(kparams["lrw"].shape),
                full_spec(kparams["lr_b"].shape),
            ],
            out_specs=pl.BlockSpec((Bt, Cp), lambda i: (i, 0)),
            scratch_shapes=[pltpu.VMEM((T, n_rows, Gp), jnp.float32)],
        ),
        compiler_params=pltpu.CompilerParams(
            dimension_semantics=("parallel",)),
    )(x, kparams["wx_f"], kparams["wh_f"], kparams["b_f"],
      kparams["wx_b"], kparams["b_b"], kparams["lrw"], kparams["lr_b"])

    return out_p[:B, :num_classes]


# --------------------------- pure-JAX reference ----------------------------- #
def reference_forward(params, sentence_1, sentence_2, hidden_size,
                      matmul_dtype=jnp.float32):
    """Full bidirectional LSTM (both directions, all timesteps).  With
    matmul_dtype=bfloat16 it emulates the kernel's bf16 matmul operands with
    f32 accumulation, so the kernel math can be checked tightly."""
    H = hidden_size

    def mm(a, b):
        return jnp.dot(a.astype(matmul_dtype), b.astype(matmul_dtype),
                       preferred_element_type=jnp.float32)

    def lstm_dir(x, w_ih, w_hh, b_ih, b_hh):
        B = x.shape[0]

        def cell(carry, x_t):
            h, c = carry
            gates = mm(x_t, w_ih.T) + mm(h, w_hh.T) + b_ih + b_hh
            i = jax.nn.sigmoid(gates[:, 0 * H:1 * H])
            f = jax.nn.sigmoid(gates[:, 1 * H:2 * H])
            g = jnp.tanh(gates[:, 2 * H:3 * H])
            o = jax.nn.sigmoid(gates[:, 3 * H:4 * H])
            c = f * c + i * g
            h = o * jnp.tanh(c)
            return (h, c), h

        init = (jnp.zeros((B, H), jnp.float32), jnp.zeros((B, H), jnp.float32))
        _, hs = jax.lax.scan(cell, init, jnp.swapaxes(x, 0, 1))
        return jnp.swapaxes(hs, 0, 1)                     # (B, T, H)

    def siamese(sent):
        emb = jnp.take(params["embedding"], sent, axis=0)          # (B, T, E)
        out_f = lstm_dir(emb, params["w_ih_f"], params["w_hh_f"],
                         params["b_ih_f"], params["b_hh_f"])
        out_b = lstm_dir(emb[:, ::-1, :], params["w_ih_b"], params["w_hh_b"],
                         params["b_ih_b"], params["b_hh_b"])[:, ::-1, :]
        out = jnp.concatenate([out_f, out_b], axis=-1)             # (B, T, 2H)
        return out[:, -1, :]

    sim = jnp.concatenate([siamese(sentence_1), siamese(sentence_2)], axis=1)
    return mm(sim, params["lr_w"].T) + params["lr_b"]


# ------------------------------ param init ---------------------------------- #
def init_params(key, vocab_size, embedding_size, hidden_size, num_classes):
    H, E = hidden_size, embedding_size
    ks = jax.random.split(key, 11)

    def uni(k, fan_in, shape):
        bound = 1.0 / jnp.sqrt(fan_in)
        return jax.random.uniform(k, shape, jnp.float32, -bound, bound)

    return {
        "embedding": jax.random.normal(ks[0], (vocab_size, E), jnp.float32),
        # LSTM weights, PyTorch layout (4H, in) and gate order (i, f, g, o).
        "w_ih_f": uni(ks[1], H, (4 * H, E)),
        "w_hh_f": uni(ks[2], H, (4 * H, H)),
        "b_ih_f": uni(ks[3], H, (4 * H,)),
        "b_hh_f": uni(ks[4], H, (4 * H,)),
        "w_ih_b": uni(ks[5], H, (4 * H, E)),
        "w_hh_b": uni(ks[6], H, (4 * H, H)),
        "b_ih_b": uni(ks[7], H, (4 * H,)),
        "b_hh_b": uni(ks[8], H, (4 * H,)),
        # LogisticRegression: Linear(4H, num_classes).
        "lr_w": uni(ks[9], 4 * H, (num_classes, 4 * H)),
        "lr_b": uni(ks[10], 4 * H, (num_classes,)),
    }


# --------------------------------- main -------------------------------------- #
if __name__ == "__main__":
    B = 2
    T = 8
    vocab_size = 100
    embedding_size = 32
    hidden_size = 32
    num_layers = 1             # kernel implements num_layers == 1
    num_classes = 8
    dropout_rate = 0.0         # nn.Dropout(p=0.0) is identity on the train path

    key = jax.random.PRNGKey(0)
    kp, k1, k2 = jax.random.split(key, 3)
    params = init_params(kp, vocab_size, embedding_size, hidden_size, num_classes)
    kparams = pack_params(params, hidden_size, embedding_size, num_classes)

    sentence_1 = jax.random.randint(k1, (B, T), 0, vocab_size, jnp.int32)
    sentence_2 = jax.random.randint(k2, (B, T), 0, vocab_size, jnp.int32)

    fwd = jax.jit(functools.partial(siamese_bilstm_forward,
                                    num_classes=num_classes))
    logit = fwd(kparams, sentence_1, sentence_2)
    jax.block_until_ready(logit)
    assert logit.shape == (B, num_classes)

    # Tight check: reference with the same bf16 matmul operands / f32 accum.
    ref_bf16 = reference_forward(params, sentence_1, sentence_2, hidden_size,
                                 matmul_dtype=jnp.bfloat16)
    assert jnp.allclose(logit, ref_bf16, atol=5e-3, rtol=5e-3), \
        float(jnp.max(jnp.abs(logit - ref_bf16)))

    # Semantic check vs pure-f32 PyTorch math (loose: bf16 matmul operands).
    ref_f32 = reference_forward(params, sentence_1, sentence_2, hidden_size)
    assert jnp.allclose(logit, ref_f32, atol=5e-2, rtol=5e-2), \
        float(jnp.max(jnp.abs(logit - ref_f32)))

    print("KERNEL_OK")
</pallas_src>

<mosaic_0001>
module attributes {stable_mosaic.version = 11 : i64} {
  func.func @siamese_bilstm_kernel(%arg0: i32, %arg1: memref<8x2x8x128xf32, #tpu.memory_space<vmem>>, %arg2: memref<128x512xbf16, #tpu.memory_space<vmem>>, %arg3: memref<128x512xbf16, #tpu.memory_space<vmem>>, %arg4: memref<1x512xf32, #tpu.memory_space<vmem>>, %arg5: memref<128x512xbf16, #tpu.memory_space<vmem>>, %arg6: memref<1x512xf32, #tpu.memory_space<vmem>>, %arg7: memref<4x128x128xbf16, #tpu.memory_space<vmem>>, %arg8: memref<1x128xf32, #tpu.memory_space<vmem>>, %arg9: memref<8x128xf32, #tpu.memory_space<vmem>>, %arg10: memref<8x16x512xf32, #tpu.memory_space<vmem>>) attributes {dimension_semantics = [#tpu.dimension_semantics<parallel>], iteration_bounds = array<i64: 1>, scalar_prefetch = 0 : i64, scratch_operands = 1 : i64, tpu.core_type = #tpu.core_type<tc>, window_params = [{transform_indices = @transform_0, window_bounds = array<i64: 8, 2, 8, 128>}, {pipeline_mode = #tpu.pipeline_mode<synchronous>, transform_indices = @transform_1, window_bounds = array<i64: 128, 512>}, {pipeline_mode = #tpu.pipeline_mode<synchronous>, transform_indices = @transform_2, window_bounds = array<i64: 128, 512>}, {pipeline_mode = #tpu.pipeline_mode<synchronous>, transform_indices = @transform_3, window_bounds = array<i64: 1, 512>}, {pipeline_mode = #tpu.pipeline_mode<synchronous>, transform_indices = @transform_4, window_bounds = array<i64: 128, 512>}, {pipeline_mode = #tpu.pipeline_mode<synchronous>, transform_indices = @transform_5, window_bounds = array<i64: 1, 512>}, {pipeline_mode = #tpu.pipeline_mode<synchronous>, transform_indices = @transform_6, window_bounds = array<i64: 4, 128, 128>}, {pipeline_mode = #tpu.pipeline_mode<synchronous>, transform_indices = @transform_7, window_bounds = array<i64: 1, 128>}, {transform_indices = @transform_8, window_bounds = array<i64: 8, 128>}]} {
    %c0 = arith.constant 0 : index
    %c0_0 = arith.constant 0 : index
    %c0_1 = arith.constant 0 : index
    %c0_2 = arith.constant 0 : index
    %0 = vector.load %arg1[%c0, %c0_0, %c0_1, %c0_2] : memref<8x2x8x128xf32, #tpu.memory_space<vmem>>, vector<8x2x8x128xf32>
    %1 = vector.shape_cast %0 : vector<8x2x8x128xf32> to vector<128x128xf32>
    %2 = arith.truncf %1 : vector<128x128xf32> to vector<128x128xbf16>
    %c0_3 = arith.constant 0 : index
    %c0_4 = arith.constant 0 : index
    %3 = vector.load %arg2[%c0_3, %c0_4] : memref<128x512xbf16, #tpu.memory_space<vmem>>, vector<128x512xbf16>
    %cst = arith.constant dense<0.000000e+00> : vector<128x512xf32>
    %4 = tpu.matmul %2, %3, %cst {dimension_numbers = #tpu.dot_dimension_numbers<[1], [0], [0], [1], [0, 0, 1, 1], [], []>} : vector<128x128xbf16>, vector<128x512xbf16>, vector<128x512xf32> -> vector<128x512xf32>
    %c0_5 = arith.constant 0 : index
    %c0_6 = arith.constant 0 : index
    %5 = vector.load %arg4[%c0_5, %c0_6] : memref<1x512xf32, #tpu.memory_space<vmem>>, vector<1x512xf32>
    %6 = vector.broadcast %5 : vector<1x512xf32> to vector<128x512xf32>
    %7 = arith.addf %4, %6 : vector<128x512xf32>
    %8 = vector.shape_cast %7 : vector<128x512xf32> to vector<8x16x512xf32>
    %c0_7 = arith.constant 0 : index
    %c0_8 = arith.constant 0 : index
    %c0_9 = arith.constant 0 : index
    %9 = vector.load %arg10[%c0_7, %c0_8, %c0_9] : memref<8x16x512xf32, #tpu.memory_space<vmem>>, vector<8x16x512xf32>
    tpu.vector_store %arg10[%c0_7, %c0_8, %c0_9], %8 {strides = array<i32>} : memref<8x16x512xf32, #tpu.memory_space<vmem>>, vector<8x16x512xf32>,
    %10 = vector.extract_strided_slice %2 {offsets = [112, 0], sizes = [16, 128], strides = [1, 1]} : vector<128x128xbf16> to vector<16x128xbf16>
    %c0_10 = arith.constant 0 : index
    %c0_11 = arith.constant 0 : index
    %11 = vector.load %arg5[%c0_10, %c0_11] : memref<128x512xbf16, #tpu.memory_space<vmem>>, vector<128x512xbf16>
    %cst_12 = arith.constant dense<0.000000e+00> : vector<16x512xf32>
    %12 = tpu.matmul %10, %11, %cst_12 {dimension_numbers = #tpu.dot_dimension_numbers<[1], [0], [0], [1], [0, 0, 1, 1], [], []>} : vector<16x128xbf16>, vector<128x512xbf16>, vector<16x512xf32> -> vector<16x512xf32>
    %c0_13 = arith.constant 0 : index
    %c0_14 = arith.constant 0 : index
    %13 = vector.load %arg6[%c0_13, %c0_14] : memref<1x512xf32, #tpu.memory_space<vmem>>, vector<1x512xf32>
    %14 = vector.broadcast %13 : vector<1x512xf32> to vector<16x512xf32>
    %15 = arith.addf %12, %14 : vector<16x512xf32>
    %cst_15 = arith.constant 0.000000e+00 : f32
    %16 = vector.broadcast %cst_15 : f32 to vector<16x128xf32>
    %17 = vector.extract_strided_slice %15 {offsets = [0, 0], sizes = [16, 256], strides = [1, 1]} : vector<16x512xf32> to vector<16x256xf32>
    %18 = arith.negf %17 : vector<16x256xf32>
    %19 = math.exp %18 : vector<16x256xf32>
    %cst_16 = arith.constant 1.000000e+00 : f32
    %20 = vector.broadcast %cst_16 : f32 to vector<16x256xf32>
    %21 = arith.addf %20, %19 : vector<16x256xf32>
    %22 = arith.divf %20, %21 : vector<16x256xf32>
    %23 = vector.extract_strided_slice %22 {offsets = [0, 0], sizes = [16, 128], strides = [1, 1]} : vector<16x256xf32> to vector<16x128xf32>
    %24 = vector.extract_strided_slice %22 {offsets = [0, 128], sizes = [16, 128], strides = [1, 1]} : vector<16x256xf32> to vector<16x128xf32>
    %25 = vector.extract_strided_slice %15 {offsets = [0, 256], sizes = [16, 128], strides = [1, 1]} : vector<16x512xf32> to vector<16x128xf32>
    %26 = math.tanh %25 : vector<16x128xf32>
    %27 = vector.extract_strided_slice %15 {offsets = [0, 384], sizes = [16, 128], strides = [1, 1]} : vector<16x512xf32> to vector<16x128xf32>
    %28 = arith.negf %27 : vector<16x128xf32>
    %29 = math.exp %28 : vector<16x128xf32>
    %cst_17 = arith.constant 1.000000e+00 : f32
    %30 = vector.broadcast %cst_17 : f32 to vector<16x128xf32>
    %31 = arith.addf %30, %29 : vector<16x128xf32>
    %32 = arith.divf %30, %31 : vector<16x128xf32>
    %33 = arith.mulf %24, %16 : vector<16x128xf32>
    %34 = arith.mulf %23, %26 : vector<16x128xf32>
    %35 = arith.addf %33, %34 : vector<16x128xf32>
    %36 = math.tanh %35 : vector<16x128xf32>
    %37 = arith.mulf %32, %36 : vector<16x128xf32>
    %c0_18 = arith.constant 0 : index
    %c0_19 = arith.constant 0 : index
    %38 = vector.load %arg3[%c0_18, %c0_19] : memref<128x512xbf16, #tpu.memory_space<vmem>>, vector<128x512xbf16>
    %cst_20 = arith.constant 0.000000e+00 : f32
    %39 = vector.broadcast %cst_20 : f32 to vector<16x128xf32>
    %cst_21 = arith.constant 0.000000e+00 : f32
    %40 = vector.broadcast %cst_21 : f32 to vector<16x128xf32>
    %c0_i32 = arith.constant 0 : i32
    %41 = arith.index_cast %c0_i32 : i32 to index
    %c0_22 = arith.constant 0 : index
    %c0_23 = arith.constant 0 : index
    %42 = vector.load %arg10[%41, %c0_22, %c0_23] : memref<8x16x512xf32, #tpu.memory_space<vmem>>, vector<1x16x512xf32>
    %43 = vector.shape_cast %42 : vector<1x16x512xf32> to vector<16x512xf32>
    %44 = arith.truncf %39 : vector<16x128xf32> to vector<16x128xbf16>
    %cst_24 = arith.constant dense<0.000000e+00> : vector<16x512xf32>
    %45 = tpu.matmul %44, %38, %cst_24 {dimension_numbers = #tpu.dot_dimension_numbers<[1], [0], [0], [1], [0, 0, 1, 1], [], []>} : vector<16x128xbf16>, vector<128x512xbf16>, vector<16x512xf32> -> vector<16x512xf32>
    %46 = arith.addf %43, %45 : vector<16x512xf32>
    %47 = vector.extract_strided_slice %46 {offsets = [0, 0], sizes = [16, 256], strides = [1, 1]} : vector<16x512xf32> to vector<16x256xf32>
    %48 = arith.negf %47 : vector<16x256xf32>
    %49 = math.exp %48 : vector<16x256xf32>
    %cst_25 = arith.constant 1.000000e+00 : f32
    %50 = vector.broadcast %cst_25 : f32 to vector<16x256xf32>
    %51 = arith.addf %50, %49 : vector<16x256xf32>
    %52 = arith.divf %50, %51 : vector<16x256xf32>
    %53 = vector.extract_strided_slice %52 {offsets = [0, 0], sizes = [16, 128], strides = [1, 1]} : vector<16x256xf32> to vector<16x128xf32>
    %54 = vector.extract_strided_slice %52 {offsets = [0, 128], sizes = [16, 128], strides = [1, 1]} : vector<16x256xf32> to vector<16x128xf32>
    %55 = vector.extract_strided_slice %46 {offsets = [0, 256], sizes = [16, 128], strides = [1, 1]} : vector<16x512xf32> to vector<16x128xf32>
    %56 = math.tanh %55 : vector<16x128xf32>
    %57 = vector.extract_strided_slice %46 {offsets = [0, 384], sizes = [16, 128], strides = [1, 1]} : vector<16x512xf32> to vector<16x128xf32>
    %58 = arith.negf %57 : vector<16x128xf32>
    %59 = math.exp %58 : vector<16x128xf32>
    %cst_26 = arith.constant 1.000000e+00 : f32
    %60 = vector.broadcast %cst_26 : f32 to vector<16x128xf32>
    %61 = arith.addf %60, %59 : vector<16x128xf32>
    %62 = arith.divf %60, %61 : vector<16x128xf32>
    %63 = arith.mulf %54, %40 : vector<16x128xf32>
    %64 = arith.mulf %53, %56 : vector<16x128xf32>
    %65 = arith.addf %63, %64 : vector<16x128xf32>
    %66 = math.tanh %65 : vector<16x128xf32>
    %67 = arith.mulf %62, %66 : vector<16x128xf32>
    %c1_i32 = arith.constant 1 : i32
    %68 = arith.index_cast %c1_i32 : i32 to index
    %c0_27 = arith.constant 0 : index
    %c0_28 = arith.constant 0 : index
    %69 = vector.load %arg10[%68, %c0_27, %c0_28] : memref<8x16x512xf32, #tpu.memory_space<vmem>>, vector<1x16x512xf32>
    %70 = vector.shape_cast %69 : vector<1x16x512xf32> to vector<16x512xf32>
    %71 = arith.truncf %67 : vector<16x128xf32> to vector<16x128xbf16>
    %cst_29 = arith.constant dense<0.000000e+00> : vector<16x512xf32>
    %72 = tpu.matmul %71, %38, %cst_29 {dimension_numbers = #tpu.dot_dimension_numbers<[1], [0], [0], [1], [0, 0, 1, 1], [], []>} : vector<16x128xbf16>, vector<128x512xbf16>, vector<16x512xf32> -> vector<16x512xf32>
    %73 = arith.addf %70, %72 : vector<16x512xf32>
    %74 = vector.extract_strided_slice %73 {offsets = [0, 0], sizes = [16, 256], strides = [1, 1]} : vector<16x512xf32> to vector<16x256xf32>
    %75 = arith.negf %74 : vector<16x256xf32>
    %76 = math.exp %75 : vector<16x256xf32>
    %cst_30 = arith.constant 1.000000e+00 : f32
    %77 = vector.broadcast %cst_30 : f32 to vector<16x256xf32>
    %78 = arith.addf %77, %76 : vector<16x256xf32>
    %79 = arith.divf %77, %78 : vector<16x256xf32>
    %80 = vector.extract_strided_slice %79 {offsets = [0, 0], sizes = [16, 128], strides = [1, 1]} : vector<16x256xf32> to vector<16x128xf32>
    %81 = vector.extract_strided_slice %79 {offsets = [0, 128], sizes = [16, 128], strides = [1, 1]} : vector<16x256xf32> to vector<16x128xf32>
    %82 = vector.extract_strided_slice %73 {offsets = [0, 256], sizes = [16, 128], strides = [1, 1]} : vector<16x512xf32> to vector<16x128xf32>
    %83 = math.tanh %82 : vector<16x128xf32>
    %84 = vector.extract_strided_slice %73 {offsets = [0, 384], sizes = [16, 128], strides = [1, 1]} : vector<16x512xf32> to vector<16x128xf32>
    %85 = arith.negf %84 : vector<16x128xf32>
    %86 = math.exp %85 : vector<16x128xf32>
    %cst_31 = arith.constant 1.000000e+00 : f32
    %87 = vector.broadcast %cst_31 : f32 to vector<16x128xf32>
    %88 = arith.addf %87, %86 : vector<16x128xf32>
    %89 = arith.divf %87, %88 : vector<16x128xf32>
    %90 = arith.mulf %81, %65 : vector<16x128xf32>
    %91 = arith.mulf %80, %83 : vector<16x128xf32>
    %92 = arith.addf %90, %91 : vector<16x128xf32>
    %93 = math.tanh %92 : vector<16x128xf32>
    %94 = arith.mulf %89, %93 : vector<16x128xf32>
    %c2_i32 = arith.constant 2 : i32
    %95 = arith.index_cast %c2_i32 : i32 to index
    %c0_32 = arith.constant 0 : index
    %c0_33 = arith.constant 0 : index
    %96 = vector.load %arg10[%95, %c0_32, %c0_33] : memref<8x16x512xf32, #tpu.memory_space<vmem>>, vector<1x16x512xf32>
    %97 = vector.shape_cast %96 : vector<1x16x512xf32> to vector<16x512xf32>
    %98 = arith.truncf %94 : vector<16x128xf32> to vector<16x128xbf16>
    %cst_34 = arith.constant dense<0.000000e+00> : vector<16x512xf32>
    %99 = tpu.matmul %98, %38, %cst_34 {dimension_numbers = #tpu.dot_dimension_numbers<[1], [0], [0], [1], [0, 0, 1, 1], [], []>} : vector<16x128xbf16>, vector<128x512xbf16>, vector<16x512xf32> -> vector<16x512xf32>
    %100 = arith.addf %97, %99 : vector<16x512xf32>
    %101 = vector.extract_strided_slice %100 {offsets = [0, 0], sizes = [16, 256], strides = [1, 1]} : vector<16x512xf32> to vector<16x256xf32>
    %102 = arith.negf %101 : vector<16x256xf32>
    %103 = math.exp %102 : vector<16x256xf32>
    %cst_35 = arith.constant 1.000000e+00 : f32
    %104 = vector.broadcast %cst_35 : f32 to vector<16x256xf32>
    %105 = arith.addf %104, %103 : vector<16x256xf32>
    %106 = arith.divf %104, %105 : vector<16x256xf32>
    %107 = vector.extract_strided_slice %106 {offsets = [0, 0], sizes = [16, 128], strides = [1, 1]} : vector<16x256xf32> to vector<16x128xf32>
    %108 = vector.extract_strided_slice %106 {offsets = [0, 128], sizes = [16, 128], strides = [1, 1]} : vector<16x256xf32> to vector<16x128xf32>
    %109 = vector.extract_strided_slice %100 {offsets = [0, 256], sizes = [16, 128], strides = [1, 1]} : vector<16x512xf32> to vector<16x128xf32>
    %110 = math.tanh %109 : vector<16x128xf32>
    %111 = vector.extract_strided_slice %100 {offsets = [0, 384], sizes = [16, 128], strides = [1, 1]} : vector<16x512xf32> to vector<16x128xf32>
    %112 = arith.negf %111 : vector<16x128xf32>
    %113 = math.exp %112 : vector<16x128xf32>
    %cst_36 = arith.constant 1.000000e+00 : f32
    %114 = vector.broadcast %cst_36 : f32 to vector<16x128xf32>
    %115 = arith.addf %114, %113 : vector<16x128xf32>
    %116 = arith.divf %114, %115 : vector<16x128xf32>
    %117 = arith.mulf %108, %92 : vector<16x128xf32>
    %118 = arith.mulf %107, %110 : vector<16x128xf32>
    %119 = arith.addf %117, %118 : vector<16x128xf32>
    %120 = math.tanh %119 : vector<16x128xf32>
    %121 = arith.mulf %116, %120 : vector<16x128xf32>
    %c3_i32 = arith.constant 3 : i32
    %122 = arith.index_cast %c3_i32 : i32 to index
    %c0_37 = arith.constant 0 : index
    %c0_38 = arith.constant 0 : index
    %123 = vector.load %arg10[%122, %c0_37, %c0_38] : memref<8x16x512xf32, #tpu.memory_space<vmem>>, vector<1x16x512xf32>
    %124 = vector.shape_cast %123 : vector<1x16x512xf32> to vector<16x512xf32>
    %125 = arith.truncf %121 : vector<16x128xf32> to vector<16x128xbf16>
    %cst_39 = arith.constant dense<0.000000e+00> : vector<16x512xf32>
    %126 = tpu.matmul %125, %38, %cst_39 {dimension_numbers = #tpu.dot_dimension_numbers<[1], [0], [0], [1], [0, 0, 1, 1], [], []>} : vector<16x128xbf16>, vector<128x512xbf16>, vector<16x512xf32> -> vector<16x512xf32>
    %127 = arith.addf %124, %126 : vector<16x512xf32>
    %128 = vector.extract_strided_slice %127 {offsets = [0, 0], sizes = [16, 256], strides = [1, 1]} : vector<16x512xf32> to vector<16x256xf32>
    %129 = arith.negf %128 : vector<16x256xf32>
    %130 = math.exp %129 : vector<16x256xf32>
    %cst_40 = arith.constant 1.000000e+00 : f32
    %131 = vector.broadcast %cst_40 : f32 to vector<16x256xf32>
    %132 = arith.addf %131, %130 : vector<16x256xf32>
    %133 = arith.divf %131, %132 : vector<16x256xf32>
    %134 = vector.extract_strided_slice %133 {offsets = [0, 0], sizes = [16, 128], strides = [1, 1]} : vector<16x256xf32> to vector<16x128xf32>
    %135 = vector.extract_strided_slice %133 {offsets = [0, 128], sizes = [16, 128], strides = [1, 1]} : vector<16x256xf32> to vector<16x128xf32>
    %136 = vector.extract_strided_slice %127 {offsets = [0, 256], sizes = [16, 128], strides = [1, 1]} : vector<16x512xf32> to vector<16x128xf32>
    %137 = math.tanh %136 : vector<16x128xf32>
    %138 = vector.extract_strided_slice %127 {offsets = [0, 384], sizes = [16, 128], strides = [1, 1]} : vector<16x512xf32> to vector<16x128xf32>
    %139 = arith.negf %138 : vector<16x128xf32>
    %140 = math.exp %139 : vector<16x128xf32>
    %cst_41 = arith.constant 1.000000e+00 : f32
    %141 = vector.broadcast %cst_41 : f32 to vector<16x128xf32>
    %142 = arith.addf %141, %140 : vector<16x128xf32>
    %143 = arith.divf %141, %142 : vector<16x128xf32>
    %144 = arith.mulf %135, %119 : vector<16x128xf32>
    %145 = arith.mulf %134, %137 : vector<16x128xf32>
    %146 = arith.addf %144, %145 : vector<16x128xf32>
    %147 = math.tanh %146 : vector<16x128xf32>
    %148 = arith.mulf %143, %147 : vector<16x128xf32>
    %c4_i32 = arith.constant 4 : i32
    %149 = arith.index_cast %c4_i32 : i32 to index
    %c0_42 = arith.constant 0 : index
    %c0_43 = arith.constant 0 : index
    %150 = vector.load %arg10[%149, %c0_42, %c0_43] : memref<8x16x512xf32, #tpu.memory_space<vmem>>, vector<1x16x512xf32>
    %151 = vector.shape_cast %150 : vector<1x16x512xf32> to vector<16x512xf32>
    %152 = arith.truncf %148 : vector<16x128xf32> to vector<16x128xbf16>
    %cst_44 = arith.constant dense<0.000000e+00> : vector<16x512xf32>
    %153 = tpu.matmul %152, %38, %cst_44 {dimension_numbers = #tpu.dot_dimension_numbers<[1], [0], [0], [1], [0, 0, 1, 1], [], []>} : vector<16x128xbf16>, vector<128x512xbf16>, vector<16x512xf32> -> vector<16x512xf32>
    %154 = arith.addf %151, %153 : vector<16x512xf32>
    %155 = vector.extract_strided_slice %154 {offsets = [0, 0], sizes = [16, 256], strides = [1, 1]} : vector<16x512xf32> to vector<16x256xf32>
    %156 = arith.negf %155 : vector<16x256xf32>
    %157 = math.exp %156 : vector<16x256xf32>
    %cst_45 = arith.constant 1.000000e+00 : f32
    %158 = vector.broadcast %cst_45 : f32 to vector<16x256xf32>
    %159 = arith.addf %158, %157 : vector<16x256xf32>
    %160 = arith.divf %158, %159 : vector<16x256xf32>
    %161 = vector.extract_strided_slice %160 {offsets = [0, 0], sizes = [16, 128], strides = [1, 1]} : vector<16x256xf32> to vector<16x128xf32>
    %162 = vector.extract_strided_slice %160 {offsets = [0, 128], sizes = [16, 128], strides = [1, 1]} : vector<16x256xf32> to vector<16x128xf32>
    %163 = vector.extract_strided_slice %154 {offsets = [0, 256], sizes = [16, 128], strides = [1, 1]} : vector<16x512xf32> to vector<16x128xf32>
    %164 = math.tanh %163 : vector<16x128xf32>
    %165 = vector.extract_strided_slice %154 {offsets = [0, 384], sizes = [16, 128], strides = [1, 1]} : vector<16x512xf32> to vector<16x128xf32>
    %166 = arith.negf %165 : vector<16x128xf32>
    %167 = math.exp %166 : vector<16x128xf32>
    %cst_46 = arith.constant 1.000000e+00 : f32
    %168 = vector.broadcast %cst_46 : f32 to vector<16x128xf32>
    %169 = arith.addf %168, %167 : vector<16x128xf32>
    %170 = arith.divf %168, %169 : vector<16x128xf32>
    %171 = arith.mulf %162, %146 : vector<16x128xf32>
    %172 = arith.mulf %161, %164 : vector<16x128xf32>
    %173 = arith.addf %171, %172 : vector<16x128xf32>
    %174 = math.tanh %173 : vector<16x128xf32>
    %175 = arith.mulf %170, %174 : vector<16x128xf32>
    %c5_i32 = arith.constant 5 : i32
    %176 = arith.index_cast %c5_i32 : i32 to index
    %c0_47 = arith.constant 0 : index
    %c0_48 = arith.constant 0 : index
    %177 = vector.load %arg10[%176, %c0_47, %c0_48] : memref<8x16x512xf32, #tpu.memory_space<vmem>>, vector<1x16x512xf32>
    %178 = vector.shape_cast %177 : vector<1x16x512xf32> to vector<16x512xf32>
    %179 = arith.truncf %175 : vector<16x128xf32> to vector<16x128xbf16>
    %cst_49 = arith.constant dense<0.000000e+00> : vector<16x512xf32>
    %180 = tpu.matmul %179, %38, %cst_49 {dimension_numbers = #tpu.dot_dimension_numbers<[1], [0], [0], [1], [0, 0, 1, 1], [], []>} : vector<16x128xbf16>, vector<128x512xbf16>, vector<16x512xf32> -> vector<16x512xf32>
    %181 = arith.addf %178, %180 : vector<16x512xf32>
    %182 = vector.extract_strided_slice %181 {offsets = [0, 0], sizes = [16, 256], strides = [1, 1]} : vector<16x512xf32> to vector<16x256xf32>
    %183 = arith.negf %182 : vector<16x256xf32>
    %184 = math.exp %183 : vector<16x256xf32>
    %cst_50 = arith.constant 1.000000e+00 : f32
    %185 = vector.broadcast %cst_50 : f32 to vector<16x256xf32>
    %186 = arith.addf %185, %184 : vector<16x256xf32>
    %187 = arith.divf %185, %186 : vector<16x256xf32>
    %188 = vector.extract_strided_slice %187 {offsets = [0, 0], sizes = [16, 128], strides = [1, 1]} : vector<16x256xf32> to vector<16x128xf32>
    %189 = vector.extract_strided_slice %187 {offsets = [0, 128], sizes = [16, 128], strides = [1, 1]} : vector<16x256xf32> to vector<16x128xf32>
    %190 = vector.extract_strided_slice %181 {offsets = [0, 256], sizes = [16, 128], strides = [1, 1]} : vector<16x512xf32> to vector<16x128xf32>
    %191 = math.tanh %190 : vector<16x128xf32>
    %192 = vector.extract_strided_slice %181 {offsets = [0, 384], sizes = [16, 128], strides = [1, 1]} : vector<16x512xf32> to vector<16x128xf32>
    %193 = arith.negf %192 : vector<16x128xf32>
    %194 = math.exp %193 : vector<16x128xf32>
    %cst_51 = arith.constant 1.000000e+00 : f32
    %195 = vector.broadcast %cst_51 : f32 to vector<16x128xf32>
    %196 = arith.addf %195, %194 : vector<16x128xf32>
    %197 = arith.divf %195, %196 : vector<16x128xf32>
    %198 = arith.mulf %189, %173 : vector<16x128xf32>
    %199 = arith.mulf %188, %191 : vector<16x128xf32>
    %200 = arith.addf %198, %199 : vector<16x128xf32>
    %201 = math.tanh %200 : vector<16x128xf32>
    %202 = arith.mulf %197, %201 : vector<16x128xf32>
    %c6_i32 = arith.constant 6 : i32
    %203 = arith.index_cast %c6_i32 : i32 to index
    %c0_52 = arith.constant 0 : index
    %c0_53 = arith.constant 0 : index
    %204 = vector.load %arg10[%203, %c0_52, %c0_53] : memref<8x16x512xf32, #tpu.memory_space<vmem>>, vector<1x16x512xf32>
    %205 = vector.shape_cast %204 : vector<1x16x512xf32> to vector<16x512xf32>
    %206 = arith.truncf %202 : vector<16x128xf32> to vector<16x128xbf16>
    %cst_54 = arith.constant dense<0.000000e+00> : vector<16x512xf32>
    %207 = tpu.matmul %206, %38, %cst_54 {dimension_numbers = #tpu.dot_dimension_numbers<[1], [0], [0], [1], [0, 0, 1, 1], [], []>} : vector<16x128xbf16>, vector<128x512xbf16>, vector<16x512xf32> -> vector<16x512xf32>
    %208 = arith.addf %205, %207 : vector<16x512xf32>
    %209 = vector.extract_strided_slice %208 {offsets = [0, 0], sizes = [16, 256], strides = [1, 1]} : vector<16x512xf32> to vector<16x256xf32>
    %210 = arith.negf %209 : vector<16x256xf32>
    %211 = math.exp %210 : vector<16x256xf32>
    %cst_55 = arith.constant 1.000000e+00 : f32
    %212 = vector.broadcast %cst_55 : f32 to vector<16x256xf32>
    %213 = arith.addf %212, %211 : vector<16x256xf32>
    %214 = arith.divf %212, %213 : vector<16x256xf32>
    %215 = vector.extract_strided_slice %214 {offsets = [0, 0], sizes = [16, 128], strides = [1, 1]} : vector<16x256xf32> to vector<16x128xf32>
    %216 = vector.extract_strided_slice %214 {offsets = [0, 128], sizes = [16, 128], strides = [1, 1]} : vector<16x256xf32> to vector<16x128xf32>
    %217 = vector.extract_strided_slice %208 {offsets = [0, 256], sizes = [16, 128], strides = [1, 1]} : vector<16x512xf32> to vector<16x128xf32>
    %218 = math.tanh %217 : vector<16x128xf32>
    %219 = vector.extract_strided_slice %208 {offsets = [0, 384], sizes = [16, 128], strides = [1, 1]} : vector<16x512xf32> to vector<16x128xf32>
    %220 = arith.negf %219 : vector<16x128xf32>
    %221 = math.exp %220 : vector<16x128xf32>
    %cst_56 = arith.constant 1.000000e+00 : f32
    %222 = vector.broadcast %cst_56 : f32 to vector<16x128xf32>
    %223 = arith.addf %222, %221 : vector<16x128xf32>
    %224 = arith.divf %222, %223 : vector<16x128xf32>
    %225 = arith.mulf %216, %200 : vector<16x128xf32>
    %226 = arith.mulf %215, %218 : vector<16x128xf32>
    %227 = arith.addf %225, %226 : vector<16x128xf32>
    %228 = math.tanh %227 : vector<16x128xf32>
    %229 = arith.mulf %224, %228 : vector<16x128xf32>
    %c7_i32 = arith.constant 7 : i32
    %230 = arith.index_cast %c7_i32 : i32 to index
    %c0_57 = arith.constant 0 : index
    %c0_58 = arith.constant 0 : index
    %231 = vector.load %arg10[%230, %c0_57, %c0_58] : memref<8x16x512xf32, #tpu.memory_space<vmem>>, vector<1x16x512xf32>
    %232 = vector.shape_cast %231 : vector<1x16x512xf32> to vector<16x512xf32>
    %233 = arith.truncf %229 : vector<16x128xf32> to vector<16x128xbf16>
    %cst_59 = arith.constant dense<0.000000e+00> : vector<16x512xf32>
    %234 = tpu.matmul %233, %38, %cst_59 {dimension_numbers = #tpu.dot_dimension_numbers<[1], [0], [0], [1], [0, 0, 1, 1], [], []>} : vector<16x128xbf16>, vector<128x512xbf16>, vector<16x512xf32> -> vector<16x512xf32>
    %235 = arith.addf %232, %234 : vector<16x512xf32>
    %236 = vector.extract_strided_slice %235 {offsets = [0, 0], sizes = [16, 256], strides = [1, 1]} : vector<16x512xf32> to vector<16x256xf32>
    %237 = arith.negf %236 : vector<16x256xf32>
    %238 = math.exp %237 : vector<16x256xf32>
    %cst_60 = arith.constant 1.000000e+00 : f32
    %239 = vector.broadcast %cst_60 : f32 to vector<16x256xf32>
    %240 = arith.addf %239, %238 : vector<16x256xf32>
    %241 = arith.divf %239, %240 : vector<16x256xf32>
    %242 = vector.extract_strided_slice %241 {offsets = [0, 0], sizes = [16, 128], strides = [1, 1]} : vector<16x256xf32> to vector<16x128xf32>
    %243 = vector.extract_strided_slice %241 {offsets = [0, 128], sizes = [16, 128], strides = [1, 1]} : vector<16x256xf32> to vector<16x128xf32>
    %244 = vector.extract_strided_slice %235 {offsets = [0, 256], sizes = [16, 128], strides = [1, 1]} : vector<16x512xf32> to vector<16x128xf32>
    %245 = math.tanh %244 : vector<16x128xf32>
    %246 = vector.extract_strided_slice %235 {offsets = [0, 384], sizes = [16, 128], strides = [1, 1]} : vector<16x512xf32> to vector<16x128xf32>
    %247 = arith.negf %246 : vector<16x128xf32>
    %248 = math.exp %247 : vector<16x128xf32>
    %cst_61 = arith.constant 1.000000e+00 : f32
    %249 = vector.broadcast %cst_61 : f32 to vector<16x128xf32>
    %250 = arith.addf %249, %248 : vector<16x128xf32>
    %251 = arith.divf %249, %250 : vector<16x128xf32>
    %252 = arith.mulf %243, %227 : vector<16x128xf32>
    %253 = arith.mulf %242, %245 : vector<16x128xf32>
    %254 = arith.addf %252, %253 : vector<16x128xf32>
    %255 = math.tanh %254 : vector<16x128xf32>
    %256 = arith.mulf %251, %255 : vector<16x128xf32>
    %c8_i32 = arith.constant 8 : i32
    %257 = vector.extract_strided_slice %256 {offsets = [0, 0], sizes = [8, 128], strides = [1, 1]} : vector<16x128xf32> to vector<8x128xf32>
    %258 = arith.truncf %257 : vector<8x128xf32> to vector<8x128xbf16>
    %c0_62 = arith.constant 0 : index
    %c0_63 = arith.constant 0 : index
    %c0_64 = arith.constant 0 : index
    %259 = vector.load %arg7[%c0_62, %c0_63, %c0_64] : memref<4x128x128xbf16, #tpu.memory_space<vmem>>, vector<1x128x128xbf16>
    %260 = vector.shape_cast %259 : vector<1x128x128xbf16> to vector<128x128xbf16>
    %cst_65 = arith.constant dense<0.000000e+00> : vector<8x128xf32>
    %261 = tpu.matmul %258, %260, %cst_65 {dimension_numbers = #tpu.dot_dimension_numbers<[1], [0], [0], [1], [0, 0, 1, 1], [], []>} : vector<8x128xbf16>, vector<128x128xbf16>, vector<8x128xf32> -> vector<8x128xf32>
    %262 = vector.extract_strided_slice %37 {offsets = [0, 0], sizes = [8, 128], strides = [1, 1]} : vector<16x128xf32> to vector<8x128xf32>
    %263 = arith.truncf %262 : vector<8x128xf32> to vector<8x128xbf16>
    %c1 = arith.constant 1 : index
    %c0_66 = arith.constant 0 : index
    %c0_67 = arith.constant 0 : index
    %264 = vector.load %arg7[%c1, %c0_66, %c0_67] : memref<4x128x128xbf16, #tpu.memory_space<vmem>>, vector<1x128x128xbf16>
    %265 = vector.shape_cast %264 : vector<1x128x128xbf16> to vector<128x128xbf16>
    %cst_68 = arith.constant dense<0.000000e+00> : vector<8x128xf32>
    %266 = tpu.matmul %263, %265, %cst_68 {dimension_numbers = #tpu.dot_dimension_numbers<[1], [0], [0], [1], [0, 0, 1, 1], [], []>} : vector<8x128xbf16>, vector<128x128xbf16>, vector<8x128xf32> -> vector<8x128xf32>
    %267 = arith.addf %261, %266 : vector<8x128xf32>
    %268 = vector.extract_strided_slice %256 {offsets = [8, 0], sizes = [8, 128], strides = [1, 1]} : vector<16x128xf32> to vector<8x128xf32>
    %269 = arith.truncf %268 : vector<8x128xf32> to vector<8x128xbf16>
    %c2 = arith.constant 2 : index
    %c0_69 = arith.constant 0 : index
    %c0_70 = arith.constant 0 : index
    %270 = vector.load %arg7[%c2, %c0_69, %c0_70] : memref<4x128x128xbf16, #tpu.memory_space<vmem>>, vector<1x128x128xbf16>
    %271 = vector.shape_cast %270 : vector<1x128x128xbf16> to vector<128x128xbf16>
    %cst_71 = arith.constant dense<0.000000e+00> : vector<8x128xf32>
    %272 = tpu.matmul %269, %271, %cst_71 {dimension_numbers = #tpu.dot_dimension_numbers<[1], [0], [0], [1], [0, 0, 1, 1], [], []>} : vector<8x128xbf16>, vector<128x128xbf16>, vector<8x128xf32> -> vector<8x128xf32>
    %273 = arith.addf %267, %272 : vector<8x128xf32>
    %274 = vector.extract_strided_slice %37 {offsets = [8, 0], sizes = [8, 128], strides = [1, 1]} : vector<16x128xf32> to vector<8x128xf32>
    %275 = arith.truncf %274 : vector<8x128xf32> to vector<8x128xbf16>
    %c3 = arith.constant 3 : index
    %c0_72 = arith.constant 0 : index
    %c0_73 = arith.constant 0 : index
    %276 = vector.load %arg7[%c3, %c0_72, %c0_73] : memref<4x128x128xbf16, #tpu.memory_space<vmem>>, vector<1x128x128xbf16>
    %277 = vector.shape_cast %276 : vector<1x128x128xbf16> to vector<128x128xbf16>
    %cst_74 = arith.constant dense<0.000000e+00> : vector<8x128xf32>
    %278 = tpu.matmul %275, %277, %cst_74 {dimension_numbers = #tpu.dot_dimension_numbers<[1], [0], [0], [1], [0, 0, 1, 1], [], []>} : vector<8x128xbf16>, vector<128x128xbf16>, vector<8x128xf32> -> vector<8x128xf32>
    %279 = arith.addf %273, %278 : vector<8x128xf32>
    %c0_75 = arith.constant 0 : index
    %c0_76 = arith.constant 0 : index
    %280 = vector.load %arg8[%c0_75, %c0_76] : memref<1x128xf32, #tpu.memory_space<vmem>>, vector<1x128xf32>
    %281 = vector.broadcast %280 : vector<1x128xf32> to vector<8x128xf32>
    %282 = arith.addf %279, %281 : vector<8x128xf32>
    %c0_77 = arith.constant 0 : index
    %c0_78 = arith.constant 0 : index
    %283 = vector.load %arg9[%c0_77, %c0_78] : memref<8x128xf32, #tpu.memory_space<vmem>>, vector<8x128xf32>
    tpu.vector_store %arg9[%c0_77, %c0_78], %282 {strides = array<i32>} : memref<8x128xf32, #tpu.memory_space<vmem>>, vector<8x128xf32>,
    return
  }
  func.func @transform_0(%arg0: i32) -> (i32, i32, i32, i32) {
    %c0_i32 = arith.constant 0 : i32
    %c0_i32_0 = arith.constant 0 : i32
    %c0_i32_1 = arith.constant 0 : i32
    %c0_i32_2 = arith.constant 0 : i32
    return %c0_i32, %c0_i32_0, %arg0, %c0_i32_1 : i32, i32, i32, i32
  }
  func.func @transform_1(%arg0: i32) -> (i32, i32) {
    %c0_i32 = arith.constant 0 : i32
    %c0_i32_0 = arith.constant 0 : i32
    %c0_i32_1 = arith.constant 0 : i32
    return %c0_i32, %c0_i32_0 : i32, i32
  }
  func.func @transform_2(%arg0: i32) -> (i32, i32) {
    %c0_i32 = arith.constant 0 : i32
    %c0_i32_0 = arith.constant 0 : i32
    %c0_i32_1 = arith.constant 0 : i32
    return %c0_i32, %c0_i32_0 : i32, i32
  }
  func.func @transform_3(%arg0: i32) -> (i32, i32) {
    %c0_i32 = arith.constant 0 : i32
    %c0_i32_0 = arith.constant 0 : i32
    %c0_i32_1 = arith.constant 0 : i32
    return %c0_i32, %c0_i32_0 : i32, i32
  }
  func.func @transform_4(%arg0: i32) -> (i32, i32) {
    %c0_i32 = arith.constant 0 : i32
    %c0_i32_0 = arith.constant 0 : i32
    %c0_i32_1 = arith.constant 0 : i32
    return %c0_i32, %c0_i32_0 : i32, i32
  }
  func.func @transform_5(%arg0: i32) -> (i32, i32) {
    %c0_i32 = arith.constant 0 : i32
    %c0_i32_0 = arith.constant 0 : i32
    %c0_i32_1 = arith.constant 0 : i32
    return %c0_i32, %c0_i32_0 : i32, i32
  }
  func.func @transform_6(%arg0: i32) -> (i32, i32, i32) {
    %c0_i32 = arith.constant 0 : i32
    %c0_i32_0 = arith.constant 0 : i32
    %c0_i32_1 = arith.constant 0 : i32
    %c0_i32_2 = arith.constant 0 : i32
    return %c0_i32, %c0_i32_0, %c0_i32_1 : i32, i32, i32
  }
  func.func @transform_7(%arg0: i32) -> (i32, i32) {
    %c0_i32 = arith.constant 0 : i32
    %c0_i32_0 = arith.constant 0 : i32
    %c0_i32_1 = arith.constant 0 : i32
    return %c0_i32, %c0_i32_0 : i32, i32
  }
  func.func @transform_8(%arg0: i32) -> (i32, i32) {
    %c0_i32 = arith.constant 0 : i32
    %c0_i32_0 = arith.constant 0 : i32
    return %arg0, %c0_i32 : i32, i32
  }
}

</mosaic_0001>

<llo_original>
// kernel: siamese_bilstm_forward.1
$region0: #{siamese_bilstm_forward.1}
  #allocation0 [shape = 'u32[]', space=smem, size = 0x4, offset = 0x4, fixed_abs, tag = 'smem constant byte address 0x4 - core index']
  #allocation1 [shape = 'u32[144,128]{1,0:T(1,128)}', space=vmem, size = 0x12000, scoped, tag = 'internal scratch']
  #allocation2 [shape = 'f32[8,16,512]{2,1,0:T(8,128)}', space=vmem, size = 0x40000, scoped, tag = 'scratch operand']
  %s0 = inlined_call_operand.vmem [shape: f32[8,2,8,128], index: 0, kind: input, shape index: {}]
  %s1 = inlined_call_operand.vmem [shape: bf16[128,512], index: 1, kind: input, shape index: {}]
  %s2 = inlined_call_operand.vmem [shape: bf16[128,512], index: 2, kind: input, shape index: {}]
  %s3 = inlined_call_operand.vmem [shape: f32[1,512], index: 3, kind: input, shape index: {}]
  %s4 = inlined_call_operand.vmem [shape: bf16[128,512], index: 4, kind: input, shape index: {}]
  %s5 = inlined_call_operand.vmem [shape: f32[1,512], index: 5, kind: input, shape index: {}]
  %s6 = inlined_call_operand.vmem [shape: bf16[4,128,128], index: 6, kind: input, shape index: {}]
  %s7 = inlined_call_operand.vmem [shape: f32[1,128], index: 7, kind: input, shape index: {}]
  %s8 = inlined_call_operand.vmem [shape: f32[8,128], index: 8, kind: output, shape index: {}]
  %s9 = sld [smem:[#allocation0]]
  $region42: #{siamese_bilstm_forward.1} parent=0
    _
  %s11 = ssub.s32 1, %s9
  %s12 = scalar_select 0, %s11, %s9
  // Predicated region
  $region2: #{siamese_bilstm_forward.1} parent=0 // pred_check
    _
  $region3: #{siamese_bilstm_forward.1} parent=0 // pred_check_branch
    %14 = sbr.rel (0) target = $region5
  $region4: #{siamese_bilstm_forward.1} parent=0 // pred_region
    _
  $region5: #{siamese_bilstm_forward.1} parent=0 // pred_fallthru
    _
  // Predicated region
  $region6: #{siamese_bilstm_forward.1} parent=0 // pred_check
    _
  $region7: #{siamese_bilstm_forward.1} parent=0 // pred_check_branch
    %16 = sbr.rel (0) target = $region9
  $region8: #{siamese_bilstm_forward.1} parent=0 // pred_region
    _
  $region9: #{siamese_bilstm_forward.1} parent=0 // pred_fallthru
    _
  // Predicated region
  $region10: #{siamese_bilstm_forward.1} parent=0 // pred_check
    _
  $region11: #{siamese_bilstm_forward.1} parent=0 // pred_check_branch
    %18 = sbr.rel (0) target = $region13
  $region12: #{siamese_bilstm_forward.1} parent=0 // pred_region
    _
  $region13: #{siamese_bilstm_forward.1} parent=0 // pred_fallthru
    _
  // Predicated region
  $region14: #{siamese_bilstm_forward.1} parent=0 // pred_check
    _
  $region15: #{siamese_bilstm_forward.1} parent=0 // pred_check_branch
    %20 = sbr.rel (0) target = $region17
  $region16: #{siamese_bilstm_forward.1} parent=0 // pred_region
    _
  $region17: #{siamese_bilstm_forward.1} parent=0 // pred_fallthru
    _
  // Predicated region
  $region18: #{siamese_bilstm_forward.1} parent=0 // pred_check
    _
  $region19: #{siamese_bilstm_forward.1} parent=0 // pred_check_branch
    %22 = sbr.rel (0) target = $region21
  $region20: #{siamese_bilstm_forward.1} parent=0 // pred_region
    _
  $region21: #{siamese_bilstm_forward.1} parent=0 // pred_fallthru
    _
  // Predicated region
  $region22: #{siamese_bilstm_forward.1} parent=0 // pred_check
    _
  $region23: #{siamese_bilstm_forward.1} parent=0 // pred_check_branch
    %24 = sbr.rel (0) target = $region25
  $region24: #{siamese_bilstm_forward.1} parent=0 // pred_region
    _
  $region25: #{siamese_bilstm_forward.1} parent=0 // pred_fallthru
    _
  // Predicated region
  $region26: #{siamese_bilstm_forward.1} parent=0 // pred_check
    _
  $region27: #{siamese_bilstm_forward.1} parent=0 // pred_check_branch
    %26 = sbr.rel (0) target = $region29
  $region28: #{siamese_bilstm_forward.1} parent=0 // pred_region
    _
  $region29: #{siamese_bilstm_forward.1} parent=0 // pred_fallthru
    _
  // Predicated region
  $region30: #{siamese_bilstm_forward.1} parent=0 // pred_check
    _
  $region31: #{siamese_bilstm_forward.1} parent=0 // pred_check_branch
    %28 = sbr.rel (0) target = $region33
  $region32: #{siamese_bilstm_forward.1} parent=0 // pred_region
    _
  $region33: #{siamese_bilstm_forward.1} parent=0 // pred_fallthru
    _
  %v30 = vld [vmem:[%s0] sm:$0xff]
  %v31 = vld [vmem:[%s0 + $0x8] sm:$0xff]
  %v32 = vld [vmem:[%s0 + $0x10] sm:$0xff]
  %v33 = vld [vmem:[%s0 + $0x18] sm:$0xff]
  %v34 = vld [vmem:[%s0 + $0x20] sm:$0xff]
  %v35 = vld [vmem:[%s0 + $0x28] sm:$0xff]
  %v36 = vld [vmem:[%s0 + $0x30] sm:$0xff]
  %v37 = vld [vmem:[%s0 + $0x38] sm:$0xff]
  %v38 = vld [vmem:[%s0 + $0x40] sm:$0xff]
  %v39 = vld [vmem:[%s0 + $0x48] sm:$0xff]
  %v40 = vld [vmem:[%s0 + $0x50] sm:$0xff]
  %v41 = vld [vmem:[%s0 + $0x58] sm:$0xff]
  %v42 = vld [vmem:[%s0 + $0x60] sm:$0xff]
  %v43 = vld [vmem:[%s0 + $0x68] sm:$0xff]
  %v44 = vld [vmem:[%s0 + $0x70] sm:$0xff]
  %v45 = vld [vmem:[%s0 + $0x78] sm:$0xff]
  %v46 = vpack.c.bf16 %v31, %v30
  %v47 = vpack.c.bf16 %v33, %v32
  %v48 = vpack.c.bf16 %v35, %v34
  %v49 = vpack.c.bf16 %v37, %v36
  %v50 = vpack.c.bf16 %v39, %v38
  %v51 = vpack.c.bf16 %v41, %v40
  %v52 = vpack.c.bf16 %v43, %v42
  %v53 = vpack.c.bf16 %v45, %v44
  %v54 = vld [vmem:[%s1] sm:$0xff]
  %v55 = vld [vmem:[%s1 + $0x8] sm:$0xff]
  %v56 = vld [vmem:[%s1 + $0x10] sm:$0xff]
  %v57 = vld [vmem:[%s1 + $0x18] sm:$0xff]
  %v58 = vld [vmem:[%s1 + $0x20] sm:$0xff]
  %v59 = vld [vmem:[%s1 + $0x28] sm:$0xff]
  %v60 = vld [vmem:[%s1 + $0x30] sm:$0xff]
  %v61 = vld [vmem:[%s1 + $0x38] sm:$0xff]
  %v62 = vld [vmem:[%s1 + $0x40] sm:$0xff]
  %v63 = vld [vmem:[%s1 + $0x48] sm:$0xff]
  %v64 = vld [vmem:[%s1 + $0x50] sm:$0xff]
  %v65 = vld [vmem:[%s1 + $0x58] sm:$0xff]
  %v66 = vld [vmem:[%s1 + $0x60] sm:$0xff]
  %v67 = vld [vmem:[%s1 + $0x68] sm:$0xff]
  %v68 = vld [vmem:[%s1 + $0x70] sm:$0xff]
  %v69 = vld [vmem:[%s1 + $0x78] sm:$0xff]
  %v70 = vld [vmem:[%s1 + $0x80] sm:$0xff]
  %v71 = vld [vmem:[%s1 + $0x88] sm:$0xff]
  %v72 = vld [vmem:[%s1 + $0x90] sm:$0xff]
  %v73 = vld [vmem:[%s1 + $0x98] sm:$0xff]
  %v74 = vld [vmem:[%s1 + $0xa0] sm:$0xff]
  %v75 = vld [vmem:[%s1 + $0xa8] sm:$0xff]
  %v76 = vld [vmem:[%s1 + $0xb0] sm:$0xff]
  %v77 = vld [vmem:[%s1 + $0xb8] sm:$0xff]
  %v78 = vld [vmem:[%s1 + $0xc0] sm:$0xff]
  %v79 = vld [vmem:[%s1 + $0xc8] sm:$0xff]
  %v80 = vld [vmem:[%s1 + $0xd0] sm:$0xff]
  %v81 = vld [vmem:[%s1 + $0xd8] sm:$0xff]
  %v82 = vld [vmem:[%s1 + $0xe0] sm:$0xff]
  %v83 = vld [vmem:[%s1 + $0xe8] sm:$0xff]
  %v84 = vld [vmem:[%s1 + $0xf0] sm:$0xff]
  %v85 = vld [vmem:[%s1 + $0xf8] sm:$0xff]
  %v86 = vld [vmem:[%s3] sm:$0xf]
  %v88 = vlaneseq
  %v89 = vshrl.u32 %v88, 7
  %v90 = vsub.s32 0, %v89
  %v91 = vrot.slane %v86, %v90
  %v92 = vlaneseq
  %v93 = vshrl.u32 %v92, 7
  %v94 = vsub.s32 1, %v93
  %v95 = vrot.slane %v86, %v94
  %v96 = vlaneseq
  %v97 = vshrl.u32 %v96, 7
  %v98 = vsub.s32 2, %v97
  %v99 = vrot.slane %v86, %v98
  %v100 = vlaneseq
  %v101 = vshrl.u32 %v100, 7
  %v102 = vsub.s32 3, %v101
  %v103 = vrot.slane %v86, %v102
  %v140 = vunpack.c.l.b16 %v54
  %v141 = vunpack.c.h.b16 %v54
  %v142 = vunpack.c.l.b16 %v55
  %v143 = vunpack.c.h.b16 %v55
  %v144 = vunpack.c.l.b16 %v56
  %v145 = vunpack.c.h.b16 %v56
  %v146 = vunpack.c.l.b16 %v57
  %v147 = vunpack.c.h.b16 %v57
  %v148 = vunpack.c.l.b16 %v58
  %v149 = vunpack.c.h.b16 %v58
  %v150 = vunpack.c.l.b16 %v59
  %v151 = vunpack.c.h.b16 %v59
  %v152 = vunpack.c.l.b16 %v60
  %v153 = vunpack.c.h.b16 %v60
  %v154 = vunpack.c.l.b16 %v61
  %v155 = vunpack.c.h.b16 %v61
  %v156 = vunpack.c.l.b16 %v62
  %v157 = vunpack.c.h.b16 %v62
  %v158 = vunpack.c.l.b16 %v63
  %v159 = vunpack.c.h.b16 %v63
  %v160 = vunpack.c.l.b16 %v64
  %v161 = vunpack.c.h.b16 %v64
  %v162 = vunpack.c.l.b16 %v65
  %v163 = vunpack.c.h.b16 %v65
  %v164 = vunpack.c.l.b16 %v66
  %v165 = vunpack.c.h.b16 %v66
  %v166 = vunpack.c.l.b16 %v67
  %v167 = vunpack.c.h.b16 %v67
  %v168 = vunpack.c.l.b16 %v68
  %v169 = vunpack.c.h.b16 %v68
  %v170 = vunpack.c.l.b16 %v69
  %v171 = vunpack.c.h.b16 %v69
  %v172 = vunpack.c.l.b16 %v70
  %v173 = vunpack.c.h.b16 %v70
  %v174 = vunpack.c.l.b16 %v71
  %v175 = vunpack.c.h.b16 %v71
  %v176 = vunpack.c.l.b16 %v72
  %v177 = vunpack.c.h.b16 %v72
  %v178 = vunpack.c.l.b16 %v73
  %v179 = vunpack.c.h.b16 %v73
  %v180 = vunpack.c.l.b16 %v74
  %v181 = vunpack.c.h.b16 %v74
  %v182 = vunpack.c.l.b16 %v75
  %v183 = vunpack.c.h.b16 %v75
  %v184 = vunpack.c.l.b16 %v76
  %v185 = vunpack.c.h.b16 %v76
  %v186 = vunpack.c.l.b16 %v77
  %v187 = vunpack.c.h.b16 %v77
  %v188 = vunpack.c.l.b16 %v78
  %v189 = vunpack.c.h.b16 %v78
  %v190 = vunpack.c.l.b16 %v79
  %v191 = vunpack.c.h.b16 %v79
  %v192 = vunpack.c.l.b16 %v80
  %v193 = vunpack.c.h.b16 %v80
  %v194 = vunpack.c.l.b16 %v81
  %v195 = vunpack.c.h.b16 %v81
  %v196 = vunpack.c.l.b16 %v82
  %v197 = vunpack.c.h.b16 %v82
  %v198 = vunpack.c.l.b16 %v83
  %v199 = vunpack.c.h.b16 %v83
  %v200 = vunpack.c.l.b16 %v84
  %v201 = vunpack.c.h.b16 %v84
  %v202 = vunpack.c.l.b16 %v85
  %v203 = vunpack.c.h.b16 %v85
  %v204 = vpack.c.b16 %v144, %v140
  %v205 = vpack.c.b16 %v145, %v141
  %v206 = vpack.c.b16 %v146, %v142
  %v207 = vpack.c.b16 %v147, %v143
  %v208 = vpack.c.b16 %v152, %v148
  %v209 = vpack.c.b16 %v153, %v149
  %v210 = vpack.c.b16 %v154, %v150
  %v211 = vpack.c.b16 %v155, %v151
  %v212 = vpack.c.b16 %v160, %v156
  %v213 = vpack.c.b16 %v161, %v157
  %v214 = vpack.c.b16 %v162, %v158
  %v215 = vpack.c.b16 %v163, %v159
  %v216 = vpack.c.b16 %v168, %v164
  %v217 = vpack.c.b16 %v169, %v165
  %v218 = vpack.c.b16 %v170, %v166
  %v219 = vpack.c.b16 %v171, %v167
  %v220 = vpack.c.b16 %v176, %v172
  %v221 = vpack.c.b16 %v177, %v173
  %v222 = vpack.c.b16 %v178, %v174
  %v223 = vpack.c.b16 %v179, %v175
  %v224 = vpack.c.b16 %v184, %v180
  %v225 = vpack.c.b16 %v185, %v181
  %v226 = vpack.c.b16 %v186, %v182
  %v227 = vpack.c.b16 %v187, %v183
  %v228 = vpack.c.b16 %v192, %v188
  %v229 = vpack.c.b16 %v193, %v189
  %v230 = vpack.c.b16 %v194, %v190
  %v231 = vpack.c.b16 %v195, %v191
  %v232 = vpack.c.b16 %v200, %v196
  %v233 = vpack.c.b16 %v201, %v197
  %v234 = vpack.c.b16 %v202, %v198
  %v235 = vpack.c.b16 %v203, %v199
  %268 = vmatprep.subr.bf16.mxu0 %v205
  %269 = vmatpush1.bf16.msra.mxu0 %v204
  %270 = vmatprep.subr.bf16.mxu0 %v209
  %271 = vmatpush1.bf16.msra.mxu0 %v208
  %272 = vmatprep.subr.bf16.mxu0 %v213
  %273 = vmatpush1.bf16.msra.mxu0 %v212
  %274 = vmatprep.subr.bf16.mxu0 %v217
  %275 = vmatpush1.bf16.msra.mxu0 %v216
  %276 = vmatprep.subr.bf16.mxu0 %v221
  %277 = vmatpush1.bf16.msra.mxu0 %v220
  %278 = vmatprep.subr.bf16.mxu0 %v225
  %279 = vmatpush1.bf16.msra.mxu0 %v224
  %280 = vmatprep.subr.bf16.mxu0 %v229
  %281 = vmatpush1.bf16.msra.mxu0 %v228
  %282 = vmatprep.subr.bf16.mxu0 %v233
  %283 = vmatpush1.bf16.msra.mxu0 %v232
  %284 = vmatprep.subr.bf16.mxu0 0
  %285 = vmatpush1.bf16.msra.mxu0 0
  %286 = vmatprep.subr.bf16.mxu0 0
  %287 = vmatpush1.bf16.msra.mxu0 0
  %288 = vmatprep.subr.bf16.mxu0 0
  %289 = vmatpush1.bf16.msra.mxu0 0
  %290 = vmatprep.subr.bf16.mxu0 0
  %291 = vmatpush1.bf16.msra.mxu0 0
  %292 = vmatprep.subr.bf16.mxu0 0
  %293 = vmatpush1.bf16.msra.mxu0 0
  %294 = vmatprep.subr.bf16.mxu0 0
  %295 = vmatpush1.bf16.msra.mxu0 0
  %296 = vmatprep.subr.bf16.mxu0 0
  %297 = vmatpush1.bf16.msra.mxu0 0
  %298 = vmatprep.subr.bf16.mxu0 0
  %299 = vmatpush1.bf16.msra.mxu0 0
  %300 = vmatprep.mubr.bf16.mxu0 0
  %301 = vmatmul.mubr.bf16.gmra.mrb[0].mxu0 %v46
  %v302 = vpop.f32.mrb[0].mxu0
  %v303 = vadd.f32 %v91, %v302
  %v304 = vpop.f32.mrb[0].mxu0
  %v305 = vadd.f32 %v95, %v304
  %v306 = vpop.f32.mrb[0].mxu0
  %v307 = vadd.f32 %v91, %v306
  %v308 = vpop.f32.mrb[0].mxu0
  %v309 = vadd.f32 %v95, %v308
  %310 = vmatprep.mubr.bf16.mxu0 0
  %311 = vmatmul.mubr.bf16.gmra.mrb[0].mxu0 %v47
  %v312 = vpop.f32.mrb[0].mxu0
  %v313 = vadd.f32 %v91, %v312
  %v314 = vpop.f32.mrb[0].mxu0
  %v315 = vadd.f32 %v95, %v314
  %v316 = vpop.f32.mrb[0].mxu0
  %v317 = vadd.f32 %v91, %v316
  %v318 = vpop.f32.mrb[0].mxu0
  %v319 = vadd.f32 %v95, %v318
  %320 = vmatprep.mubr.bf16.mxu0 0
  %321 = vmatmul.mubr.bf16.gmra.mrb[0].mxu0 %v48
  %v322 = vpop.f32.mrb[0].mxu0
  %v323 = vadd.f32 %v91, %v322
  %v324 = vpop.f32.mrb[0].mxu0
  %v325 = vadd.f32 %v95, %v324
  %v326 = vpop.f32.mrb[0].mxu0
  %v327 = vadd.f32 %v91, %v326
  %v328 = vpop.f32.mrb[0].mxu0
  %v329 = vadd.f32 %v95, %v328
  %330 = vmatprep.mubr.bf16.mxu0 0
  %331 = vmatmul.mubr.bf16.gmra.mrb[0].mxu0 %v49
  %v332 = vpop.f32.mrb[0].mxu0
  %v333 = vadd.f32 %v91, %v332
  %v334 = vpop.f32.mrb[0].mxu0
  %v335 = vadd.f32 %v95, %v334
  %v336 = vpop.f32.mrb[0].mxu0
  %v337 = vadd.f32 %v91, %v336
  %v338 = vpop.f32.mrb[0].mxu0
  %v339 = vadd.f32 %v95, %v338
  %340 = vmatprep.mubr.bf16.mxu0 0
  %341 = vmatmul.mubr.bf16.gmra.mrb[0].mxu0 %v50
  %v342 = vpop.f32.mrb[0].mxu0
  %v343 = vadd.f32 %v91, %v342
  %v344 = vpop.f32.mrb[0].mxu0
  %v345 = vadd.f32 %v95, %v344
  %v346 = vpop.f32.mrb[0].mxu0
  %v347 = vadd.f32 %v91, %v346
  %v348 = vpop.f32.mrb[0].mxu0
  %v349 = vadd.f32 %v95, %v348
  %350 = vmatprep.mubr.bf16.mxu0 0
  %351 = vmatmul.mubr.bf16.gmra.mrb[0].mxu0 %v51
  %v352 = vpop.f32.mrb[0].mxu0
  %v353 = vadd.f32 %v91, %v352
  %v354 = vpop.f32.mrb[0].mxu0
  %v355 = vadd.f32 %v95, %v354
  %v356 = vpop.f32.mrb[0].mxu0
  %v357 = vadd.f32 %v91, %v356
  %v358 = vpop.f32.mrb[0].mxu0
  %v359 = vadd.f32 %v95, %v358
  %360 = vmatprep.mubr.bf16.mxu0 0
  %361 = vmatmul.mubr.bf16.gmra.mrb[0].mxu0 %v52
  %v362 = vpop.f32.mrb[0].mxu0
  %v363 = vadd.f32 %v91, %v362
  %v364 = vpop.f32.mrb[0].mxu0
  %v365 = vadd.f32 %v95, %v364
  %v366 = vpop.f32.mrb[0].mxu0
  %v367 = vadd.f32 %v91, %v366
  %v368 = vpop.f32.mrb[0].mxu0
  %v369 = vadd.f32 %v95, %v368
  %370 = vmatprep.mubr.bf16.mxu0 0
  %371 = vmatmul.mubr.bf16.gmra.mrb[0].mxu0 %v53
  %v372 = vpop.f32.mrb[0].mxu0
  %v373 = vadd.f32 %v91, %v372
  %v374 = vpop.f32.mrb[0].mxu0
  %v375 = vadd.f32 %v95, %v374
  %v376 = vpop.f32.mrb[0].mxu0
  %v377 = vadd.f32 %v91, %v376
  %v378 = vpop.f32.mrb[0].mxu0
  %v379 = vadd.f32 %v95, %v378
  %380 = vdwg.mxu0
  %381 = vmatprep.subr.bf16.mxu0 %v207
  %382 = vmatpush1.bf16.msra.mxu0 %v206
  %383 = vmatprep.subr.bf16.mxu0 %v211
  %384 = vmatpush1.bf16.msra.mxu0 %v210
  %385 = vmatprep.subr.bf16.mxu0 %v215
  %386 = vmatpush1.bf16.msra.mxu0 %v214
  %387 = vmatprep.subr.bf16.mxu0 %v219
  %388 = vmatpush1.bf16.msra.mxu0 %v218
  %389 = vmatprep.subr.bf16.mxu0 %v223
  %390 = vmatpush1.bf16.msra.mxu0 %v222
  %391 = vmatprep.subr.bf16.mxu0 %v227
  %392 = vmatpush1.bf16.msra.mxu0 %v226
  %393 = vmatprep.subr.bf16.mxu0 %v231
  %394 = vmatpush1.bf16.msra.mxu0 %v230
  %395 = vmatprep.subr.bf16.mxu0 %v235
  %396 = vmatpush1.bf16.msra.mxu0 %v234
  %397 = vmatprep.subr.bf16.mxu0 0
  %398 = vmatpush1.bf16.msra.mxu0 0
  %399 = vmatprep.subr.bf16.mxu0 0
  %400 = vmatpush1.bf16.msra.mxu0 0
  %401 = vmatprep.subr.bf16.mxu0 0
  %402 = vmatpush1.bf16.msra.mxu0 0
  %403 = vmatprep.subr.bf16.mxu0 0
  %404 = vmatpush1.bf16.msra.mxu0 0
  %405 = vmatprep.subr.bf16.mxu0 0
  %406 = vmatpush1.bf16.msra.mxu0 0
  %407 = vmatprep.subr.bf16.mxu0 0
  %408 = vmatpush1.bf16.msra.mxu0 0
  %409 = vmatprep.subr.bf16.mxu0 0
  %410 = vmatpush1.bf16.msra.mxu0 0
  %411 = vmatprep.subr.bf16.mxu0 0
  %412 = vmatpush1.bf16.msra.mxu0 0
  %413 = vmatprep.mubr.bf16.mxu0 0
  %414 = vmatmul.mubr.bf16.gmra.mrb[0].mxu0 %v46
  %v415 = vpop.f32.mrb[0].mxu0
  %v416 = vadd.f32 %v99, %v415
  %v417 = vpop.f32.mrb[0].mxu0
  %v418 = vadd.f32 %v103, %v417
  %v419 = vpop.f32.mrb[0].mxu0
  %v420 = vadd.f32 %v99, %v419
  %v421 = vpop.f32.mrb[0].mxu0
  %v422 = vadd.f32 %v103, %v421
  %423 = vmatprep.mubr.bf16.mxu0 0
  %424 = vmatmul.mubr.bf16.gmra.mrb[0].mxu0 %v47
  %v425 = vpop.f32.mrb[0].mxu0
  %v426 = vadd.f32 %v99, %v425
  %v427 = vpop.f32.mrb[0].mxu0
  %v428 = vadd.f32 %v103, %v427
  %v429 = vpop.f32.mrb[0].mxu0
  %v430 = vadd.f32 %v99, %v429
  %v431 = vpop.f32.mrb[0].mxu0
  %v432 = vadd.f32 %v103, %v431
  %433 = vmatprep.mubr.bf16.mxu0 0
  %434 = vmatmul.mubr.bf16.gmra.mrb[0].mxu0 %v48
  %v435 = vpop.f32.mrb[0].mxu0
  %v436 = vadd.f32 %v99, %v435
  %v437 = vpop.f32.mrb[0].mxu0
  %v438 = vadd.f32 %v103, %v437
  %v439 = vpop.f32.mrb[0].mxu0
  %v440 = vadd.f32 %v99, %v439
  %v441 = vpop.f32.mrb[0].mxu0
  %v442 = vadd.f32 %v103, %v441
  %443 = vmatprep.mubr.bf16.mxu0 0
  %444 = vmatmul.mubr.bf16.gmra.mrb[0].mxu0 %v49
  %v445 = vpop.f32.mrb[0].mxu0
  %v446 = vadd.f32 %v99, %v445
  %v447 = vpop.f32.mrb[0].mxu0
  %v448 = vadd.f32 %v103, %v447
  %v449 = vpop.f32.mrb[0].mxu0
  %v450 = vadd.f32 %v99, %v449
  %v451 = vpop.f32.mrb[0].mxu0
  %v452 = vadd.f32 %v103, %v451
  %453 = vmatprep.mubr.bf16.mxu0 0
  %454 = vmatmul.mubr.bf16.gmra.mrb[0].mxu0 %v50
  %v455 = vpop.f32.mrb[0].mxu0
  %v456 = vadd.f32 %v99, %v455
  %v457 = vpop.f32.mrb[0].mxu0
  %v458 = vadd.f32 %v103, %v457
  %v459 = vpop.f32.mrb[0].mxu0
  %v460 = vadd.f32 %v99, %v459
  %v461 = vpop.f32.mrb[0].mxu0
  %v462 = vadd.f32 %v103, %v461
  %463 = vmatprep.mubr.bf16.mxu0 0
  %464 = vmatmul.mubr.bf16.gmra.mrb[0].mxu0 %v51
  %v465 = vpop.f32.mrb[0].mxu0
  %v466 = vadd.f32 %v99, %v465
  %v467 = vpop.f32.mrb[0].mxu0
  %v468 = vadd.f32 %v103, %v467
  %v469 = vpop.f32.mrb[0].mxu0
  %v470 = vadd.f32 %v99, %v469
  %v471 = vpop.f32.mrb[0].mxu0
  %v472 = vadd.f32 %v103, %v471
  %473 = vmatprep.mubr.bf16.mxu0 0
  %474 = vmatmul.mubr.bf16.gmra.mrb[0].mxu0 %v52
  %v475 = vpop.f32.mrb[0].mxu0
  %v476 = vadd.f32 %v99, %v475
  %v477 = vpop.f32.mrb[0].mxu0
  %v478 = vadd.f32 %v103, %v477
  %v479 = vpop.f32.mrb[0].mxu0
  %v480 = vadd.f32 %v99, %v479
  %v481 = vpop.f32.mrb[0].mxu0
  %v482 = vadd.f32 %v103, %v481
  %483 = vmatprep.mubr.bf16.mxu0 0
  %484 = vmatmul.mubr.bf16.gmra.mrb[0].mxu0 %v53
  %v485 = vpop.f32.mrb[0].mxu0
  %v486 = vadd.f32 %v99, %v485
  %v487 = vpop.f32.mrb[0].mxu0
  %v488 = vadd.f32 %v103, %v487
  %v489 = vpop.f32.mrb[0].mxu0
  %v490 = vadd.f32 %v99, %v489
  %v491 = vpop.f32.mrb[0].mxu0
  %v492 = vadd.f32 %v103, %v491
  %493 = vdwg.mxu0
  %494 = vst [vmem:[#allocation2] sm:$0xff] %v303
  %495 = vst [vmem:[#allocation2 + $0x8] sm:$0xff] %v305
  %496 = vst [vmem:[#allocation2 + $0x10] sm:$0xff] %v416
  %497 = vst [vmem:[#allocation2 + $0x18] sm:$0xff] %v418
  %498 = vst [vmem:[#allocation2 + $0x20] sm:$0xff] %v307
  %499 = vst [vmem:[#allocation2 + $0x28] sm:$0xff] %v309
  %500 = vst [vmem:[#allocation2 + $0x30] sm:$0xff] %v420
  %501 = vst [vmem:[#allocation2 + $0x38] sm:$0xff] %v422
  %502 = vst [vmem:[#allocation2 + $0x40] sm:$0xff] %v313
  %503 = vst [vmem:[#allocation2 + $0x48] sm:$0xff] %v315
  %504 = vst [vmem:[#allocation2 + $0x50] sm:$0xff] %v426
  %505 = vst [vmem:[#allocation2 + $0x58] sm:$0xff] %v428
  %506 = vst [vmem:[#allocation2 + $0x60] sm:$0xff] %v317
  %507 = vst [vmem:[#allocation2 + $0x68] sm:$0xff] %v319
  %508 = vst [vmem:[#allocation2 + $0x70] sm:$0xff] %v430
  %509 = vst [vmem:[#allocation2 + $0x78] sm:$0xff] %v432
  %510 = vst [vmem:[#allocation2 + $0x80] sm:$0xff] %v323
  %511 = vst [vmem:[#allocation2 + $0x88] sm:$0xff] %v325
  %512 = vst [vmem:[#allocation2 + $0x90] sm:$0xff] %v436
  %513 = vst [vmem:[#allocation2 + $0x98] sm:$0xff] %v438
  %514 = vst [vmem:[#allocation2 + $0xa0] sm:$0xff] %v327
  %515 = vst [vmem:[#allocation2 + $0xa8] sm:$0xff] %v329
  %516 = vst [vmem:[#allocation2 + $0xb0] sm:$0xff] %v440
  %517 = vst [vmem:[#allocation2 + $0xb8] sm:$0xff] %v442
  %518 = vst [vmem:[#allocation2 + $0xc0] sm:$0xff] %v333
  %519 = vst [vmem:[#allocation2 + $0xc8] sm:$0xff] %v335
  %520 = vst [vmem:[#allocation2 + $0xd0] sm:$0xff] %v446
  %521 = vst [vmem:[#allocation2 + $0xd8] sm:$0xff] %v448
  %522 = vst [vmem:[#allocation2 + $0xe0] sm:$0xff] %v337
  %523 = vst [vmem:[#allocation2 + $0xe8] sm:$0xff] %v339
  %524 = vst [vmem:[#allocation2 + $0xf0] sm:$0xff] %v450
  %525 = vst [vmem:[#allocation2 + $0xf8] sm:$0xff] %v452
  %526 = vst [vmem:[#allocation2 + $0x100] sm:$0xff] %v343
  %527 = vst [vmem:[#allocation2 + $0x108] sm:$0xff] %v345
  %528 = vst [vmem:[#allocation2 + $0x110] sm:$0xff] %v456
  %529 = vst [vmem:[#allocation2 + $0x118] sm:$0xff] %v458
  %530 = vst [vmem:[#allocation2 + $0x120] sm:$0xff] %v347
  %531 = vst [vmem:[#allocation2 + $0x128] sm:$0xff] %v349
  %532 = vst [vmem:[#allocation2 + $0x130] sm:$0xff] %v460
  %533 = vst [vmem:[#allocation2 + $0x138] sm:$0xff] %v462
  %534 = vst [vmem:[#allocation2 + $0x140] sm:$0xff] %v353
  %535 = vst [vmem:[#allocation2 + $0x148] sm:$0xff] %v355
  %536 = vst [vmem:[#allocation2 + $0x150] sm:$0xff] %v466
  %537 = vst [vmem:[#allocation2 + $0x158] sm:$0xff] %v468
  %538 = vst [vmem:[#allocation2 + $0x160] sm:$0xff] %v357
  %539 = vst [vmem:[#allocation2 + $0x168] sm:$0xff] %v359
  %540 = vst [vmem:[#allocation2 + $0x170] sm:$0xff] %v470
  %541 = vst [vmem:[#allocation2 + $0x178] sm:$0xff] %v472
  %542 = vst [vmem:[#allocation2 + $0x180] sm:$0xff] %v363
  %543 = vst [vmem:[#allocation2 + $0x188] sm:$0xff] %v365
  %544 = vst [vmem:[#allocation2 + $0x190] sm:$0xff] %v476
  %545 = vst [vmem:[#allocation2 + $0x198] sm:$0xff] %v478
  %546 = vst [vmem:[#allocation2 + $0x1a0] sm:$0xff] %v367
  %547 = vst [vmem:[#allocation2 + $0x1a8] sm:$0xff] %v369
  %548 = vst [vmem:[#allocation2 + $0x1b0] sm:$0xff] %v480
  %549 = vst [vmem:[#allocation2 + $0x1b8] sm:$0xff] %v482
  %550 = vst [vmem:[#allocation2 + $0x1c0] sm:$0xff] %v373
  %551 = vst [vmem:[#allocation2 + $0x1c8] sm:$0xff] %v375
  %552 = vst [vmem:[#allocation2 + $0x1d0] sm:$0xff] %v486
  %553 = vst [vmem:[#allocation2 + $0x1d8] sm:$0xff] %v488
  %554 = vst [vmem:[#allocation2 + $0x1e0] sm:$0xff] %v377
  %555 = vst [vmem:[#allocation2 + $0x1e8] sm:$0xff] %v379
  %556 = vst [vmem:[#allocation2 + $0x1f0] sm:$0xff] %v490
  %557 = vst [vmem:[#allocation2 + $0x1f8] sm:$0xff] %v492
  %v558 = vld [vmem:[%s4] sm:$0xff]
  %v559 = vld [vmem:[%s4 + $0x8] sm:$0xff]
  %v560 = vld [vmem:[%s4 + $0x10] sm:$0xff]
  %v561 = vld [vmem:[%s4 + $0x18] sm:$0xff]
  %v562 = vld [vmem:[%s4 + $0x20] sm:$0xff]
  %v563 = vld [vmem:[%s4 + $0x28] sm:$0xff]
  %v564 = vld [vmem:[%s4 + $0x30] sm:$0xff]
  %v565 = vld [vmem:[%s4 + $0x38] sm:$0xff]
  %v566 = vld [vmem:[%s4 + $0x40] sm:$0xff]
  %v567 = vld [vmem:[%s4 + $0x48] sm:$0xff]
  %v568 = vld [vmem:[%s4 + $0x50] sm:$0xff]
  %v569 = vld [vmem:[%s4 + $0x58] sm:$0xff]
  %v570 = vld [vmem:[%s4 + $0x60] sm:$0xff]
  %v571 = vld [vmem:[%s4 + $0x68] sm:$0xff]
  %v572 = vld [vmem:[%s4 + $0x70] sm:$0xff]
  %v573 = vld [vmem:[%s4 + $0x78] sm:$0xff]
  %v574 = vld [vmem:[%s4 + $0x80] sm:$0xff]
  %v575 = vld [vmem:[%s4 + $0x88] sm:$0xff]
  %v576 = vld [vmem:[%s4 + $0x90] sm:$0xff]
  %v577 = vld [vmem:[%s4 + $0x98] sm:$0xff]
  %v578 = vld [vmem:[%s4 + $0xa0] sm:$0xff]
  %v579 = vld [vmem:[%s4 + $0xa8] sm:$0xff]
  %v580 = vld [vmem:[%s4 + $0xb0] sm:$0xff]
  %v581 = vld [vmem:[%s4 + $0xb8] sm:$0xff]
  %v582 = vld [vmem:[%s4 + $0xc0] sm:$0xff]
  %v583 = vld [vmem:[%s4 + $0xc8] sm:$0xff]
  %v584 = vld [vmem:[%s4 + $0xd0] sm:$0xff]
  %v585 = vld [vmem:[%s4 + $0xd8] sm:$0xff]
  %v586 = vld [vmem:[%s4 + $0xe0] sm:$0xff]
  %v587 = vld [vmem:[%s4 + $0xe8] sm:$0xff]
  %v588 = vld [vmem:[%s4 + $0xf0] sm:$0xff]
  %v589 = vld [vmem:[%s4 + $0xf8] sm:$0xff]
  %v590 = vld [vmem:[%s5] sm:$0xf]
  %v592 = vlaneseq
  %v593 = vshrl.u32 %v592, 7
  %v594 = vsub.s32 0, %v593
  %v595 = vrot.slane %v590, %v594
  %v596 = vlaneseq
  %v597 = vshrl.u32 %v596, 7
  %v598 = vsub.s32 1, %v597
  %v599 = vrot.slane %v590, %v598
  %v600 = vlaneseq
  %v601 = vshrl.u32 %v600, 7
  %v602 = vsub.s32 2, %v601
  %v603 = vrot.slane %v590, %v602
  %v604 = vlaneseq
  %v605 = vshrl.u32 %v604, 7
  %v606 = vsub.s32 3, %v605
  %v607 = vrot.slane %v590, %v606
  %v644 = vunpack.c.l.b16 %v558
  %v645 = vunpack.c.h.b16 %v558
  %v646 = vunpack.c.l.b16 %v559
  %v647 = vunpack.c.h.b16 %v559
  %v648 = vunpack.c.l.b16 %v560
  %v649 = vunpack.c.h.b16 %v560
  %v650 = vunpack.c.l.b16 %v561
  %v651 = vunpack.c.h.b16 %v561
  %v652 = vunpack.c.l.b16 %v562
  %v653 = vunpack.c.h.b16 %v562
  %v654 = vunpack.c.l.b16 %v563
  %v655 = vunpack.c.h.b16 %v563
  %v656 = vunpack.c.l.b16 %v564
  %v657 = vunpack.c.h.b16 %v564
  %v658 = vunpack.c.l.b16 %v565
  %v659 = vunpack.c.h.b16 %v565
  %v660 = vunpack.c.l.b16 %v566
  %v661 = vunpack.c.h.b16 %v566
  %v662 = vunpack.c.l.b16 %v567
  %v663 = vunpack.c.h.b16 %v567
  %v664 = vunpack.c.l.b16 %v568
  %v665 = vunpack.c.h.b16 %v568
  %v666 = vunpack.c.l.b16 %v569
  %v667 = vunpack.c.h.b16 %v569
  %v668 = vunpack.c.l.b16 %v570
  %v669 = vunpack.c.h.b16 %v570
  %v670 = vunpack.c.l.b16 %v571
  %v671 = vunpack.c.h.b16 %v571
  %v672 = vunpack.c.l.b16 %v572
  %v673 = vunpack.c.h.b16 %v572
  %v674 = vunpack.c.l.b16 %v573
  %v675 = vunpack.c.h.b16 %v573
  %v676 = vunpack.c.l.b16 %v574
  %v677 = vunpack.c.h.b16 %v574
  %v678 = vunpack.c.l.b16 %v575
  %v679 = vunpack.c.h.b16 %v575
  %v680 = vunpack.c.l.b16 %v576
  %v681 = vunpack.c.h.b16 %v576
  %v682 = vunpack.c.l.b16 %v577
  %v683 = vunpack.c.h.b16 %v577
  %v684 = vunpack.c.l.b16 %v578
  %v685 = vunpack.c.h.b16 %v578
  %v686 = vunpack.c.l.b16 %v579
  %v687 = vunpack.c.h.b16 %v579
  %v688 = vunpack.c.l.b16 %v580
  %v689 = vunpack.c.h.b16 %v580
  %v690 = vunpack.c.l.b16 %v581
  %v691 = vunpack.c.h.b16 %v581
  %v692 = vunpack.c.l.b16 %v582
  %v693 = vunpack.c.h.b16 %v582
  %v694 = vunpack.c.l.b16 %v583
  %v695 = vunpack.c.h.b16 %v583
  %v696 = vunpack.c.l.b16 %v584
  %v697 = vunpack.c.h.b16 %v584
  %v698 = vunpack.c.l.b16 %v585
  %v699 = vunpack.c.h.b16 %v585
  %v700 = vunpack.c.l.b16 %v586
  %v701 = vunpack.c.h.b16 %v586
  %v702 = vunpack.c.l.b16 %v587
  %v703 = vunpack.c.h.b16 %v587
  %v704 = vunpack.c.l.b16 %v588
  %v705 = vunpack.c.h.b16 %v588
  %v706 = vunpack.c.l.b16 %v589
  %v707 = vunpack.c.h.b16 %v589
  %v708 = vpack.c.b16 %v648, %v644
  %v709 = vpack.c.b16 %v649, %v645
  %v710 = vpack.c.b16 %v650, %v646
  %v711 = vpack.c.b16 %v651, %v647
  %v712 = vpack.c.b16 %v656, %v652
  %v713 = vpack.c.b16 %v657, %v653
  %v714 = vpack.c.b16 %v658, %v654
  %v715 = vpack.c.b16 %v659, %v655
  %v716 = vpack.c.b16 %v664, %v660
  %v717 = vpack.c.b16 %v665, %v661
  %v718 = vpack.c.b16 %v666, %v662
  %v719 = vpack.c.b16 %v667, %v663
  %v720 = vpack.c.b16 %v672, %v668
  %v721 = vpack.c.b16 %v673, %v669
  %v722 = vpack.c.b16 %v674, %v670
  %v723 = vpack.c.b16 %v675, %v671
  %v724 = vpack.c.b16 %v680, %v676
  %v725 = vpack.c.b16 %v681, %v677
  %v726 = vpack.c.b16 %v682, %v678
  %v727 = vpack.c.b16 %v683, %v679
  %v728 = vpack.c.b16 %v688, %v684
  %v729 = vpack.c.b16 %v689, %v685
  %v730 = vpack.c.b16 %v690, %v686
  %v731 = vpack.c.b16 %v691, %v687
  %v732 = vpack.c.b16 %v696, %v692
  %v733 = vpack.c.b16 %v697, %v693
  %v734 = vpack.c.b16 %v698, %v694
  %v735 = vpack.c.b16 %v699, %v695
  %v736 = vpack.c.b16 %v704, %v700
  %v737 = vpack.c.b16 %v705, %v701
  %v738 = vpack.c.b16 %v706, %v702
  %v739 = vpack.c.b16 %v707, %v703
  %772 = vmatprep.subr.bf16.mxu0 %v709
  %773 = vmatpush1.bf16.msra.mxu0 %v708
  %774 = vmatprep.subr.bf16.mxu0 %v713
  %775 = vmatpush1.bf16.msra.mxu0 %v712
  %776 = vmatprep.subr.bf16.mxu0 %v717
  %777 = vmatpush1.bf16.msra.mxu0 %v716
  %778 = vmatprep.subr.bf16.mxu0 %v721
  %779 = vmatpush1.bf16.msra.mxu0 %v720
  %780 = vmatprep.subr.bf16.mxu0 %v725
  %781 = vmatpush1.bf16.msra.mxu0 %v724
  %782 = vmatprep.subr.bf16.mxu0 %v729
  %783 = vmatpush1.bf16.msra.mxu0 %v728
  %784 = vmatprep.subr.bf16.mxu0 %v733
  %785 = vmatpush1.bf16.msra.mxu0 %v732
  %786 = vmatprep.subr.bf16.mxu0 %v737
  %787 = vmatpush1.bf16.msra.mxu0 %v736
  %788 = vmatprep.subr.bf16.mxu0 0
  %789 = vmatpush1.bf16.msra.mxu0 0
  %790 = vmatprep.subr.bf16.mxu0 0
  %791 = vmatpush1.bf16.msra.mxu0 0
  %792 = vmatprep.subr.bf16.mxu0 0
  %793 = vmatpush1.bf16.msra.mxu0 0
  %794 = vmatprep.subr.bf16.mxu0 0
  %795 = vmatpush1.bf16.msra.mxu0 0
  %796 = vmatprep.subr.bf16.mxu0 0
  %797 = vmatpush1.bf16.msra.mxu0 0
  %798 = vmatprep.subr.bf16.mxu0 0
  %799 = vmatpush1.bf16.msra.mxu0 0
  %800 = vmatprep.subr.bf16.mxu0 0
  %801 = vmatpush1.bf16.msra.mxu0 0
  %802 = vmatprep.subr.bf16.mxu0 0
  %803 = vmatpush1.bf16.msra.mxu0 0
  %804 = vmatprep.mubr.bf16.mxu0 0
  %805 = vmatmul.mubr.bf16.gmra.mrb[0].mxu0 %v53
  %v806 = vpop.f32.mrb[0].mxu0
  %v807 = vadd.f32 %v595, %v806
  %v808 = vpop.f32.mrb[0].mxu0
  %v809 = vadd.f32 %v599, %v808
  %v810 = vpop.f32.mrb[0].mxu0
  %v811 = vadd.f32 %v595, %v810
  %v812 = vpop.f32.mrb[0].mxu0
  %v813 = vadd.f32 %v599, %v812
  %814 = vdwg.mxu0
  %815 = vmatprep.subr.bf16.mxu0 %v711
  %816 = vmatpush1.bf16.msra.mxu0 %v710
  %817 = vmatprep.subr.bf16.mxu0 %v715
  %818 = vmatpush1.bf16.msra.mxu0 %v714
  %819 = vmatprep.subr.bf16.mxu0 %v719
  %820 = vmatpush1.bf16.msra.mxu0 %v718
  %821 = vmatprep.subr.bf16.mxu0 %v723
  %822 = vmatpush1.bf16.msra.mxu0 %v722
  %823 = vmatprep.subr.bf16.mxu0 %v727
  %824 = vmatpush1.bf16.msra.mxu0 %v726
  %825 = vmatprep.subr.bf16.mxu0 %v731
  %826 = vmatpush1.bf16.msra.mxu0 %v730
  %827 = vmatprep.subr.bf16.mxu0 %v735
  %828 = vmatpush1.bf16.msra.mxu0 %v734
  %829 = vmatprep.subr.bf16.mxu0 %v739
  %830 = vmatpush1.bf16.msra.mxu0 %v738
  %831 = vmatprep.subr.bf16.mxu0 0
  %832 = vmatpush1.bf16.msra.mxu0 0
  %833 = vmatprep.subr.bf16.mxu0 0
  %834 = vmatpush1.bf16.msra.mxu0 0
  %835 = vmatprep.subr.bf16.mxu0 0
  %836 = vmatpush1.bf16.msra.mxu0 0
  %837 = vmatprep.subr.bf16.mxu0 0
  %838 = vmatpush1.bf16.msra.mxu0 0
  %839 = vmatprep.subr.bf16.mxu0 0
  %840 = vmatpush1.bf16.msra.mxu0 0
  %841 = vmatprep.subr.bf16.mxu0 0
  %842 = vmatpush1.bf16.msra.mxu0 0
  %843 = vmatprep.subr.bf16.mxu0 0
  %844 = vmatpush1.bf16.msra.mxu0 0
  %845 = vmatprep.subr.bf16.mxu0 0
  %846 = vmatpush1.bf16.msra.mxu0 0
  %847 = vmatprep.mubr.bf16.mxu0 0
  %848 = vmatmul.mubr.bf16.gmra.mrb[0].mxu0 %v53
  %v849 = vpop.f32.mrb[0].mxu0
  %v850 = vadd.f32 %v603, %v849
  %v851 = vpop.f32.mrb[0].mxu0
  %v852 = vadd.f32 %v607, %v851
  %v853 = vpop.f32.mrb[0].mxu0
  %v854 = vadd.f32 %v603, %v853
  %v855 = vpop.f32.mrb[0].mxu0
  %v856 = vadd.f32 %v607, %v855
  %857 = vdwg.mxu0
  %v858 = vxor.u32 %v807, 2147483648
  %v859 = vxor.u32 %v809, 2147483648
  %v860 = vxor.u32 %v811, 2147483648
  %v861 = vxor.u32 %v813, 2147483648
  %v862 = vmul.f32 %v858, 1.442695
  %v863 = vpow.pop %v862
  %v864 = vmul.f32 %v859, 1.442695
  %v865 = vpow.pop %v864
  %v866 = vmul.f32 %v860, 1.442695
  %v867 = vpow.pop %v866
  %v868 = vmul.f32 %v861, 1.442695
  %v869 = vpow.pop %v868
  %v870 = vadd.f32 %v863, 1.0
  %v871 = vadd.f32 %v865, 1.0
  %v872 = vadd.f32 %v867, 1.0
  %v873 = vadd.f32 %v869, 1.0
  %v874 = vrcp.pop %v870
  %v875 = vmul.f32 1.0, %v874
  %v876 = vrcp.pop %v871
  %v877 = vmul.f32 1.0, %v876
  %v878 = vrcp.pop %v872
  %v879 = vmul.f32 1.0, %v878
  %v880 = vrcp.pop %v873
  %v881 = vmul.f32 1.0, %v880
  %v882 = vtanh.pop %v850
  %v883 = vtanh.pop %v854
  %v884 = vxor.u32 %v852, 2147483648
  %v885 = vxor.u32 %v856, 2147483648
  %v886 = vmul.f32 %v884, 1.442695
  %v887 = vpow.pop %v886
  %v888 = vmul.f32 %v885, 1.442695
  %v889 = vpow.pop %v888
  %v890 = vadd.f32 %v887, 1.0
  %v891 = vadd.f32 %v889, 1.0
  %v892 = vrcp.pop %v890
  %v893 = vmul.f32 1.0, %v892
  %v894 = vrcp.pop %v891
  %v895 = vmul.f32 1.0, %v894
  %v896 = vmul.f32 %v877, 0.0
  %v897 = vmul.f32 %v881, 0.0
  %v898 = vmul.f32 %v875, %v882
  %v899 = vmul.f32 %v879, %v883
  %v900 = vadd.f32 %v896, %v898
  %v901 = vadd.f32 %v897, %v899
  %v902 = vtanh.pop %v900
  %v903 = vtanh.pop %v901
  %v904 = vmul.f32 %v893, %v902
  %v905 = vmul.f32 %v895, %v903
  %v906 = vld [vmem:[%s2] sm:$0xff]
  %v907 = vld [vmem:[%s2 + $0x8] sm:$0xff]
  %v908 = vld [vmem:[%s2 + $0x10] sm:$0xff]
  %v909 = vld [vmem:[%s2 + $0x18] sm:$0xff]
  %v910 = vld [vmem:[%s2 + $0x20] sm:$0xff]
  %v911 = vld [vmem:[%s2 + $0x28] sm:$0xff]
  %v912 = vld [vmem:[%s2 + $0x30] sm:$0xff]
  %v913 = vld [vmem:[%s2 + $0x38] sm:$0xff]
  %v914 = vld [vmem:[%s2 + $0x40] sm:$0xff]
  %v915 = vld [vmem:[%s2 + $0x48] sm:$0xff]
  %v916 = vld [vmem:[%s2 + $0x50] sm:$0xff]
  %v917 = vld [vmem:[%s2 + $0x58] sm:$0xff]
  %v918 = vld [vmem:[%s2 + $0x60] sm:$0xff]
  %v919 = vld [vmem:[%s2 + $0x68] sm:$0xff]
  %v920 = vld [vmem:[%s2 + $0x70] sm:$0xff]
  %v921 = vld [vmem:[%s2 + $0x78] sm:$0xff]
  %v922 = vld [vmem:[%s2 + $0x80] sm:$0xff]
  %v923 = vld [vmem:[%s2 + $0x88] sm:$0xff]
  %v924 = vld [vmem:[%s2 + $0x90] sm:$0xff]
  %v925 = vld [vmem:[%s2 + $0x98] sm:$0xff]
  %v926 = vld [vmem:[%s2 + $0xa0] sm:$0xff]
  %v927 = vld [vmem:[%s2 + $0xa8] sm:$0xff]
  %v928 = vld [vmem:[%s2 + $0xb0] sm:$0xff]
  %v929 = vld [vmem:[%s2 + $0xb8] sm:$0xff]
  %v930 = vld [vmem:[%s2 + $0xc0] sm:$0xff]
  %v931 = vld [vmem:[%s2 + $0xc8] sm:$0xff]
  %v932 = vld [vmem:[%s2 + $0xd0] sm:$0xff]
  %v933 = vld [vmem:[%s2 + $0xd8] sm:$0xff]
  %v934 = vld [vmem:[%s2 + $0xe0] sm:$0xff]
  %v935 = vld [vmem:[%s2 + $0xe8] sm:$0xff]
  %v936 = vld [vmem:[%s2 + $0xf0] sm:$0xff]
  %v937 = vld [vmem:[%s2 + $0xf8] sm:$0xff]
  %v938 = vld [vmem:[#allocation2] sm:$0xff]
  %v939 = vld [vmem:[#allocation2 + $0x8] sm:$0xff]
  %v940 = vld [vmem:[#allocation2 + $0x10] sm:$0xff]
  %v941 = vld [vmem:[#allocation2 + $0x18] sm:$0xff]
  %v942 = vld [vmem:[#allocation2 + $0x20] sm:$0xff]
  %v943 = vld [vmem:[#allocation2 + $0x28] sm:$0xff]
  %v944 = vld [vmem:[#allocation2 + $0x30] sm:$0xff]
  %v945 = vld [vmem:[#allocation2 + $0x38] sm:$0xff]
  %v978 = vunpack.c.l.b16 %v906
  %v979 = vunpack.c.h.b16 %v906
  %v980 = vunpack.c.l.b16 %v907
  %v981 = vunpack.c.h.b16 %v907
  %v982 = vunpack.c.l.b16 %v908
  %v983 = vunpack.c.h.b16 %v908
  %v984 = vunpack.c.l.b16 %v909
  %v985 = vunpack.c.h.b16 %v909
  %v986 = vunpack.c.l.b16 %v910
  %v987 = vunpack.c.h.b16 %v910
  %v988 = vunpack.c.l.b16 %v911
  %v989 = vunpack.c.h.b16 %v911
  %v990 = vunpack.c.l.b16 %v912
  %v991 = vunpack.c.h.b16 %v912
  %v992 = vunpack.c.l.b16 %v913
  %v993 = vunpack.c.h.b16 %v913
  %v994 = vunpack.c.l.b16 %v914
  %v995 = vunpack.c.h.b16 %v914
  %v996 = vunpack.c.l.b16 %v915
  %v997 = vunpack.c.h.b16 %v915
  %v998 = vunpack.c.l.b16 %v916
  %v999 = vunpack.c.h.b16 %v916
  %v1000 = vunpack.c.l.b16 %v917
  %v1001 = vunpack.c.h.b16 %v917
  %v1002 = vunpack.c.l.b16 %v918
  %v1003 = vunpack.c.h.b16 %v918
  %v1004 = vunpack.c.l.b16 %v919
  %v1005 = vunpack.c.h.b16 %v919
  %v1006 = vunpack.c.l.b16 %v920
  %v1007 = vunpack.c.h.b16 %v920
  %v1008 = vunpack.c.l.b16 %v921
  %v1009 = vunpack.c.h.b16 %v921
  %v1010 = vunpack.c.l.b16 %v922
  %v1011 = vunpack.c.h.b16 %v922
  %v1012 = vunpack.c.l.b16 %v923
  %v1013 = vunpack.c.h.b16 %v923
  %v1014 = vunpack.c.l.b16 %v924
  %v1015 = vunpack.c.h.b16 %v924
  %v1016 = vunpack.c.l.b16 %v925
  %v1017 = vunpack.c.h.b16 %v925
  %v1018 = vunpack.c.l.b16 %v926
  %v1019 = vunpack.c.h.b16 %v926
  %v1020 = vunpack.c.l.b16 %v927
  %v1021 = vunpack.c.h.b16 %v927
  %v1022 = vunpack.c.l.b16 %v928
  %v1023 = vunpack.c.h.b16 %v928
  %v1024 = vunpack.c.l.b16 %v929
  %v1025 = vunpack.c.h.b16 %v929
  %v1026 = vunpack.c.l.b16 %v930
  %v1027 = vunpack.c.h.b16 %v930
  %v1028 = vunpack.c.l.b16 %v931
  %v1029 = vunpack.c.h.b16 %v931
  %v1030 = vunpack.c.l.b16 %v932
  %v1031 = vunpack.c.h.b16 %v932
  %v1032 = vunpack.c.l.b16 %v933
  %v1033 = vunpack.c.h.b16 %v933
  %v1034 = vunpack.c.l.b16 %v934
  %v1035 = vunpack.c.h.b16 %v934
  %v1036 = vunpack.c.l.b16 %v935
  %v1037 = vunpack.c.h.b16 %v935
  %v1038 = vunpack.c.l.b16 %v936
  %v1039 = vunpack.c.h.b16 %v936
  %v1040 = vunpack.c.l.b16 %v937
  %v1041 = vunpack.c.h.b16 %v937
  %v1042 = vpack.c.b16 %v982, %v978
  %v1043 = vpack.c.b16 %v983, %v979
  %v1044 = vpack.c.b16 %v984, %v980
  %v1045 = vpack.c.b16 %v985, %v981
  %v1046 = vpack.c.b16 %v990, %v986
  %v1047 = vpack.c.b16 %v991, %v987
  %v1048 = vpack.c.b16 %v992, %v988
  %v1049 = vpack.c.b16 %v993, %v989
  %v1050 = vpack.c.b16 %v998, %v994
  %v1051 = vpack.c.b16 %v999, %v995
  %v1052 = vpack.c.b16 %v1000, %v996
  %v1053 = vpack.c.b16 %v1001, %v997
  %v1054 = vpack.c.b16 %v1006, %v1002
  %v1055 = vpack.c.b16 %v1007, %v1003
  %v1056 = vpack.c.b16 %v1008, %v1004
  %v1057 = vpack.c.b16 %v1009, %v1005
  %v1058 = vpack.c.b16 %v1014, %v1010
  %v1059 = vpack.c.b16 %v1015, %v1011
  %v1060 = vpack.c.b16 %v1016, %v1012
  %v1061 = vpack.c.b16 %v1017, %v1013
  %v1062 = vpack.c.b16 %v1022, %v1018
  %v1063 = vpack.c.b16 %v1023, %v1019
  %v1064 = vpack.c.b16 %v1024, %v1020
  %v1065 = vpack.c.b16 %v1025, %v1021
  %v1066 = vpack.c.b16 %v1030, %v1026
  %v1067 = vpack.c.b16 %v1031, %v1027
  %v1068 = vpack.c.b16 %v1032, %v1028
  %v1069 = vpack.c.b16 %v1033, %v1029
  %v1070 = vpack.c.b16 %v1038, %v1034
  %v1071 = vpack.c.b16 %v1039, %v1035
  %v1072 = vpack.c.b16 %v1040, %v1036
  %v1073 = vpack.c.b16 %v1041, %v1037
  %1106 = vmatprep.subr.bf16.mxu0 %v1043
  %1107 = vmatpush1.bf16.msra.mxu0 %v1042
  %1108 = vmatprep.subr.bf16.mxu0 %v1047
  %1109 = vmatpush1.bf16.msra.mxu0 %v1046
  %1110 = vmatprep.subr.bf16.mxu0 %v1051
  %1111 = vmatpush1.bf16.msra.mxu0 %v1050
  %1112 = vmatprep.subr.bf16.mxu0 %v1055
  %1113 = vmatpush1.bf16.msra.mxu0 %v1054
  %1114 = vmatprep.subr.bf16.mxu0 %v1059
  %1115 = vmatpush1.bf16.msra.mxu0 %v1058
  %1116 = vmatprep.subr.bf16.mxu0 %v1063
  %1117 = vmatpush1.bf16.msra.mxu0 %v1062
  %1118 = vmatprep.subr.bf16.mxu0 %v1067
  %1119 = vmatpush1.bf16.msra.mxu0 %v1066
  %1120 = vmatprep.subr.bf16.mxu0 %v1071
  %1121 = vmatpush1.bf16.msra.mxu0 %v1070
  %1122 = vmatprep.subr.bf16.mxu0 0
  %1123 = vmatpush1.bf16.msra.mxu0 0
  %1124 = vmatprep.subr.bf16.mxu0 0
  %1125 = vmatpush1.bf16.msra.mxu0 0
  %1126 = vmatprep.subr.bf16.mxu0 0
  %1127 = vmatpush1.bf16.msra.mxu0 0
  %1128 = vmatprep.subr.bf16.mxu0 0
  %1129 = vmatpush1.bf16.msra.mxu0 0
  %1130 = vmatprep.subr.bf16.mxu0 0
  %1131 = vmatpush1.bf16.msra.mxu0 0
  %1132 = vmatprep.subr.bf16.mxu0 0
  %1133 = vmatpush1.bf16.msra.mxu0 0
  %1134 = vmatprep.subr.bf16.mxu0 0
  %1135 = vmatpush1.bf16.msra.mxu0 0
  %1136 = vmatprep.subr.bf16.mxu0 0
  %1137 = vmatpush1.bf16.msra.mxu0 0
  %1138 = vmatprep.mubr.bf16.mxu0 0
  %1139 = vmatmul.mubr.bf16.gmra.mrb[0].mxu0 0
  %v1140 = vpop.f32.mrb[0].mxu0
  %v1141 = vadd.f32 0.0, %v1140
  %v1142 = vpop.f32.mrb[0].mxu0
  %v1143 = vadd.f32 0.0, %v1142
  %v1144 = vpop.f32.mrb[0].mxu0
  %v1145 = vadd.f32 0.0, %v1144
  %v1146 = vpop.f32.mrb[0].mxu0
  %v1147 = vadd.f32 0.0, %v1146
  %1148 = vdwg.mxu0
  %1149 = vmatprep.subr.bf16.mxu0 %v1045
  %1150 = vmatpush1.bf16.msra.mxu0 %v1044
  %1151 = vmatprep.subr.bf16.mxu0 %v1049
  %1152 = vmatpush1.bf16.msra.mxu0 %v1048
  %1153 = vmatprep.subr.bf16.mxu0 %v1053
  %1154 = vmatpush1.bf16.msra.mxu0 %v1052
  %1155 = vmatprep.subr.bf16.mxu0 %v1057
  %1156 = vmatpush1.bf16.msra.mxu0 %v1056
  %1157 = vmatprep.subr.bf16.mxu0 %v1061
  %1158 = vmatpush1.bf16.msra.mxu0 %v1060
  %1159 = vmatprep.subr.bf16.mxu0 %v1065
  %1160 = vmatpush1.bf16.msra.mxu0 %v1064
  %1161 = vmatprep.subr.bf16.mxu0 %v1069
  %1162 = vmatpush1.bf16.msra.mxu0 %v1068
  %1163 = vmatprep.subr.bf16.mxu0 %v1073
  %1164 = vmatpush1.bf16.msra.mxu0 %v1072
  %1165 = vmatprep.subr.bf16.mxu0 0
  %1166 = vmatpush1.bf16.msra.mxu0 0
  %1167 = vmatprep.subr.bf16.mxu0 0
  %1168 = vmatpush1.bf16.msra.mxu0 0
  %1169 = vmatprep.subr.bf16.mxu0 0
  %1170 = vmatpush1.bf16.msra.mxu0 0
  %1171 = vmatprep.subr.bf16.mxu0 0
  %1172 = vmatpush1.bf16.msra.mxu0 0
  %1173 = vmatprep.subr.bf16.mxu0 0
  %1174 = vmatpush1.bf16.msra.mxu0 0
  %1175 = vmatprep.subr.bf16.mxu0 0
  %1176 = vmatpush1.bf16.msra.mxu0 0
  %1177 = vmatprep.subr.bf16.mxu0 0
  %1178 = vmatpush1.bf16.msra.mxu0 0
  %1179 = vmatprep.subr.bf16.mxu0 0
  %1180 = vmatpush1.bf16.msra.mxu0 0
  %1181 = vmatprep.mubr.bf16.mxu0 0
  %1182 = vmatmul.mubr.bf16.gmra.mrb[0].mxu0 0
  %v1183 = vpop.f32.mrb[0].mxu0
  %v1184 = vadd.f32 0.0, %v1183
  %v1185 = vpop.f32.mrb[0].mxu0
  %v1186 = vadd.f32 0.0, %v1185
  %v1187 = vpop.f32.mrb[0].mxu0
  %v1188 = vadd.f32 0.0, %v1187
  %v1189 = vpop.f32.mrb[0].mxu0
  %v1190 = vadd.f32 0.0, %v1189
  %1191 = vdwg.mxu0
  %v1192 = vadd.f32 %v938, %v1141
  %v1193 = vadd.f32 %v939, %v1143
  %v1194 = vadd.f32 %v940, %v1184
  %v1195 = vadd.f32 %v941, %v1186
  %v1196 = vadd.f32 %v942, %v1145
  %v1197 = vadd.f32 %v943, %v1147
  %v1198 = vadd.f32 %v944, %v1188
  %v1199 = vadd.f32 %v945, %v1190
  %v1200 = vxor.u32 %v1192, 2147483648
  %v1201 = vxor.u32 %v1193, 2147483648
  %v1202 = vxor.u32 %v1196, 2147483648
  %v1203 = vxor.u32 %v1197, 2147483648
  %v1204 = vmul.f32 %v1200, 1.442695
  %v1205 = vpow.pop %v1204
  %v1206 = vmul.f32 %v1201, 1.442695
  %v1207 = vpow.pop %v1206
  %v1208 = vmul.f32 %v1202, 1.442695
  %v1209 = vpow.pop %v1208
  %v1210 = vmul.f32 %v1203, 1.442695
  %v1211 = vpow.pop %v1210
  %v1212 = vadd.f32 %v1205, 1.0
  %v1213 = vadd.f32 %v1207, 1.0
  %v1214 = vadd.f32 %v1209, 1.0
  %v1215 = vadd.f32 %v1211, 1.0
  %v1216 = vrcp.pop %v1212
  %v1217 = vmul.f32 1.0, %v1216
  %v1218 = vrcp.pop %v1213
  %v1219 = vmul.f32 1.0, %v1218
  %v1220 = vrcp.pop %v1214
  %v1221 = vmul.f32 1.0, %v1220
  %v1222 = vrcp.pop %v1215
  %v1223 = vmul.f32 1.0, %v1222
  %v1224 = vtanh.pop %v1194
  %v1225 = vtanh.pop %v1198
  %v1226 = vxor.u32 %v1195, 2147483648
  %v1227 = vxor.u32 %v1199, 2147483648
  %v1228 = vmul.f32 %v1226, 1.442695
  %v1229 = vpow.pop %v1228
  %v1230 = vmul.f32 %v1227, 1.442695
  %v1231 = vpow.pop %v1230
  %v1232 = vadd.f32 %v1229, 1.0
  %v1233 = vadd.f32 %v1231, 1.0
  %v1234 = vrcp.pop %v1232
  %v1235 = vmul.f32 1.0, %v1234
  %v1236 = vrcp.pop %v1233
  %v1237 = vmul.f32 1.0, %v1236
  %v1238 = vmul.f32 %v1219, 0.0
  %v1239 = vmul.f32 %v1223, 0.0
  %v1240 = vmul.f32 %v1217, %v1224
  %v1241 = vmul.f32 %v1221, %v1225
  %v1242 = vadd.f32 %v1238, %v1240
  %v1243 = vadd.f32 %v1239, %v1241
  %v1244 = vtanh.pop %v1242
  %v1245 = vtanh.pop %v1243
  %v1246 = vmul.f32 %v1235, %v1244
  %v1247 = vmul.f32 %v1237, %v1245
  %s1248 = scalar_lea.vmem [#allocation2], 64
  %v1249 = vld [vmem:[%s1248] sm:$0xff]
  %v1250 = vld [vmem:[%s1248 + $0x8] sm:$0xff]
  %v1251 = vld [vmem:[%s1248 + $0x10] sm:$0xff]
  %v1252 = vld [vmem:[%s1248 + $0x18] sm:$0xff]
  %v1253 = vld [vmem:[%s1248 + $0x20] sm:$0xff]
  %v1254 = vld [vmem:[%s1248 + $0x28] sm:$0xff]
  %v1255 = vld [vmem:[%s1248 + $0x30] sm:$0xff]
  %v1256 = vld [vmem:[%s1248 + $0x38] sm:$0xff]
  %v1257 = vpack.c.bf16 %v1247, %v1246
  %1258 = vmatprep.subr.bf16.mxu0 %v1043
  %1259 = vmatpush1.bf16.msra.mxu0 %v1042
  %1260 = vmatprep.subr.bf16.mxu0 %v1047
  %1261 = vmatpush1.bf16.msra.mxu0 %v1046
  %1262 = vmatprep.subr.bf16.mxu0 %v1051
  %1263 = vmatpush1.bf16.msra.mxu0 %v1050
  %1264 = vmatprep.subr.bf16.mxu0 %v1055
  %1265 = vmatpush1.bf16.msra.mxu0 %v1054
  %1266 = vmatprep.subr.bf16.mxu0 %v1059
  %1267 = vmatpush1.bf16.msra.mxu0 %v1058
  %1268 = vmatprep.subr.bf16.mxu0 %v1063
  %1269 = vmatpush1.bf16.msra.mxu0 %v1062
  %1270 = vmatprep.subr.bf16.mxu0 %v1067
  %1271 = vmatpush1.bf16.msra.mxu0 %v1066
  %1272 = vmatprep.subr.bf16.mxu0 %v1071
  %1273 = vmatpush1.bf16.msra.mxu0 %v1070
  %1274 = vmatprep.subr.bf16.mxu0 0
  %1275 = vmatpush1.bf16.msra.mxu0 0
  %1276 = vmatprep.subr.bf16.mxu0 0
  %1277 = vmatpush1.bf16.msra.mxu0 0
  %1278 = vmatprep.subr.bf16.mxu0 0
  %1279 = vmatpush1.bf16.msra.mxu0 0
  %1280 = vmatprep.subr.bf16.mxu0 0
  %1281 = vmatpush1.bf16.msra.mxu0 0
  %1282 = vmatprep.subr.bf16.mxu0 0
  %1283 = vmatpush1.bf16.msra.mxu0 0
  %1284 = vmatprep.subr.bf16.mxu0 0
  %1285 = vmatpush1.bf16.msra.mxu0 0
  %1286 = vmatprep.subr.bf16.mxu0 0
  %1287 = vmatpush1.bf16.msra.mxu0 0
  %1288 = vmatprep.subr.bf16.mxu0 0
  %1289 = vmatpush1.bf16.msra.mxu0 0
  %1290 = vmatprep.mubr.bf16.mxu0 0
  %1291 = vmatmul.mubr.bf16.gmra.mrb[0].mxu0 %v1257
  %v1292 = vpop.f32.mrb[0].mxu0
  %v1293 = vadd.f32 0.0, %v1292
  %v1294 = vpop.f32.mrb[0].mxu0
  %v1295 = vadd.f32 0.0, %v1294
  %v1296 = vpop.f32.mrb[0].mxu0
  %v1297 = vadd.f32 0.0, %v1296
  %v1298 = vpop.f32.mrb[0].mxu0
  %v1299 = vadd.f32 0.0, %v1298
  %1300 = vdwg.mxu0
  %1301 = vmatprep.subr.bf16.mxu0 %v1045
  %1302 = vmatpush1.bf16.msra.mxu0 %v1044
  %1303 = vmatprep.subr.bf16.mxu0 %v1049
  %1304 = vmatpush1.bf16.msra.mxu0 %v1048
  %1305 = vmatprep.subr.bf16.mxu0 %v1053
  %1306 = vmatpush1.bf16.msra.mxu0 %v1052
  %1307 = vmatprep.subr.bf16.mxu0 %v1057
  %1308 = vmatpush1.bf16.msra.mxu0 %v1056
  %1309 = vmatprep.subr.bf16.mxu0 %v1061
  %1310 = vmatpush1.bf16.msra.mxu0 %v1060
  %1311 = vmatprep.subr.bf16.mxu0 %v1065
  %1312 = vmatpush1.bf16.msra.mxu0 %v1064
  %1313 = vmatprep.subr.bf16.mxu0 %v1069
  %1314 = vmatpush1.bf16.msra.mxu0 %v1068
  %1315 = vmatprep.subr.bf16.mxu0 %v1073
  %1316 = vmatpush1.bf16.msra.mxu0 %v1072
  %1317 = vmatprep.subr.bf16.mxu0 0
  %1318 = vmatpush1.bf16.msra.mxu0 0
  %1319 = vmatprep.subr.bf16.mxu0 0
  %1320 = vmatpush1.bf16.msra.mxu0 0
  %1321 = vmatprep.subr.bf16.mxu0 0
  %1322 = vmatpush1.bf16.msra.mxu0 0
  %1323 = vmatprep.subr.bf16.mxu0 0
  %1324 = vmatpush1.bf16.msra.mxu0 0
  %1325 = vmatprep.subr.bf16.mxu0 0
  %1326 = vmatpush1.bf16.msra.mxu0 0
  %1327 = vmatprep.subr.bf16.mxu0 0
  %1328 = vmatpush1.bf16.msra.mxu0 0
  %1329 = vmatprep.subr.bf16.mxu0 0
  %1330 = vmatpush1.bf16.msra.mxu0 0
  %1331 = vmatprep.subr.bf16.mxu0 0
  %1332 = vmatpush1.bf16.msra.mxu0 0
  %1333 = vmatprep.mubr.bf16.mxu0 0
  %1334 = vmatmul.mubr.bf16.gmra.mrb[0].mxu0 %v1257
  %v1335 = vpop.f32.mrb[0].mxu0
  %v1336 = vadd.f32 0.0, %v1335
  %v1337 = vpop.f32.mrb[0].mxu0
  %v1338 = vadd.f32 0.0, %v1337
  %v1339 = vpop.f32.mrb[0].mxu0
  %v1340 = vadd.f32 0.0, %v1339
  %v1341 = vpop.f32.mrb[0].mxu0
  %v1342 = vadd.f32 0.0, %v1341
  %1343 = vdwg.mxu0
  %v1344 = vadd.f32 %v1249, %v1293
  %v1345 = vadd.f32 %v1250, %v1295
  %v1346 = vadd.f32 %v1251, %v1336
  %v1347 = vadd.f32 %v1252, %v1338
  %v1348 = vadd.f32 %v1253, %v1297
  %v1349 = vadd.f32 %v1254, %v1299
  %v1350 = vadd.f32 %v1255, %v1340
  %v1351 = vadd.f32 %v1256, %v1342
  %v1352 = vxor.u32 %v1344, 2147483648
  %v1353 = vxor.u32 %v1345, 2147483648
  %v1354 = vxor.u32 %v1348, 2147483648
  %v1355 = vxor.u32 %v1349, 2147483648
  %v1356 = vmul.f32 %v1352, 1.442695
  %v1357 = vpow.pop %v1356
  %v1358 = vmul.f32 %v1353, 1.442695
  %v1359 = vpow.pop %v1358
  %v1360 = vmul.f32 %v1354, 1.442695
  %v1361 = vpow.pop %v1360
  %v1362 = vmul.f32 %v1355, 1.442695
  %v1363 = vpow.pop %v1362
  %v1364 = vadd.f32 %v1357, 1.0
  %v1365 = vadd.f32 %v1359, 1.0
  %v1366 = vadd.f32 %v1361, 1.0
  %v1367 = vadd.f32 %v1363, 1.0
  %v1368 = vrcp.pop %v1364
  %v1369 = vmul.f32 1.0, %v1368
  %v1370 = vrcp.pop %v1365
  %v1371 = vmul.f32 1.0, %v1370
  %v1372 = vrcp.pop %v1366
  %v1373 = vmul.f32 1.0, %v1372
  %v1374 = vrcp.pop %v1367
  %v1375 = vmul.f32 1.0, %v1374
  %v1376 = vtanh.pop %v1346
  %v1377 = vtanh.pop %v1350
  %v1378 = vxor.u32 %v1347, 2147483648
  %v1379 = vxor.u32 %v1351, 2147483648
  %v1380 = vmul.f32 %v1378, 1.442695
  %v1381 = vpow.pop %v1380
  %v1382 = vmul.f32 %v1379, 1.442695
  %v1383 = vpow.pop %v1382
  %v1384 = vadd.f32 %v1381, 1.0
  %v1385 = vadd.f32 %v1383, 1.0
  %v1386 = vrcp.pop %v1384
  %v1387 = vmul.f32 1.0, %v1386
  %v1388 = vrcp.pop %v1385
  %v1389 = vmul.f32 1.0, %v1388
  %v1390 = vmul.f32 %v1371, %v1242
  %v1391 = vmul.f32 %v1375, %v1243
  %v1392 = vmul.f32 %v1369, %v1376
  %v1393 = vmul.f32 %v1373, %v1377
  %v1394 = vadd.f32 %v1390, %v1392
  %v1395 = vadd.f32 %v1391, %v1393
  %v1396 = vtanh.pop %v1394
  %v1397 = vtanh.pop %v1395
  %v1398 = vmul.f32 %v1387, %v1396
  %v1399 = vmul.f32 %v1389, %v1397
  %s1400 = scalar_lea.vmem [#allocation2], 128
  %v1401 = vld [vmem:[%s1400] sm:$0xff]
  %v1402 = vld [vmem:[%s1400 + $0x8] sm:$0xff]
  %v1403 = vld [vmem:[%s1400 + $0x10] sm:$0xff]
  %v1404 = vld [vmem:[%s1400 + $0x18] sm:$0xff]
  %v1405 = vld [vmem:[%s1400 + $0x20] sm:$0xff]
  %v1406 = vld [vmem:[%s1400 + $0x28] sm:$0xff]
  %v1407 = vld [vmem:[%s1400 + $0x30] sm:$0xff]
  %v1408 = vld [vmem:[%s1400 + $0x38] sm:$0xff]
  %v1409 = vpack.c.bf16 %v1399, %v1398
  %1410 = vmatprep.subr.bf16.mxu0 %v1043
  %1411 = vmatpush1.bf16.msra.mxu0 %v1042
  %1412 = vmatprep.subr.bf16.mxu0 %v1047
  %1413 = vmatpush1.bf16.msra.mxu0 %v1046
  %1414 = vmatprep.subr.bf16.mxu0 %v1051
  %1415 = vmatpush1.bf16.msra.mxu0 %v1050
  %1416 = vmatprep.subr.bf16.mxu0 %v1055
  %1417 = vmatpush1.bf16.msra.mxu0 %v1054
  %1418 = vmatprep.subr.bf16.mxu0 %v1059
  %1419 = vmatpush1.bf16.msra.mxu0 %v1058
  %1420 = vmatprep.subr.bf16.mxu0 %v1063
  %1421 = vmatpush1.bf16.msra.mxu0 %v1062
  %1422 = vmatprep.subr.bf16.mxu0 %v1067
  %1423 = vmatpush1.bf16.msra.mxu0 %v1066
  %1424 = vmatprep.subr.bf16.mxu0 %v1071
  %1425 = vmatpush1.bf16.msra.mxu0 %v1070
  %1426 = vmatprep.subr.bf16.mxu0 0
  %1427 = vmatpush1.bf16.msra.mxu0 0
  %1428 = vmatprep.subr.bf16.mxu0 0
  %1429 = vmatpush1.bf16.msra.mxu0 0
  %1430 = vmatprep.subr.bf16.mxu0 0
  %1431 = vmatpush1.bf16.msra.mxu0 0
  %1432 = vmatprep.subr.bf16.mxu0 0
  %1433 = vmatpush1.bf16.msra.mxu0 0
  %1434 = vmatprep.subr.bf16.mxu0 0
  %1435 = vmatpush1.bf16.msra.mxu0 0
  %1436 = vmatprep.subr.bf16.mxu0 0
  %1437 = vmatpush1.bf16.msra.mxu0 0
  %1438 = vmatprep.subr.bf16.mxu0 0
  %1439 = vmatpush1.bf16.msra.mxu0 0
  %1440 = vmatprep.subr.bf16.mxu0 0
  %1441 = vmatpush1.bf16.msra.mxu0 0
  %1442 = vmatprep.mubr.bf16.mxu0 0
  %1443 = vmatmul.mubr.bf16.gmra.mrb[0].mxu0 %v1409
  %v1444 = vpop.f32.mrb[0].mxu0
  %v1445 = vadd.f32 0.0, %v1444
  %v1446 = vpop.f32.mrb[0].mxu0
  %v1447 = vadd.f32 0.0, %v1446
  %v1448 = vpop.f32.mrb[0].mxu0
  %v1449 = vadd.f32 0.0, %v1448
  %v1450 = vpop.f32.mrb[0].mxu0
  %v1451 = vadd.f32 0.0, %v1450
  %1452 = vdwg.mxu0
  %1453 = vmatprep.subr.bf16.mxu0 %v1045
  %1454 = vmatpush1.bf16.msra.mxu0 %v1044
  %1455 = vmatprep.subr.bf16.mxu0 %v1049
  %1456 = vmatpush1.bf16.msra.mxu0 %v1048
  %1457 = vmatprep.subr.bf16.mxu0 %v1053
  %1458 = vmatpush1.bf16.msra.mxu0 %v1052
  %1459 = vmatprep.subr.bf16.mxu0 %v1057
  %1460 = vmatpush1.bf16.msra.mxu0 %v1056
  %1461 = vmatprep.subr.bf16.mxu0 %v1061
  %1462 = vmatpush1.bf16.msra.mxu0 %v1060
  %1463 = vmatprep.subr.bf16.mxu0 %v1065
  %1464 = vmatpush1.bf16.msra.mxu0 %v1064
  %1465 = vmatprep.subr.bf16.mxu0 %v1069
  %1466 = vmatpush1.bf16.msra.mxu0 %v1068
  %1467 = vmatprep.subr.bf16.mxu0 %v1073
  %1468 = vmatpush1.bf16.msra.mxu0 %v1072
  %1469 = vmatprep.subr.bf16.mxu0 0
  %1470 = vmatpush1.bf16.msra.mxu0 0
  %1471 = vmatprep.subr.bf16.mxu0 0
  %1472 = vmatpush1.bf16.msra.mxu0 0
  %1473 = vmatprep.subr.bf16.mxu0 0
  %1474 = vmatpush1.bf16.msra.mxu0 0
  %1475 = vmatprep.subr.bf16.mxu0 0
  %1476 = vmatpush1.bf16.msra.mxu0 0
  %1477 = vmatprep.subr.bf16.mxu0 0
  %1478 = vmatpush1.bf16.msra.mxu0 0
  %1479 = vmatprep.subr.bf16.mxu0 0
  %1480 = vmatpush1.bf16.msra.mxu0 0
  %1481 = vmatprep.subr.bf16.mxu0 0
  %1482 = vmatpush1.bf16.msra.mxu0 0
  %1483 = vmatprep.subr.bf16.mxu0 0
  %1484 = vmatpush1.bf16.msra.mxu0 0
  %1485 = vmatprep.mubr.bf16.mxu0 0
  %1486 = vmatmul.mubr.bf16.gmra.mrb[0].mxu0 %v1409
  %v1487 = vpop.f32.mrb[0].mxu0
  %v1488 = vadd.f32 0.0, %v1487
  %v1489 = vpop.f32.mrb[0].mxu0
  %v1490 = vadd.f32 0.0, %v1489
  %v1491 = vpop.f32.mrb[0].mxu0
  %v1492 = vadd.f32 0.0, %v1491
  %v1493 = vpop.f32.mrb[0].mxu0
  %v1494 = vadd.f32 0.0, %v1493
  %1495 = vdwg.mxu0
  %v1496 = vadd.f32 %v1401, %v1445
  %v1497 = vadd.f32 %v1402, %v1447
  %v1498 = vadd.f32 %v1403, %v1488
  %v1499 = vadd.f32 %v1404, %v1490
  %v1500 = vadd.f32 %v1405, %v1449
  %v1501 = vadd.f32 %v1406, %v1451
  %v1502 = vadd.f32 %v1407, %v1492
  %v1503 = vadd.f32 %v1408, %v1494
  %v1504 = vxor.u32 %v1496, 2147483648
  %v1505 = vxor.u32 %v1497, 2147483648
  %v1506 = vxor.u32 %v1500, 2147483648
  %v1507 = vxor.u32 %v1501, 2147483648
  %v1508 = vmul.f32 %v1504, 1.442695
  %v1509 = vpow.pop %v1508
  %v1510 = vmul.f32 %v1505, 1.442695
  %v1511 = vpow.pop %v1510
  %v1512 = vmul.f32 %v1506, 1.442695
  %v1513 = vpow.pop %v1512
  %v1514 = vmul.f32 %v1507, 1.442695
  %v1515 = vpow.pop %v1514
  %v1516 = vadd.f32 %v1509, 1.0
  %v1517 = vadd.f32 %v1511, 1.0
  %v1518 = vadd.f32 %v1513, 1.0
  %v1519 = vadd.f32 %v1515, 1.0
  %v1520 = vrcp.pop %v1516
  %v1521 = vmul.f32 1.0, %v1520
  %v1522 = vrcp.pop %v1517
  %v1523 = vmul.f32 1.0, %v1522
  %v1524 = vrcp.pop %v1518
  %v1525 = vmul.f32 1.0, %v1524
  %v1526 = vrcp.pop %v1519
  %v1527 = vmul.f32 1.0, %v1526
  %v1528 = vtanh.pop %v1498
  %v1529 = vtanh.pop %v1502
  %v1530 = vxor.u32 %v1499, 2147483648
  %v1531 = vxor.u32 %v1503, 2147483648
  %v1532 = vmul.f32 %v1530, 1.442695
  %v1533 = vpow.pop %v1532
  %v1534 = vmul.f32 %v1531, 1.442695
  %v1535 = vpow.pop %v1534
  %v1536 = vadd.f32 %v1533, 1.0
  %v1537 = vadd.f32 %v1535, 1.0
  %v1538 = vrcp.pop %v1536
  %v1539 = vmul.f32 1.0, %v1538
  %v1540 = vrcp.pop %v1537
  %v1541 = vmul.f32 1.0, %v1540
  %v1542 = vmul.f32 %v1523, %v1394
  %v1543 = vmul.f32 %v1527, %v1395
  %v1544 = vmul.f32 %v1521, %v1528
  %v1545 = vmul.f32 %v1525, %v1529
  %v1546 = vadd.f32 %v1542, %v1544
  %v1547 = vadd.f32 %v1543, %v1545
  %v1548 = vtanh.pop %v1546
  %v1549 = vtanh.pop %v1547
  %v1550 = vmul.f32 %v1539, %v1548
  %v1551 = vmul.f32 %v1541, %v1549
  %s1552 = scalar_lea.vmem [#allocation2], 192
  %v1553 = vld [vmem:[%s1552] sm:$0xff]
  %v1554 = vld [vmem:[%s1552 + $0x8] sm:$0xff]
  %v1555 = vld [vmem:[%s1552 + $0x10] sm:$0xff]
  %v1556 = vld [vmem:[%s1552 + $0x18] sm:$0xff]
  %v1557 = vld [vmem:[%s1552 + $0x20] sm:$0xff]
  %v1558 = vld [vmem:[%s1552 + $0x28] sm:$0xff]
  %v1559 = vld [vmem:[%s1552 + $0x30] sm:$0xff]
  %v1560 = vld [vmem:[%s1552 + $0x38] sm:$0xff]
  %v1561 = vpack.c.bf16 %v1551, %v1550
  %1562 = vmatprep.subr.bf16.mxu0 %v1043
  %1563 = vmatpush1.bf16.msra.mxu0 %v1042
  %1564 = vmatprep.subr.bf16.mxu0 %v1047
  %1565 = vmatpush1.bf16.msra.mxu0 %v1046
  %1566 = vmatprep.subr.bf16.mxu0 %v1051
  %1567 = vmatpush1.bf16.msra.mxu0 %v1050
  %1568 = vmatprep.subr.bf16.mxu0 %v1055
  %1569 = vmatpush1.bf16.msra.mxu0 %v1054
  %1570 = vmatprep.subr.bf16.mxu0 %v1059
  %1571 = vmatpush1.bf16.msra.mxu0 %v1058
  %1572 = vmatprep.subr.bf16.mxu0 %v1063
  %1573 = vmatpush1.bf16.msra.mxu0 %v1062
  %1574 = vmatprep.subr.bf16.mxu0 %v1067
  %1575 = vmatpush1.bf16.msra.mxu0 %v1066
  %1576 = vmatprep.subr.bf16.mxu0 %v1071
  %1577 = vmatpush1.bf16.msra.mxu0 %v1070
  %1578 = vmatprep.subr.bf16.mxu0 0
  %1579 = vmatpush1.bf16.msra.mxu0 0
  %1580 = vmatprep.subr.bf16.mxu0 0
  %1581 = vmatpush1.bf16.msra.mxu0 0
  %1582 = vmatprep.subr.bf16.mxu0 0
  %1583 = vmatpush1.bf16.msra.mxu0 0
  %1584 = vmatprep.subr.bf16.mxu0 0
  %1585 = vmatpush1.bf16.msra.mxu0 0
  %1586 = vmatprep.subr.bf16.mxu0 0
  %1587 = vmatpush1.bf16.msra.mxu0 0
  %1588 = vmatprep.subr.bf16.mxu0 0
  %1589 = vmatpush1.bf16.msra.mxu0 0
  %1590 = vmatprep.subr.bf16.mxu0 0
  %1591 = vmatpush1.bf16.msra.mxu0 0
  %1592 = vmatprep.subr.bf16.mxu0 0
  %1593 = vmatpush1.bf16.msra.mxu0 0
  %1594 = vmatprep.mubr.bf16.mxu0 0
  %1595 = vmatmul.mubr.bf16.gmra.mrb[0].mxu0 %v1561
  %v1596 = vpop.f32.mrb[0].mxu0
  %v1597 = vadd.f32 0.0, %v1596
  %v1598 = vpop.f32.mrb[0].mxu0
  %v1599 = vadd.f32 0.0, %v1598
  %v1600 = vpop.f32.mrb[0].mxu0
  %v1601 = vadd.f32 0.0, %v1600
  %v1602 = vpop.f32.mrb[0].mxu0
  %v1603 = vadd.f32 0.0, %v1602
  %1604 = vdwg.mxu0
  %1605 = vmatprep.subr.bf16.mxu0 %v1045
  %1606 = vmatpush1.bf16.msra.mxu0 %v1044
  %1607 = vmatprep.subr.bf16.mxu0 %v1049
  %1608 = vmatpush1.bf16.msra.mxu0 %v1048
  %1609 = vmatprep.subr.bf16.mxu0 %v1053
  %1610 = vmatpush1.bf16.msra.mxu0 %v1052
  %1611 = vmatprep.subr.bf16.mxu0 %v1057
  %1612 = vmatpush1.bf16.msra.mxu0 %v1056
  %1613 = vmatprep.subr.bf16.mxu0 %v1061
  %1614 = vmatpush1.bf16.msra.mxu0 %v1060
  %1615 = vmatprep.subr.bf16.mxu0 %v1065
  %1616 = vmatpush1.bf16.msra.mxu0 %v1064
  %1617 = vmatprep.subr.bf16.mxu0 %v1069
  %1618 = vmatpush1.bf16.msra.mxu0 %v1068
  %1619 = vmatprep.subr.bf16.mxu0 %v1073
  %1620 = vmatpush1.bf16.msra.mxu0 %v1072
  %1621 = vmatprep.subr.bf16.mxu0 0
  %1622 = vmatpush1.bf16.msra.mxu0 0
  %1623 = vmatprep.subr.bf16.mxu0 0
  %1624 = vmatpush1.bf16.msra.mxu0 0
  %1625 = vmatprep.subr.bf16.mxu0 0
  %1626 = vmatpush1.bf16.msra.mxu0 0
  %1627 = vmatprep.subr.bf16.mxu0 0
  %1628 = vmatpush1.bf16.msra.mxu0 0
  %1629 = vmatprep.subr.bf16.mxu0 0
  %1630 = vmatpush1.bf16.msra.mxu0 0
  %1631 = vmatprep.subr.bf16.mxu0 0
  %1632 = vmatpush1.bf16.msra.mxu0 0
  %1633 = vmatprep.subr.bf16.mxu0 0
  %1634 = vmatpush1.bf16.msra.mxu0 0
  %1635 = vmatprep.subr.bf16.mxu0 0
  %1636 = vmatpush1.bf16.msra.mxu0 0
  %1637 = vmatprep.mubr.bf16.mxu0 0
  %1638 = vmatmul.mubr.bf16.gmra.mrb[0].mxu0 %v1561
  %v1639 = vpop.f32.mrb[0].mxu0
  %v1640 = vadd.f32 0.0, %v1639
  %v1641 = vpop.f32.mrb[0].mxu0
  %v1642 = vadd.f32 0.0, %v1641
  %v1643 = vpop.f32.mrb[0].mxu0
  %v1644 = vadd.f32 0.0, %v1643
  %v1645 = vpop.f32.mrb[0].mxu0
  %v1646 = vadd.f32 0.0, %v1645
  %1647 = vdwg.mxu0
  %v1648 = vadd.f32 %v1553, %v1597
  %v1649 = vadd.f32 %v1554, %v1599
  %v1650 = vadd.f32 %v1555, %v1640
  %v1651 = vadd.f32 %v1556, %v1642
  %v1652 = vadd.f32 %v1557, %v1601
  %v1653 = vadd.f32 %v1558, %v1603
  %v1654 = vadd.f32 %v1559, %v1644
  %v1655 = vadd.f32 %v1560, %v1646
  %v1656 = vxor.u32 %v1648, 2147483648
  %v1657 = vxor.u32 %v1649, 2147483648
  %v1658 = vxor.u32 %v1652, 2147483648
  %v1659 = vxor.u32 %v1653, 2147483648
  %v1660 = vmul.f32 %v1656, 1.442695
  %v1661 = vpow.pop %v1660
  %v1662 = vmul.f32 %v1657, 1.442695
  %v1663 = vpow.pop %v1662
  %v1664 = vmul.f32 %v1658, 1.442695
  %v1665 = vpow.pop %v1664
  %v1666 = vmul.f32 %v1659, 1.442695
  %v1667 = vpow.pop %v1666
  %v1668 = vadd.f32 %v1661, 1.0
  %v1669 = vadd.f32 %v1663, 1.0
  %v1670 = vadd.f32 %v1665, 1.0
  %v1671 = vadd.f32 %v1667, 1.0
  %v1672 = vrcp.pop %v1668
  %v1673 = vmul.f32 1.0, %v1672
  %v1674 = vrcp.pop %v1669
  %v1675 = vmul.f32 1.0, %v1674
  %v1676 = vrcp.pop %v1670
  %v1677 = vmul.f32 1.0, %v1676
  %v1678 = vrcp.pop %v1671
  %v1679 = vmul.f32 1.0, %v1678
  %v1680 = vtanh.pop %v1650
  %v1681 = vtanh.pop %v1654
  %v1682 = vxor.u32 %v1651, 2147483648
  %v1683 = vxor.u32 %v1655, 2147483648
  %v1684 = vmul.f32 %v1682, 1.442695
  %v1685 = vpow.pop %v1684
  %v1686 = vmul.f32 %v1683, 1.442695
  %v1687 = vpow.pop %v1686
  %v1688 = vadd.f32 %v1685, 1.0
  %v1689 = vadd.f32 %v1687, 1.0
  %v1690 = vrcp.pop %v1688
  %v1691 = vmul.f32 1.0, %v1690
  %v1692 = vrcp.pop %v1689
  %v1693 = vmul.f32 1.0, %v1692
  %v1694 = vmul.f32 %v1675, %v1546
  %v1695 = vmul.f32 %v1679, %v1547
  %v1696 = vmul.f32 %v1673, %v1680
  %v1697 = vmul.f32 %v1677, %v1681
  %v1698 = vadd.f32 %v1694, %v1696
  %v1699 = vadd.f32 %v1695, %v1697
  %v1700 = vtanh.pop %v1698
  %v1701 = vtanh.pop %v1699
  %v1702 = vmul.f32 %v1691, %v1700
  %v1703 = vmul.f32 %v1693, %v1701
  %s1704 = scalar_lea.vmem [#allocation2], 256
  %v1705 = vld [vmem:[%s1704] sm:$0xff]
  %v1706 = vld [vmem:[%s1704 + $0x8] sm:$0xff]
  %v1707 = vld [vmem:[%s1704 + $0x10] sm:$0xff]
  %v1708 = vld [vmem:[%s1704 + $0x18] sm:$0xff]
  %v1709 = vld [vmem:[%s1704 + $0x20] sm:$0xff]
  %v1710 = vld [vmem:[%s1704 + $0x28] sm:$0xff]
  %v1711 = vld [vmem:[%s1704 + $0x30] sm:$0xff]
  %v1712 = vld [vmem:[%s1704 + $0x38] sm:$0xff]
  %v1713 = vpack.c.bf16 %v1703, %v1702
  %1714 = vmatprep.subr.bf16.mxu0 %v1043
  %1715 = vmatpush1.bf16.msra.mxu0 %v1042
  %1716 = vmatprep.subr.bf16.mxu0 %v1047
  %1717 = vmatpush1.bf16.msra.mxu0 %v1046
  %1718 = vmatprep.subr.bf16.mxu0 %v1051
  %1719 = vmatpush1.bf16.msra.mxu0 %v1050
  %1720 = vmatprep.subr.bf16.mxu0 %v1055
  %1721 = vmatpush1.bf16.msra.mxu0 %v1054
  %1722 = vmatprep.subr.bf16.mxu0 %v1059
  %1723 = vmatpush1.bf16.msra.mxu0 %v1058
  %1724 = vmatprep.subr.bf16.mxu0 %v1063
  %1725 = vmatpush1.bf16.msra.mxu0 %v1062
  %1726 = vmatprep.subr.bf16.mxu0 %v1067
  %1727 = vmatpush1.bf16.msra.mxu0 %v1066
  %1728 = vmatprep.subr.bf16.mxu0 %v1071
  %1729 = vmatpush1.bf16.msra.mxu0 %v1070
  %1730 = vmatprep.subr.bf16.mxu0 0
  %1731 = vmatpush1.bf16.msra.mxu0 0
  %1732 = vmatprep.subr.bf16.mxu0 0
  %1733 = vmatpush1.bf16.msra.mxu0 0
  %1734 = vmatprep.subr.bf16.mxu0 0
  %1735 = vmatpush1.bf16.msra.mxu0 0
  %1736 = vmatprep.subr.bf16.mxu0 0
  %1737 = vmatpush1.bf16.msra.mxu0 0
  %1738 = vmatprep.subr.bf16.mxu0 0
  %1739 = vmatpush1.bf16.msra.mxu0 0
  %1740 = vmatprep.subr.bf16.mxu0 0
  %1741 = vmatpush1.bf16.msra.mxu0 0
  %1742 = vmatprep.subr.bf16.mxu0 0
  %1743 = vmatpush1.bf16.msra.mxu0 0
  %1744 = vmatprep.subr.bf16.mxu0 0
  %1745 = vmatpush1.bf16.msra.mxu0 0
  %1746 = vmatprep.mubr.bf16.mxu0 0
  %1747 = vmatmul.mubr.bf16.gmra.mrb[0].mxu0 %v1713
  %v1748 = vpop.f32.mrb[0].mxu0
  %v1749 = vadd.f32 0.0, %v1748
  %v1750 = vpop.f32.mrb[0].mxu0
  %v1751 = vadd.f32 0.0, %v1750
  %v1752 = vpop.f32.mrb[0].mxu0
  %v1753 = vadd.f32 0.0, %v1752
  %v1754 = vpop.f32.mrb[0].mxu0
  %v1755 = vadd.f32 0.0, %v1754
  %1756 = vdwg.mxu0
  %1757 = vmatprep.subr.bf16.mxu0 %v1045
  %1758 = vmatpush1.bf16.msra.mxu0 %v1044
  %1759 = vmatprep.subr.bf16.mxu0 %v1049
  %1760 = vmatpush1.bf16.msra.mxu0 %v1048
  %1761 = vmatprep.subr.bf16.mxu0 %v1053
  %1762 = vmatpush1.bf16.msra.mxu0 %v1052
  %1763 = vmatprep.subr.bf16.mxu0 %v1057
  %1764 = vmatpush1.bf16.msra.mxu0 %v1056
  %1765 = vmatprep.subr.bf16.mxu0 %v1061
  %1766 = vmatpush1.bf16.msra.mxu0 %v1060
  %1767 = vmatprep.subr.bf16.mxu0 %v1065
  %1768 = vmatpush1.bf16.msra.mxu0 %v1064
  %1769 = vmatprep.subr.bf16.mxu0 %v1069
  %1770 = vmatpush1.bf16.msra.mxu0 %v1068
  %1771 = vmatprep.subr.bf16.mxu0 %v1073
  %1772 = vmatpush1.bf16.msra.mxu0 %v1072
  %1773 = vmatprep.subr.bf16.mxu0 0
  %1774 = vmatpush1.bf16.msra.mxu0 0
  %1775 = vmatprep.subr.bf16.mxu0 0
  %1776 = vmatpush1.bf16.msra.mxu0 0
  %1777 = vmatprep.subr.bf16.mxu0 0
  %1778 = vmatpush1.bf16.msra.mxu0 0
  %1779 = vmatprep.subr.bf16.mxu0 0
  %1780 = vmatpush1.bf16.msra.mxu0 0
  %1781 = vmatprep.subr.bf16.mxu0 0
  %1782 = vmatpush1.bf16.msra.mxu0 0
  %1783 = vmatprep.subr.bf16.mxu0 0
  %1784 = vmatpush1.bf16.msra.mxu0 0
  %1785 = vmatprep.subr.bf16.mxu0 0
  %1786 = vmatpush1.bf16.msra.mxu0 0
  %1787 = vmatprep.subr.bf16.mxu0 0
  %1788 = vmatpush1.bf16.msra.mxu0 0
  %1789 = vmatprep.mubr.bf16.mxu0 0
  %1790 = vmatmul.mubr.bf16.gmra.mrb[0].mxu0 %v1713
  %v1791 = vpop.f32.mrb[0].mxu0
  %v1792 = vadd.f32 0.0, %v1791
  %v1793 = vpop.f32.mrb[0].mxu0
  %v1794 = vadd.f32 0.0, %v1793
  %v1795 = vpop.f32.mrb[0].mxu0
  %v1796 = vadd.f32 0.0, %v1795
  %v1797 = vpop.f32.mrb[0].mxu0
  %v1798 = vadd.f32 0.0, %v1797
  %1799 = vdwg.mxu0
  %v1800 = vadd.f32 %v1705, %v1749
  %v1801 = vadd.f32 %v1706, %v1751
  %v1802 = vadd.f32 %v1707, %v1792
  %v1803 = vadd.f32 %v1708, %v1794
  %v1804 = vadd.f32 %v1709, %v1753
  %v1805 = vadd.f32 %v1710, %v1755
  %v1806 = vadd.f32 %v1711, %v1796
  %v1807 = vadd.f32 %v1712, %v1798
  %v1808 = vxor.u32 %v1800, 2147483648
  %v1809 = vxor.u32 %v1801, 2147483648
  %v1810 = vxor.u32 %v1804, 2147483648
  %v1811 = vxor.u32 %v1805, 2147483648
  %v1812 = vmul.f32 %v1808, 1.442695
  %v1813 = vpow.pop %v1812
  %v1814 = vmul.f32 %v1809, 1.442695
  %v1815 = vpow.pop %v1814
  %v1816 = vmul.f32 %v1810, 1.442695
  %v1817 = vpow.pop %v1816
  %v1818 = vmul.f32 %v1811, 1.442695
  %v1819 = vpow.pop %v1818
  %v1820 = vadd.f32 %v1813, 1.0
  %v1821 = vadd.f32 %v1815, 1.0
  %v1822 = vadd.f32 %v1817, 1.0
  %v1823 = vadd.f32 %v1819, 1.0
  %v1824 = vrcp.pop %v1820
  %v1825 = vmul.f32 1.0, %v1824
  %v1826 = vrcp.pop %v1821
  %v1827 = vmul.f32 1.0, %v1826
  %v1828 = vrcp.pop %v1822
  %v1829 = vmul.f32 1.0, %v1828
  %v1830 = vrcp.pop %v1823
  %v1831 = vmul.f32 1.0, %v1830
  %v1832 = vtanh.pop %v1802
  %v1833 = vtanh.pop %v1806
  %v1834 = vxor.u32 %v1803, 2147483648
  %v1835 = vxor.u32 %v1807, 2147483648
  %v1836 = vmul.f32 %v1834, 1.442695
  %v1837 = vpow.pop %v1836
  %v1838 = vmul.f32 %v1835, 1.442695
  %v1839 = vpow.pop %v1838
  %v1840 = vadd.f32 %v1837, 1.0
  %v1841 = vadd.f32 %v1839, 1.0
  %v1842 = vrcp.pop %v1840
  %v1843 = vmul.f32 1.0, %v1842
  %v1844 = vrcp.pop %v1841
  %v1845 = vmul.f32 1.0, %v1844
  %v1846 = vmul.f32 %v1827, %v1698
  %v1847 = vmul.f32 %v1831, %v1699
  %v1848 = vmul.f32 %v1825, %v1832
  %v1849 = vmul.f32 %v1829, %v1833
  %v1850 = vadd.f32 %v1846, %v1848
  %v1851 = vadd.f32 %v1847, %v1849
  %v1852 = vtanh.pop %v1850
  %v1853 = vtanh.pop %v1851
  %v1854 = vmul.f32 %v1843, %v1852
  %v1855 = vmul.f32 %v1845, %v1853
  %s1856 = scalar_lea.vmem [#allocation2], 320
  %v1857 = vld [vmem:[%s1856] sm:$0xff]
  %v1858 = vld [vmem:[%s1856 + $0x8] sm:$0xff]
  %v1859 = vld [vmem:[%s1856 + $0x10] sm:$0xff]
  %v1860 = vld [vmem:[%s1856 + $0x18] sm:$0xff]
  %v1861 = vld [vmem:[%s1856 + $0x20] sm:$0xff]
  %v1862 = vld [vmem:[%s1856 + $0x28] sm:$0xff]
  %v1863 = vld [vmem:[%s1856 + $0x30] sm:$0xff]
  %v1864 = vld [vmem:[%s1856 + $0x38] sm:$0xff]
  %v1865 = vpack.c.bf16 %v1855, %v1854
  %1866 = vmatprep.subr.bf16.mxu0 %v1043
  %1867 = vmatpush1.bf16.msra.mxu0 %v1042
  %1868 = vmatprep.subr.bf16.mxu0 %v1047
  %1869 = vmatpush1.bf16.msra.mxu0 %v1046
  %1870 = vmatprep.subr.bf16.mxu0 %v1051
  %1871 = vmatpush1.bf16.msra.mxu0 %v1050
  %1872 = vmatprep.subr.bf16.mxu0 %v1055
  %1873 = vmatpush1.bf16.msra.mxu0 %v1054
  %1874 = vmatprep.subr.bf16.mxu0 %v1059
  %1875 = vmatpush1.bf16.msra.mxu0 %v1058
  %1876 = vmatprep.subr.bf16.mxu0 %v1063
  %1877 = vmatpush1.bf16.msra.mxu0 %v1062
  %1878 = vmatprep.subr.bf16.mxu0 %v1067
  %1879 = vmatpush1.bf16.msra.mxu0 %v1066
  %1880 = vmatprep.subr.bf16.mxu0 %v1071
  %1881 = vmatpush1.bf16.msra.mxu0 %v1070
  %1882 = vmatprep.subr.bf16.mxu0 0
  %1883 = vmatpush1.bf16.msra.mxu0 0
  %1884 = vmatprep.subr.bf16.mxu0 0
  %1885 = vmatpush1.bf16.msra.mxu0 0
  %1886 = vmatprep.subr.bf16.mxu0 0
  %1887 = vmatpush1.bf16.msra.mxu0 0
  %1888 = vmatprep.subr.bf16.mxu0 0
  %1889 = vmatpush1.bf16.msra.mxu0 0
  %1890 = vmatprep.subr.bf16.mxu0 0
  %1891 = vmatpush1.bf16.msra.mxu0 0
  %1892 = vmatprep.subr.bf16.mxu0 0
  %1893 = vmatpush1.bf16.msra.mxu0 0
  %1894 = vmatprep.subr.bf16.mxu0 0
  %1895 = vmatpush1.bf16.msra.mxu0 0
  %1896 = vmatprep.subr.bf16.mxu0 0
  %1897 = vmatpush1.bf16.msra.mxu0 0
  %1898 = vmatprep.mubr.bf16.mxu0 0
  %1899 = vmatmul.mubr.bf16.gmra.mrb[0].mxu0 %v1865
  %v1900 = vpop.f32.mrb[0].mxu0
  %v1901 = vadd.f32 0.0, %v1900
  %v1902 = vpop.f32.mrb[0].mxu0
  %v1903 = vadd.f32 0.0, %v1902
  %v1904 = vpop.f32.mrb[0].mxu0
  %v1905 = vadd.f32 0.0, %v1904
  %v1906 = vpop.f32.mrb[0].mxu0
  %v1907 = vadd.f32 0.0, %v1906
  %1908 = vdwg.mxu0
  %1909 = vmatprep.subr.bf16.mxu0 %v1045
  %1910 = vmatpush1.bf16.msra.mxu0 %v1044
  %1911 = vmatprep.subr.bf16.mxu0 %v1049
  %1912 = vmatpush1.bf16.msra.mxu0 %v1048
  %1913 = vmatprep.subr.bf16.mxu0 %v1053
  %1914 = vmatpush1.bf16.msra.mxu0 %v1052
  %1915 = vmatprep.subr.bf16.mxu0 %v1057
  %1916 = vmatpush1.bf16.msra.mxu0 %v1056
  %1917 = vmatprep.subr.bf16.mxu0 %v1061
  %1918 = vmatpush1.bf16.msra.mxu0 %v1060
  %1919 = vmatprep.subr.bf16.mxu0 %v1065
  %1920 = vmatpush1.bf16.msra.mxu0 %v1064
  %1921 = vmatprep.subr.bf16.mxu0 %v1069
  %1922 = vmatpush1.bf16.msra.mxu0 %v1068
  %1923 = vmatprep.subr.bf16.mxu0 %v1073
  %1924 = vmatpush1.bf16.msra.mxu0 %v1072
  %1925 = vmatprep.subr.bf16.mxu0 0
  %1926 = vmatpush1.bf16.msra.mxu0 0
  %1927 = vmatprep.subr.bf16.mxu0 0
  %1928 = vmatpush1.bf16.msra.mxu0 0
  %1929 = vmatprep.subr.bf16.mxu0 0
  %1930 = vmatpush1.bf16.msra.mxu0 0
  %1931 = vmatprep.subr.bf16.mxu0 0
  %1932 = vmatpush1.bf16.msra.mxu0 0
  %1933 = vmatprep.subr.bf16.mxu0 0
  %1934 = vmatpush1.bf16.msra.mxu0 0
  %1935 = vmatprep.subr.bf16.mxu0 0
  %1936 = vmatpush1.bf16.msra.mxu0 0
  %1937 = vmatprep.subr.bf16.mxu0 0
  %1938 = vmatpush1.bf16.msra.mxu0 0
  %1939 = vmatprep.subr.bf16.mxu0 0
  %1940 = vmatpush1.bf16.msra.mxu0 0
  %1941 = vmatprep.mubr.bf16.mxu0 0
  %1942 = vmatmul.mubr.bf16.gmra.mrb[0].mxu0 %v1865
  %v1943 = vpop.f32.mrb[0].mxu0
  %v1944 = vadd.f32 0.0, %v1943
  %v1945 = vpop.f32.mrb[0].mxu0
  %v1946 = vadd.f32 0.0, %v1945
  %v1947 = vpop.f32.mrb[0].mxu0
  %v1948 = vadd.f32 0.0, %v1947
  %v1949 = vpop.f32.mrb[0].mxu0
  %v1950 = vadd.f32 0.0, %v1949
  %1951 = vdwg.mxu0
  %v1952 = vadd.f32 %v1857, %v1901
  %v1953 = vadd.f32 %v1858, %v1903
  %v1954 = vadd.f32 %v1859, %v1944
  %v1955 = vadd.f32 %v1860, %v1946
  %v1956 = vadd.f32 %v1861, %v1905
  %v1957 = vadd.f32 %v1862, %v1907
  %v1958 = vadd.f32 %v1863, %v1948
  %v1959 = vadd.f32 %v1864, %v1950
  %v1960 = vxor.u32 %v1952, 2147483648
  %v1961 = vxor.u32 %v1953, 2147483648
  %v1962 = vxor.u32 %v1956, 2147483648
  %v1963 = vxor.u32 %v1957, 2147483648
  %v1964 = vmul.f32 %v1960, 1.442695
  %v1965 = vpow.pop %v1964
  %v1966 = vmul.f32 %v1961, 1.442695
  %v1967 = vpow.pop %v1966
  %v1968 = vmul.f32 %v1962, 1.442695
  %v1969 = vpow.pop %v1968
  %v1970 = vmul.f32 %v1963, 1.442695
  %v1971 = vpow.pop %v1970
  %v1972 = vadd.f32 %v1965, 1.0
  %v1973 = vadd.f32 %v1967, 1.0
  %v1974 = vadd.f32 %v1969, 1.0
  %v1975 = vadd.f32 %v1971, 1.0
  %v1976 = vrcp.pop %v1972
  %v1977 = vmul.f32 1.0, %v1976
  %v1978 = vrcp.pop %v1973
  %v1979 = vmul.f32 1.0, %v1978
  %v1980 = vrcp.pop %v1974
  %v1981 = vmul.f32 1.0, %v1980
  %v1982 = vrcp.pop %v1975
  %v1983 = vmul.f32 1.0, %v1982
  %v1984 = vtanh.pop %v1954
  %v1985 = vtanh.pop %v1958
  %v1986 = vxor.u32 %v1955, 2147483648
  %v1987 = vxor.u32 %v1959, 2147483648
  %v1988 = vmul.f32 %v1986, 1.442695
  %v1989 = vpow.pop %v1988
  %v1990 = vmul.f32 %v1987, 1.442695
  %v1991 = vpow.pop %v1990
  %v1992 = vadd.f32 %v1989, 1.0
  %v1993 = vadd.f32 %v1991, 1.0
  %v1994 = vrcp.pop %v1992
  %v1995 = vmul.f32 1.0, %v1994
  %v1996 = vrcp.pop %v1993
  %v1997 = vmul.f32 1.0, %v1996
  %v1998 = vmul.f32 %v1979, %v1850
  %v1999 = vmul.f32 %v1983, %v1851
  %v2000 = vmul.f32 %v1977, %v1984
  %v2001 = vmul.f32 %v1981, %v1985
  %v2002 = vadd.f32 %v1998, %v2000
  %v2003 = vadd.f32 %v1999, %v2001
  %v2004 = vtanh.pop %v2002
  %v2005 = vtanh.pop %v2003
  %v2006 = vmul.f32 %v1995, %v2004
  %v2007 = vmul.f32 %v1997, %v2005
  %s2008 = scalar_lea.vmem [#allocation2], 384
  %v2009 = vld [vmem:[%s2008] sm:$0xff]
  %v2010 = vld [vmem:[%s2008 + $0x8] sm:$0xff]
  %v2011 = vld [vmem:[%s2008 + $0x10] sm:$0xff]
  %v2012 = vld [vmem:[%s2008 + $0x18] sm:$0xff]
  %v2013 = vld [vmem:[%s2008 + $0x20] sm:$0xff]
  %v2014 = vld [vmem:[%s2008 + $0x28] sm:$0xff]
  %v2015 = vld [vmem:[%s2008 + $0x30] sm:$0xff]
  %v2016 = vld [vmem:[%s2008 + $0x38] sm:$0xff]
  %v2017 = vpack.c.bf16 %v2007, %v2006
  %2018 = vmatprep.subr.bf16.mxu0 %v1043
  %2019 = vmatpush1.bf16.msra.mxu0 %v1042
  %2020 = vmatprep.subr.bf16.mxu0 %v1047
  %2021 = vmatpush1.bf16.msra.mxu0 %v1046
  %2022 = vmatprep.subr.bf16.mxu0 %v1051
  %2023 = vmatpush1.bf16.msra.mxu0 %v1050
  %2024 = vmatprep.subr.bf16.mxu0 %v1055
  %2025 = vmatpush1.bf16.msra.mxu0 %v1054
  %2026 = vmatprep.subr.bf16.mxu0 %v1059
  %2027 = vmatpush1.bf16.msra.mxu0 %v1058
  %2028 = vmatprep.subr.bf16.mxu0 %v1063
  %2029 = vmatpush1.bf16.msra.mxu0 %v1062
  %2030 = vmatprep.subr.bf16.mxu0 %v1067
  %2031 = vmatpush1.bf16.msra.mxu0 %v1066
  %2032 = vmatprep.subr.bf16.mxu0 %v1071
  %2033 = vmatpush1.bf16.msra.mxu0 %v1070
  %2034 = vmatprep.subr.bf16.mxu0 0
  %2035 = vmatpush1.bf16.msra.mxu0 0
  %2036 = vmatprep.subr.bf16.mxu0 0
  %2037 = vmatpush1.bf16.msra.mxu0 0
  %2038 = vmatprep.subr.bf16.mxu0 0
  %2039 = vmatpush1.bf16.msra.mxu0 0
  %2040 = vmatprep.subr.bf16.mxu0 0
  %2041 = vmatpush1.bf16.msra.mxu0 0
  %2042 = vmatprep.subr.bf16.mxu0 0
  %2043 = vmatpush1.bf16.msra.mxu0 0
  %2044 = vmatprep.subr.bf16.mxu0 0
  %2045 = vmatpush1.bf16.msra.mxu0 0
  %2046 = vmatprep.subr.bf16.mxu0 0
  %2047 = vmatpush1.bf16.msra.mxu0 0
  %2048 = vmatprep.subr.bf16.mxu0 0
  %2049 = vmatpush1.bf16.msra.mxu0 0
  %2050 = vmatprep.mubr.bf16.mxu0 0
  %2051 = vmatmul.mubr.bf16.gmra.mrb[0].mxu0 %v2017
  %v2052 = vpop.f32.mrb[0].mxu0
  %v2053 = vadd.f32 0.0, %v2052
  %v2054 = vpop.f32.mrb[0].mxu0
  %v2055 = vadd.f32 0.0, %v2054
  %v2056 = vpop.f32.mrb[0].mxu0
  %v2057 = vadd.f32 0.0, %v2056
  %v2058 = vpop.f32.mrb[0].mxu0
  %v2059 = vadd.f32 0.0, %v2058
  %2060 = vdwg.mxu0
  %2061 = vmatprep.subr.bf16.mxu0 %v1045
  %2062 = vmatpush1.bf16.msra.mxu0 %v1044
  %2063 = vmatprep.subr.bf16.mxu0 %v1049
  %2064 = vmatpush1.bf16.msra.mxu0 %v1048
  %2065 = vmatprep.subr.bf16.mxu0 %v1053
  %2066 = vmatpush1.bf16.msra.mxu0 %v1052
  %2067 = vmatprep.subr.bf16.mxu0 %v1057
  %2068 = vmatpush1.bf16.msra.mxu0 %v1056
  %2069 = vmatprep.subr.bf16.mxu0 %v1061
  %2070 = vmatpush1.bf16.msra.mxu0 %v1060
  %2071 = vmatprep.subr.bf16.mxu0 %v1065
  %2072 = vmatpush1.bf16.msra.mxu0 %v1064
  %2073 = vmatprep.subr.bf16.mxu0 %v1069
  %2074 = vmatpush1.bf16.msra.mxu0 %v1068
  %2075 = vmatprep.subr.bf16.mxu0 %v1073
  %2076 = vmatpush1.bf16.msra.mxu0 %v1072
  %2077 = vmatprep.subr.bf16.mxu0 0
  %2078 = vmatpush1.bf16.msra.mxu0 0
  %2079 = vmatprep.subr.bf16.mxu0 0
  %2080 = vmatpush1.bf16.msra.mxu0 0
  %2081 = vmatprep.subr.bf16.mxu0 0
  %2082 = vmatpush1.bf16.msra.mxu0 0
  %2083 = vmatprep.subr.bf16.mxu0 0
  %2084 = vmatpush1.bf16.msra.mxu0 0
  %2085 = vmatprep.subr.bf16.mxu0 0
  %2086 = vmatpush1.bf16.msra.mxu0 0
  %2087 = vmatprep.subr.bf16.mxu0 0
  %2088 = vmatpush1.bf16.msra.mxu0 0
  %2089 = vmatprep.subr.bf16.mxu0 0
  %2090 = vmatpush1.bf16.msra.mxu0 0
  %2091 = vmatprep.subr.bf16.mxu0 0
  %2092 = vmatpush1.bf16.msra.mxu0 0
  %2093 = vmatprep.mubr.bf16.mxu0 0
  %2094 = vmatmul.mubr.bf16.gmra.mrb[0].mxu0 %v2017
  %v2095 = vpop.f32.mrb[0].mxu0
  %v2096 = vadd.f32 0.0, %v2095
  %v2097 = vpop.f32.mrb[0].mxu0
  %v2098 = vadd.f32 0.0, %v2097
  %v2099 = vpop.f32.mrb[0].mxu0
  %v2100 = vadd.f32 0.0, %v2099
  %v2101 = vpop.f32.mrb[0].mxu0
  %v2102 = vadd.f32 0.0, %v2101
  %2103 = vdwg.mxu0
  %v2104 = vadd.f32 %v2009, %v2053
  %v2105 = vadd.f32 %v2010, %v2055
  %v2106 = vadd.f32 %v2011, %v2096
  %v2107 = vadd.f32 %v2012, %v2098
  %v2108 = vadd.f32 %v2013, %v2057
  %v2109 = vadd.f32 %v2014, %v2059
  %v2110 = vadd.f32 %v2015, %v2100
  %v2111 = vadd.f32 %v2016, %v2102
  %v2112 = vxor.u32 %v2104, 2147483648
  %v2113 = vxor.u32 %v2105, 2147483648
  %v2114 = vxor.u32 %v2108, 2147483648
  %v2115 = vxor.u32 %v2109, 2147483648
  %v2116 = vmul.f32 %v2112, 1.442695
  %v2117 = vpow.pop %v2116
  %v2118 = vmul.f32 %v2113, 1.442695
  %v2119 = vpow.pop %v2118
  %v2120 = vmul.f32 %v2114, 1.442695
  %v2121 = vpow.pop %v2120
  %v2122 = vmul.f32 %v2115, 1.442695
  %v2123 = vpow.pop %v2122
  %v2124 = vadd.f32 %v2117, 1.0
  %v2125 = vadd.f32 %v2119, 1.0
  %v2126 = vadd.f32 %v2121, 1.0
  %v2127 = vadd.f32 %v2123, 1.0
  %v2128 = vrcp.pop %v2124
  %v2129 = vmul.f32 1.0, %v2128
  %v2130 = vrcp.pop %v2125
  %v2131 = vmul.f32 1.0, %v2130
  %v2132 = vrcp.pop %v2126
  %v2133 = vmul.f32 1.0, %v2132
  %v2134 = vrcp.pop %v2127
  %v2135 = vmul.f32 1.0, %v2134
  %v2136 = vtanh.pop %v2106
  %v2137 = vtanh.pop %v2110
  %v2138 = vxor.u32 %v2107, 2147483648
  %v2139 = vxor.u32 %v2111, 2147483648
  %v2140 = vmul.f32 %v2138, 1.442695
  %v2141 = vpow.pop %v2140
  %v2142 = vmul.f32 %v2139, 1.442695
  %v2143 = vpow.pop %v2142
  %v2144 = vadd.f32 %v2141, 1.0
  %v2145 = vadd.f32 %v2143, 1.0
  %v2146 = vrcp.pop %v2144
  %v2147 = vmul.f32 1.0, %v2146
  %v2148 = vrcp.pop %v2145
  %v2149 = vmul.f32 1.0, %v2148
  %v2150 = vmul.f32 %v2131, %v2002
  %v2151 = vmul.f32 %v2135, %v2003
  %v2152 = vmul.f32 %v2129, %v2136
  %v2153 = vmul.f32 %v2133, %v2137
  %v2154 = vadd.f32 %v2150, %v2152
  %v2155 = vadd.f32 %v2151, %v2153
  %v2156 = vtanh.pop %v2154
  %v2157 = vtanh.pop %v2155
  %v2158 = vmul.f32 %v2147, %v2156
  %v2159 = vmul.f32 %v2149, %v2157
  %s2160 = scalar_lea.vmem [#allocation2], 448
  %v2161 = vld [vmem:[%s2160] sm:$0xff]
  %v2162 = vld [vmem:[%s2160 + $0x8] sm:$0xff]
  %v2163 = vld [vmem:[%s2160 + $0x10] sm:$0xff]
  %v2164 = vld [vmem:[%s2160 + $0x18] sm:$0xff]
  %v2165 = vld [vmem:[%s2160 + $0x20] sm:$0xff]
  %v2166 = vld [vmem:[%s2160 + $0x28] sm:$0xff]
  %v2167 = vld [vmem:[%s2160 + $0x30] sm:$0xff]
  %v2168 = vld [vmem:[%s2160 + $0x38] sm:$0xff]
  %v2169 = vpack.c.bf16 %v2159, %v2158
  %2170 = vmatprep.subr.bf16.mxu0 %v1043
  %2171 = vmatpush1.bf16.msra.mxu0 %v1042
  %2172 = vmatprep.subr.bf16.mxu0 %v1047
  %2173 = vmatpush1.bf16.msra.mxu0 %v1046
  %2174 = vmatprep.subr.bf16.mxu0 %v1051
  %2175 = vmatpush1.bf16.msra.mxu0 %v1050
  %2176 = vmatprep.subr.bf16.mxu0 %v1055
  %2177 = vmatpush1.bf16.msra.mxu0 %v1054
  %2178 = vmatprep.subr.bf16.mxu0 %v1059
  %2179 = vmatpush1.bf16.msra.mxu0 %v1058
  %2180 = vmatprep.subr.bf16.mxu0 %v1063
  %2181 = vmatpush1.bf16.msra.mxu0 %v1062
  %2182 = vmatprep.subr.bf16.mxu0 %v1067
  %2183 = vmatpush1.bf16.msra.mxu0 %v1066
  %2184 = vmatprep.subr.bf16.mxu0 %v1071
  %2185 = vmatpush1.bf16.msra.mxu0 %v1070
  %2186 = vmatprep.subr.bf16.mxu0 0
  %2187 = vmatpush1.bf16.msra.mxu0 0
  %2188 = vmatprep.subr.bf16.mxu0 0
  %2189 = vmatpush1.bf16.msra.mxu0 0
  %2190 = vmatprep.subr.bf16.mxu0 0
  %2191 = vmatpush1.bf16.msra.mxu0 0
  %2192 = vmatprep.subr.bf16.mxu0 0
  %2193 = vmatpush1.bf16.msra.mxu0 0
  %2194 = vmatprep.subr.bf16.mxu0 0
  %2195 = vmatpush1.bf16.msra.mxu0 0
  %2196 = vmatprep.subr.bf16.mxu0 0
  %2197 = vmatpush1.bf16.msra.mxu0 0
  %2198 = vmatprep.subr.bf16.mxu0 0
  %2199 = vmatpush1.bf16.msra.mxu0 0
  %2200 = vmatprep.subr.bf16.mxu0 0
  %2201 = vmatpush1.bf16.msra.mxu0 0
  %2202 = vmatprep.mubr.bf16.mxu0 0
  %2203 = vmatmul.mubr.bf16.gmra.mrb[0].mxu0 %v2169
  %v2204 = vpop.f32.mrb[0].mxu0
  %v2205 = vadd.f32 0.0, %v2204
  %v2206 = vpop.f32.mrb[0].mxu0
  %v2207 = vadd.f32 0.0, %v2206
  %v2208 = vpop.f32.mrb[0].mxu0
  %v2209 = vadd.f32 0.0, %v2208
  %v2210 = vpop.f32.mrb[0].mxu0
  %v2211 = vadd.f32 0.0, %v2210
  %2212 = vdwg.mxu0
  %2213 = vmatprep.subr.bf16.mxu0 %v1045
  %2214 = vmatpush1.bf16.msra.mxu0 %v1044
  %2215 = vmatprep.subr.bf16.mxu0 %v1049
  %2216 = vmatpush1.bf16.msra.mxu0 %v1048
  %2217 = vmatprep.subr.bf16.mxu0 %v1053
  %2218 = vmatpush1.bf16.msra.mxu0 %v1052
  %2219 = vmatprep.subr.bf16.mxu0 %v1057
  %2220 = vmatpush1.bf16.msra.mxu0 %v1056
  %2221 = vmatprep.subr.bf16.mxu0 %v1061
  %2222 = vmatpush1.bf16.msra.mxu0 %v1060
  %2223 = vmatprep.subr.bf16.mxu0 %v1065
  %2224 = vmatpush1.bf16.msra.mxu0 %v1064
  %2225 = vmatprep.subr.bf16.mxu0 %v1069
  %2226 = vmatpush1.bf16.msra.mxu0 %v1068
  %2227 = vmatprep.subr.bf16.mxu0 %v1073
  %2228 = vmatpush1.bf16.msra.mxu0 %v1072
  %2229 = vmatprep.subr.bf16.mxu0 0
  %2230 = vmatpush1.bf16.msra.mxu0 0
  %2231 = vmatprep.subr.bf16.mxu0 0
  %2232 = vmatpush1.bf16.msra.mxu0 0
  %2233 = vmatprep.subr.bf16.mxu0 0
  %2234 = vmatpush1.bf16.msra.mxu0 0
  %2235 = vmatprep.subr.bf16.mxu0 0
  %2236 = vmatpush1.bf16.msra.mxu0 0
  %2237 = vmatprep.subr.bf16.mxu0 0
  %2238 = vmatpush1.bf16.msra.mxu0 0
  %2239 = vmatprep.subr.bf16.mxu0 0
  %2240 = vmatpush1.bf16.msra.mxu0 0
  %2241 = vmatprep.subr.bf16.mxu0 0
  %2242 = vmatpush1.bf16.msra.mxu0 0
  %2243 = vmatprep.subr.bf16.mxu0 0
  %2244 = vmatpush1.bf16.msra.mxu0 0
  %2245 = vmatprep.mubr.bf16.mxu0 0
  %2246 = vmatmul.mubr.bf16.gmra.mrb[0].mxu0 %v2169
  %v2247 = vpop.f32.mrb[0].mxu0
  %v2248 = vadd.f32 0.0, %v2247
  %v2249 = vpop.f32.mrb[0].mxu0
  %v2250 = vadd.f32 0.0, %v2249
  %v2251 = vpop.f32.mrb[0].mxu0
  %v2252 = vadd.f32 0.0, %v2251
  %v2253 = vpop.f32.mrb[0].mxu0
  %v2254 = vadd.f32 0.0, %v2253
  %2255 = vdwg.mxu0
  %v2256 = vadd.f32 %v2161, %v2205
  %v2257 = vadd.f32 %v2162, %v2207
  %v2258 = vadd.f32 %v2163, %v2248
  %v2259 = vadd.f32 %v2164, %v2250
  %v2260 = vadd.f32 %v2165, %v2209
  %v2261 = vadd.f32 %v2166, %v2211
  %v2262 = vadd.f32 %v2167, %v2252
  %v2263 = vadd.f32 %v2168, %v2254
  %v2264 = vxor.u32 %v2256, 2147483648
  %v2265 = vxor.u32 %v2257, 2147483648
  %v2266 = vxor.u32 %v2260, 2147483648
  %v2267 = vxor.u32 %v2261, 2147483648
  %v2268 = vmul.f32 %v2264, 1.442695
  %v2269 = vpow.pop %v2268
  %v2270 = vmul.f32 %v2265, 1.442695
  %v2271 = vpow.pop %v2270
  %v2272 = vmul.f32 %v2266, 1.442695
  %v2273 = vpow.pop %v2272
  %v2274 = vmul.f32 %v2267, 1.442695
  %v2275 = vpow.pop %v2274
  %v2276 = vadd.f32 %v2269, 1.0
  %v2277 = vadd.f32 %v2271, 1.0
  %v2278 = vadd.f32 %v2273, 1.0
  %v2279 = vadd.f32 %v2275, 1.0
  %v2280 = vrcp.pop %v2276
  %v2281 = vmul.f32 1.0, %v2280
  %v2282 = vrcp.pop %v2277
  %v2283 = vmul.f32 1.0, %v2282
  %v2284 = vrcp.pop %v2278
  %v2285 = vmul.f32 1.0, %v2284
  %v2286 = vrcp.pop %v2279
  %v2287 = vmul.f32 1.0, %v2286
  %v2288 = vtanh.pop %v2258
  %v2289 = vtanh.pop %v2262
  %v2290 = vxor.u32 %v2259, 2147483648
  %v2291 = vxor.u32 %v2263, 2147483648
  %v2292 = vmul.f32 %v2290, 1.442695
  %v2293 = vpow.pop %v2292
  %v2294 = vmul.f32 %v2291, 1.442695
  %v2295 = vpow.pop %v2294
  %v2296 = vadd.f32 %v2293, 1.0
  %v2297 = vadd.f32 %v2295, 1.0
  %v2298 = vrcp.pop %v2296
  %v2299 = vmul.f32 1.0, %v2298
  %v2300 = vrcp.pop %v2297
  %v2301 = vmul.f32 1.0, %v2300
  %v2302 = vmul.f32 %v2283, %v2154
  %v2303 = vmul.f32 %v2287, %v2155
  %v2304 = vmul.f32 %v2281, %v2288
  %v2305 = vmul.f32 %v2285, %v2289
  %v2306 = vadd.f32 %v2302, %v2304
  %v2307 = vadd.f32 %v2303, %v2305
  %v2308 = vtanh.pop %v2306
  %v2309 = vtanh.pop %v2307
  %v2310 = vmul.f32 %v2299, %v2308
  %v2311 = vmul.f32 %v2301, %v2309
  %v2312 = vpack.c.bf16 %v2310, %v2310
  %v2313 = vld [vmem:[%s6] sm:$0xf]
  %v2314 = vld [vmem:[%s6 + $0x4] sm:$0xf]
  %v2315 = vld [vmem:[%s6 + $0x8] sm:$0xf]
  %v2316 = vld [vmem:[%s6 + $0xc] sm:$0xf]
  %v2317 = vld [vmem:[%s6 + $0x10] sm:$0xf]
  %v2318 = vld [vmem:[%s6 + $0x14] sm:$0xf]
  %v2319 = vld [vmem:[%s6 + $0x18] sm:$0xf]
  %v2320 = vld [vmem:[%s6 + $0x1c] sm:$0xf]
  %v2321 = vld [vmem:[%s6 + $0x20] sm:$0xf]
  %v2322 = vld [vmem:[%s6 + $0x24] sm:$0xf]
  %v2323 = vld [vmem:[%s6 + $0x28] sm:$0xf]
  %v2324 = vld [vmem:[%s6 + $0x2c] sm:$0xf]
  %v2325 = vld [vmem:[%s6 + $0x30] sm:$0xf]
  %v2326 = vld [vmem:[%s6 + $0x34] sm:$0xf]
  %v2327 = vld [vmem:[%s6 + $0x38] sm:$0xf]
  %v2328 = vld [vmem:[%s6 + $0x3c] sm:$0xf]
  %v2329 = vpack.c.bf16 %v904, %v904
  %s2330 = scalar_lea.vmem %s6, 64
  %v2331 = vld [vmem:[%s2330] sm:$0xf]
  %v2332 = vld [vmem:[%s2330 + $0x4] sm:$0xf]
  %v2333 = vld [vmem:[%s2330 + $0x8] sm:$0xf]
  %v2334 = vld [vmem:[%s2330 + $0xc] sm:$0xf]
  %v2335 = vld [vmem:[%s2330 + $0x10] sm:$0xf]
  %v2336 = vld [vmem:[%s2330 + $0x14] sm:$0xf]
  %v2337 = vld [vmem:[%s2330 + $0x18] sm:$0xf]
  %v2338 = vld [vmem:[%s2330 + $0x1c] sm:$0xf]
  %v2339 = vld [vmem:[%s2330 + $0x20] sm:$0xf]
  %v2340 = vld [vmem:[%s2330 + $0x24] sm:$0xf]
  %v2341 = vld [vmem:[%s2330 + $0x28] sm:$0xf]
  %v2342 = vld [vmem:[%s2330 + $0x2c] sm:$0xf]
  %v2343 = vld [vmem:[%s2330 + $0x30] sm:$0xf]
  %v2344 = vld [vmem:[%s2330 + $0x34] sm:$0xf]
  %v2345 = vld [vmem:[%s2330 + $0x38] sm:$0xf]
  %v2346 = vld [vmem:[%s2330 + $0x3c] sm:$0xf]
  %v2363 = vunpack.c.l.b16 %v2331
  %v2364 = vunpack.c.l.b16 %v2332
  %v2365 = vunpack.c.l.b16 %v2333
  %v2366 = vunpack.c.l.b16 %v2334
  %v2367 = vunpack.c.l.b16 %v2335
  %v2368 = vunpack.c.l.b16 %v2336
  %v2369 = vunpack.c.l.b16 %v2337
  %v2370 = vunpack.c.l.b16 %v2338
  %v2371 = vunpack.c.l.b16 %v2339
  %v2372 = vunpack.c.l.b16 %v2340
  %v2373 = vunpack.c.l.b16 %v2341
  %v2374 = vunpack.c.l.b16 %v2342
  %v2375 = vunpack.c.l.b16 %v2343
  %v2376 = vunpack.c.l.b16 %v2344
  %v2377 = vunpack.c.l.b16 %v2345
  %v2378 = vunpack.c.l.b16 %v2346
  %v2379 = vpack.c.b16 %v2364, %v2363
  %v2380 = vpack.c.b16 %v2366, %v2365
  %v2381 = vpack.c.b16 %v2368, %v2367
  %v2382 = vpack.c.b16 %v2370, %v2369
  %v2383 = vpack.c.b16 %v2372, %v2371
  %v2384 = vpack.c.b16 %v2374, %v2373
  %v2385 = vpack.c.b16 %v2376, %v2375
  %v2386 = vpack.c.b16 %v2378, %v2377
  %2395 = vmatprep.subr.bf16.mxu0 0
  %2396 = vmatpush1.bf16.msra.mxu0 %v2379
  %2397 = vmatprep.subr.bf16.mxu0 0
  %2398 = vmatpush1.bf16.msra.mxu0 %v2380
  %2399 = vmatprep.subr.bf16.mxu0 0
  %2400 = vmatpush1.bf16.msra.mxu0 %v2381
  %2401 = vmatprep.subr.bf16.mxu0 0
  %2402 = vmatpush1.bf16.msra.mxu0 %v2382
  %2403 = vmatprep.subr.bf16.mxu0 0
  %2404 = vmatpush1.bf16.msra.mxu0 %v2383
  %2405 = vmatprep.subr.bf16.mxu0 0
  %2406 = vmatpush1.bf16.msra.mxu0 %v2384
  %2407 = vmatprep.subr.bf16.mxu0 0
  %2408 = vmatpush1.bf16.msra.mxu0 %v2385
  %2409 = vmatprep.subr.bf16.mxu0 0
  %2410 = vmatpush1.bf16.msra.mxu0 %v2386
  %2411 = vmatprep.subr.bf16.mxu0 0
  %2412 = vmatpush1.bf16.msra.mxu0 0
  %2413 = vmatprep.subr.bf16.mxu0 0
  %2414 = vmatpush1.bf16.msra.mxu0 0
  %2415 = vmatprep.subr.bf16.mxu0 0
  %2416 = vmatpush1.bf16.msra.mxu0 0
  %2417 = vmatprep.subr.bf16.mxu0 0
  %2418 = vmatpush1.bf16.msra.mxu0 0
  %2419 = vmatprep.subr.bf16.mxu0 0
  %2420 = vmatpush1.bf16.msra.mxu0 0
  %2421 = vmatprep.subr.bf16.mxu0 0
  %2422 = vmatpush1.bf16.msra.mxu0 0
  %2423 = vmatprep.subr.bf16.mxu0 0
  %2424 = vmatpush1.bf16.msra.mxu0 0
  %2425 = vmatprep.subr.bf16.mxu0 0
  %2426 = vmatpush1.bf16.msra.mxu0 0
  %2427 = vmatprep.mubr.bf16.mxu0 0
  %2428 = vmatmul.mubr.bf16.gmra.mrb[0].mxu0 %v2329
  %v2429 = vpop.f32.mrb[0].mxu0
  %v2430 = vadd.f32 0.0, %v2429
  %v2431 = vpop.f32.mrb[0].mxu0
  %v2432 = vpop.f32.mrb[0].mxu0
  %v2433 = vpop.f32.mrb[0].mxu0
  %2434 = vdwg.mxu0
  %v2451 = vunpack.c.l.b16 %v2313
  %v2452 = vunpack.c.l.b16 %v2314
  %v2453 = vunpack.c.l.b16 %v2315
  %v2454 = vunpack.c.l.b16 %v2316
  %v2455 = vunpack.c.l.b16 %v2317
  %v2456 = vunpack.c.l.b16 %v2318
  %v2457 = vunpack.c.l.b16 %v2319
  %v2458 = vunpack.c.l.b16 %v2320
  %v2459 = vunpack.c.l.b16 %v2321
  %v2460 = vunpack.c.l.b16 %v2322
  %v2461 = vunpack.c.l.b16 %v2323
  %v2462 = vunpack.c.l.b16 %v2324
  %v2463 = vunpack.c.l.b16 %v2325
  %v2464 = vunpack.c.l.b16 %v2326
  %v2465 = vunpack.c.l.b16 %v2327
  %v2466 = vunpack.c.l.b16 %v2328
  %v2467 = vpack.c.b16 %v2452, %v2451
  %v2468 = vpack.c.b16 %v2454, %v2453
  %v2469 = vpack.c.b16 %v2456, %v2455
  %v2470 = vpack.c.b16 %v2458, %v2457
  %v2471 = vpack.c.b16 %v2460, %v2459
  %v2472 = vpack.c.b16 %v2462, %v2461
  %v2473 = vpack.c.b16 %v2464, %v2463
  %v2474 = vpack.c.b16 %v2466, %v2465
  %2483 = vmatprep.subr.bf16.mxu0 0
  %2484 = vmatpush1.bf16.msra.mxu0 %v2467
  %2485 = vmatprep.subr.bf16.mxu0 0
  %2486 = vmatpush1.bf16.msra.mxu0 %v2468
  %2487 = vmatprep.subr.bf16.mxu0 0
  %2488 = vmatpush1.bf16.msra.mxu0 %v2469
  %2489 = vmatprep.subr.bf16.mxu0 0
  %2490 = vmatpush1.bf16.msra.mxu0 %v2470
  %2491 = vmatprep.subr.bf16.mxu0 0
  %2492 = vmatpush1.bf16.msra.mxu0 %v2471
  %2493 = vmatprep.subr.bf16.mxu0 0
  %2494 = vmatpush1.bf16.msra.mxu0 %v2472
  %2495 = vmatprep.subr.bf16.mxu0 0
  %2496 = vmatpush1.bf16.msra.mxu0 %v2473
  %2497 = vmatprep.subr.bf16.mxu0 0
  %2498 = vmatpush1.bf16.msra.mxu0 %v2474
  %2499 = vmatprep.subr.bf16.mxu0 0
  %2500 = vmatpush1.bf16.msra.mxu0 0
  %2501 = vmatprep.subr.bf16.mxu0 0
  %2502 = vmatpush1.bf16.msra.mxu0 0
  %2503 = vmatprep.subr.bf16.mxu0 0
  %2504 = vmatpush1.bf16.msra.mxu0 0
  %2505 = vmatprep.subr.bf16.mxu0 0
  %2506 = vmatpush1.bf16.msra.mxu0 0
  %2507 = vmatprep.subr.bf16.mxu0 0
  %2508 = vmatpush1.bf16.msra.mxu0 0
  %2509 = vmatprep.subr.bf16.mxu0 0
  %2510 = vmatpush1.bf16.msra.mxu0 0
  %2511 = vmatprep.subr.bf16.mxu0 0
  %2512 = vmatpush1.bf16.msra.mxu0 0
  %2513 = vmatprep.subr.bf16.mxu0 0
  %2514 = vmatpush1.bf16.msra.mxu0 0
  %2515 = vmatprep.mubr.bf16.mxu0 0
  %2516 = vmatmul.mubr.bf16.gmra.mrb[0].mxu0 %v2312
  %v2517 = vpop.f32.mrb[0].mxu0
  %v2518 = vadd.f32 %v2430, %v2517
  %v2519 = vpop.f32.mrb[0].mxu0
  %v2520 = vpop.f32.mrb[0].mxu0
  %v2521 = vpop.f32.mrb[0].mxu0
  %2522 = vdwg.mxu0
  %v2523 = vpack.c.bf16 %v2311, %v2311
  %s2524 = scalar_lea.vmem %s6, 128
  %v2525 = vld [vmem:[%s2524] sm:$0xf]
  %v2526 = vld [vmem:[%s2524 + $0x4] sm:$0xf]
  %v2527 = vld [vmem:[%s2524 + $0x8] sm:$0xf]
  %v2528 = vld [vmem:[%s2524 + $0xc] sm:$0xf]
  %v2529 = vld [vmem:[%s2524 + $0x10] sm:$0xf]
  %v2530 = vld [vmem:[%s2524 + $0x14] sm:$0xf]
  %v2531 = vld [vmem:[%s2524 + $0x18] sm:$0xf]
  %v2532 = vld [vmem:[%s2524 + $0x1c] sm:$0xf]
  %v2533 = vld [vmem:[%s2524 + $0x20] sm:$0xf]
  %v2534 = vld [vmem:[%s2524 + $0x24] sm:$0xf]
  %v2535 = vld [vmem:[%s2524 + $0x28] sm:$0xf]
  %v2536 = vld [vmem:[%s2524 + $0x2c] sm:$0xf]
  %v2537 = vld [vmem:[%s2524 + $0x30] sm:$0xf]
  %v2538 = vld [vmem:[%s2524 + $0x34] sm:$0xf]
  %v2539 = vld [vmem:[%s2524 + $0x38] sm:$0xf]
  %v2540 = vld [vmem:[%s2524 + $0x3c] sm:$0xf]
  %v2557 = vunpack.c.l.b16 %v2525
  %v2558 = vunpack.c.l.b16 %v2526
  %v2559 = vunpack.c.l.b16 %v2527
  %v2560 = vunpack.c.l.b16 %v2528
  %v2561 = vunpack.c.l.b16 %v2529
  %v2562 = vunpack.c.l.b16 %v2530
  %v2563 = vunpack.c.l.b16 %v2531
  %v2564 = vunpack.c.l.b16 %v2532
  %v2565 = vunpack.c.l.b16 %v2533
  %v2566 = vunpack.c.l.b16 %v2534
  %v2567 = vunpack.c.l.b16 %v2535
  %v2568 = vunpack.c.l.b16 %v2536
  %v2569 = vunpack.c.l.b16 %v2537
  %v2570 = vunpack.c.l.b16 %v2538
  %v2571 = vunpack.c.l.b16 %v2539
  %v2572 = vunpack.c.l.b16 %v2540
  %v2573 = vpack.c.b16 %v2558, %v2557
  %v2574 = vpack.c.b16 %v2560, %v2559
  %v2575 = vpack.c.b16 %v2562, %v2561
  %v2576 = vpack.c.b16 %v2564, %v2563
  %v2577 = vpack.c.b16 %v2566, %v2565
  %v2578 = vpack.c.b16 %v2568, %v2567
  %v2579 = vpack.c.b16 %v2570, %v2569
  %v2580 = vpack.c.b16 %v2572, %v2571
  %2589 = vmatprep.subr.bf16.mxu0 0
  %2590 = vmatpush1.bf16.msra.mxu0 %v2573
  %2591 = vmatprep.subr.bf16.mxu0 0
  %2592 = vmatpush1.bf16.msra.mxu0 %v2574
  %2593 = vmatprep.subr.bf16.mxu0 0
  %2594 = vmatpush1.bf16.msra.mxu0 %v2575
  %2595 = vmatprep.subr.bf16.mxu0 0
  %2596 = vmatpush1.bf16.msra.mxu0 %v2576
  %2597 = vmatprep.subr.bf16.mxu0 0
  %2598 = vmatpush1.bf16.msra.mxu0 %v2577
  %2599 = vmatprep.subr.bf16.mxu0 0
  %2600 = vmatpush1.bf16.msra.mxu0 %v2578
  %2601 = vmatprep.subr.bf16.mxu0 0
  %2602 = vmatpush1.bf16.msra.mxu0 %v2579
  %2603 = vmatprep.subr.bf16.mxu0 0
  %2604 = vmatpush1.bf16.msra.mxu0 %v2580
  %2605 = vmatprep.subr.bf16.mxu0 0
  %2606 = vmatpush1.bf16.msra.mxu0 0
  %2607 = vmatprep.subr.bf16.mxu0 0
  %2608 = vmatpush1.bf16.msra.mxu0 0
  %2609 = vmatprep.subr.bf16.mxu0 0
  %2610 = vmatpush1.bf16.msra.mxu0 0
  %2611 = vmatprep.subr.bf16.mxu0 0
  %2612 = vmatpush1.bf16.msra.mxu0 0
  %2613 = vmatprep.subr.bf16.mxu0 0
  %2614 = vmatpush1.bf16.msra.mxu0 0
  %2615 = vmatprep.subr.bf16.mxu0 0
  %2616 = vmatpush1.bf16.msra.mxu0 0
  %2617 = vmatprep.subr.bf16.mxu0 0
  %2618 = vmatpush1.bf16.msra.mxu0 0
  %2619 = vmatprep.subr.bf16.mxu0 0
  %2620 = vmatpush1.bf16.msra.mxu0 0
  %2621 = vmatprep.mubr.bf16.mxu0 0
  %2622 = vmatmul.mubr.bf16.gmra.mrb[0].mxu0 %v2523
  %v2623 = vpop.f32.mrb[0].mxu0
  %v2624 = vadd.f32 0.0, %v2623
  %v2625 = vpop.f32.mrb[0].mxu0
  %v2626 = vpop.f32.mrb[0].mxu0
  %v2627 = vpop.f32.mrb[0].mxu0
  %2628 = vdwg.mxu0
  %v2629 = vadd.f32 %v2518, %v2624
  %v2630 = vpack.c.bf16 %v905, %v905
  %s2631 = scalar_lea.vmem %s6, 192
  %v2632 = vld [vmem:[%s2631] sm:$0xf]
  %v2633 = vld [vmem:[%s2631 + $0x4] sm:$0xf]
  %v2634 = vld [vmem:[%s2631 + $0x8] sm:$0xf]
  %v2635 = vld [vmem:[%s2631 + $0xc] sm:$0xf]
  %v2636 = vld [vmem:[%s2631 + $0x10] sm:$0xf]
  %v2637 = vld [vmem:[%s2631 + $0x14] sm:$0xf]
  %v2638 = vld [vmem:[%s2631 + $0x18] sm:$0xf]
  %v2639 = vld [vmem:[%s2631 + $0x1c] sm:$0xf]
  %v2640 = vld [vmem:[%s2631 + $0x20] sm:$0xf]
  %v2641 = vld [vmem:[%s2631 + $0x24] sm:$0xf]
  %v2642 = vld [vmem:[%s2631 + $0x28] sm:$0xf]
  %v2643 = vld [vmem:[%s2631 + $0x2c] sm:$0xf]
  %v2644 = vld [vmem:[%s2631 + $0x30] sm:$0xf]
  %v2645 = vld [vmem:[%s2631 + $0x34] sm:$0xf]
  %v2646 = vld [vmem:[%s2631 + $0x38] sm:$0xf]
  %v2647 = vld [vmem:[%s2631 + $0x3c] sm:$0xf]
  %v2664 = vunpack.c.l.b16 %v2632
  %v2665 = vunpack.c.l.b16 %v2633
  %v2666 = vunpack.c.l.b16 %v2634
  %v2667 = vunpack.c.l.b16 %v2635
  %v2668 = vunpack.c.l.b16 %v2636
  %v2669 = vunpack.c.l.b16 %v2637
  %v2670 = vunpack.c.l.b16 %v2638
  %v2671 = vunpack.c.l.b16 %v2639
  %v2672 = vunpack.c.l.b16 %v2640
  %v2673 = vunpack.c.l.b16 %v2641
  %v2674 = vunpack.c.l.b16 %v2642
  %v2675 = vunpack.c.l.b16 %v2643
  %v2676 = vunpack.c.l.b16 %v2644
  %v2677 = vunpack.c.l.b16 %v2645
  %v2678 = vunpack.c.l.b16 %v2646
  %v2679 = vunpack.c.l.b16 %v2647
  %v2680 = vpack.c.b16 %v2665, %v2664
  %v2681 = vpack.c.b16 %v2667, %v2666
  %v2682 = vpack.c.b16 %v2669, %v2668
  %v2683 = vpack.c.b16 %v2671, %v2670
  %v2684 = vpack.c.b16 %v2673, %v2672
  %v2685 = vpack.c.b16 %v2675, %v2674
  %v2686 = vpack.c.b16 %v2677, %v2676
  %v2687 = vpack.c.b16 %v2679, %v2678
  %2696 = vmatprep.subr.bf16.mxu0 0
  %2697 = vmatpush1.bf16.msra.mxu0 %v2680
  %2698 = vmatprep.subr.bf16.mxu0 0
  %2699 = vmatpush1.bf16.msra.mxu0 %v2681
  %2700 = vmatprep.subr.bf16.mxu0 0
  %2701 = vmatpush1.bf16.msra.mxu0 %v2682
  %2702 = vmatprep.subr.bf16.mxu0 0
  %2703 = vmatpush1.bf16.msra.mxu0 %v2683
  %2704 = vmatprep.subr.bf16.mxu0 0
  %2705 = vmatpush1.bf16.msra.mxu0 %v2684
  %2706 = vmatprep.subr.bf16.mxu0 0
  %2707 = vmatpush1.bf16.msra.mxu0 %v2685
  %2708 = vmatprep.subr.bf16.mxu0 0
  %2709 = vmatpush1.bf16.msra.mxu0 %v2686
  %2710 = vmatprep.subr.bf16.mxu0 0
  %2711 = vmatpush1.bf16.msra.mxu0 %v2687
  %2712 = vmatprep.subr.bf16.mxu0 0
  %2713 = vmatpush1.bf16.msra.mxu0 0
  %2714 = vmatprep.subr.bf16.mxu0 0
  %2715 = vmatpush1.bf16.msra.mxu0 0
  %2716 = vmatprep.subr.bf16.mxu0 0
  %2717 = vmatpush1.bf16.msra.mxu0 0
  %2718 = vmatprep.subr.bf16.mxu0 0
  %2719 = vmatpush1.bf16.msra.mxu0 0
  %2720 = vmatprep.subr.bf16.mxu0 0
  %2721 = vmatpush1.bf16.msra.mxu0 0
  %2722 = vmatprep.subr.bf16.mxu0 0
  %2723 = vmatpush1.bf16.msra.mxu0 0
  %2724 = vmatprep.subr.bf16.mxu0 0
  %2725 = vmatpush1.bf16.msra.mxu0 0
  %2726 = vmatprep.subr.bf16.mxu0 0
  %2727 = vmatpush1.bf16.msra.mxu0 0
  %2728 = vmatprep.mubr.bf16.mxu0 0
  %2729 = vmatmul.mubr.bf16.gmra.mrb[0].mxu0 %v2630
  %v2730 = vpop.f32.mrb[0].mxu0
  %v2731 = vadd.f32 0.0, %v2730
  %v2732 = vpop.f32.mrb[0].mxu0
  %v2733 = vpop.f32.mrb[0].mxu0
  %v2734 = vpop.f32.mrb[0].mxu0
  %2735 = vdwg.mxu0
  %v2736 = vadd.f32 %v2629, %v2731
  %v2737 = vld [vmem:[%s7] sm:$0x1]
  %v2739 = vlaneseq
  %v2740 = vshrl.u32 %v2739, 7
  %v2741 = vsub.s32 0, %v2740
  %v2742 = vrot.slane %v2737, %v2741
  %v2744 = vadd.f32 %v2736, %v2742
  %2745 = vst [vmem:[%s8] sm:$0xff] %v2744
  // Predicated region
  $region34: #{siamese_bilstm_forward.1} parent=0 // pred_check
    _
  $region35: #{siamese_bilstm_forward.1} parent=0 // pred_check_branch
    %2747 = sbr.rel (0) target = $region37
  $region36: #{siamese_bilstm_forward.1} parent=0 // pred_region
    _
  $region37: #{siamese_bilstm_forward.1} parent=0 // pred_fallthru
    _
  // Predicated region
  $region38: #{siamese_bilstm_forward.1} parent=0 // pred_check
    _
  $region39: #{siamese_bilstm_forward.1} parent=0 // pred_check_branch
    %2749 = sbr.rel (0) target = $region41
  $region40: #{siamese_bilstm_forward.1} parent=0 // pred_region
    _
  $region41: #{siamese_bilstm_forward.1} parent=0 // pred_fallthru
    _

</llo_original>
